<compile_context>
chip_gen: v7x
topology: tpu7x:2x2x1
jax: 0.10.0
libtpu: 0.0.40
codegen_flags: <defaults>
</compile_context>

<pallas_src>
import zlib
from functools import partial

import jax
import jax.numpy as jnp
from jax import lax
from jax.experimental import pallas as pl
from jax.experimental.pallas import tpu as pltpu

SCALE_FACTOR = 0.18215   # LDM first-stage latent scale factor
MAX_TR = 16              # rows of 128 lanes per pixel tile -> tile = 2048 px


def _choose_tile(hw, max_tr=MAX_TR):
    """Rows-of-128 tiling of the per-image pixel axis."""
    r = -(-hw // 128)            # 128-lane rows needed for one image
    r8 = -(-r // 8) * 8          # pad rows to a multiple of 8 (full sublanes)
    tr = min(r8, max_tr)         # rows per tile (multiple of 8)
    r_pad = -(-r8 // tr) * tr    # padded row count (multiple of tr)
    return tr, r_pad


# ----------------------------------------------------------------------------
# Fused kernel: per (batch, pixel-tile) block runs the whole pipeline in vregs.
#   grid = (B, J);  x block (C, tr, 128), eps block (lat_c, tr, 128)
#   SMEM: enc_coef(2,), step_a/step_b(t_enc,), guid(B,lat_c), be(lat_c,),
#         bd(C,), we(lat_c,C), wz(lat_c,lat_c), wd(C,lat_c)
#   out : (8,128) per-batch partial SSE;  scratch: (tr,128) f32 accumulator.
# ----------------------------------------------------------------------------
def _diffusion_kernel(enc_ref, stepA_ref, stepB_ref, guid_ref, be_ref, bd_ref,
                      we_ref, wz_ref, wd_ref, x_ref, eps_ref,
                      o_ref, acc_ref, *, t_enc, hw, tr, lat_c, img_c, n_j):
    b = pl.program_id(0)
    j = pl.program_id(1)

    @pl.when(j == 0)
    def _():
        acc_ref[...] = jnp.zeros_like(acc_ref)

    # Scalar coefficients (SMEM), hoisted once per tile.
    e0 = enc_ref[0]
    e1 = enc_ref[1]
    g = [guid_ref[b, c] for c in range(lat_c)]
    wz = [[wz_ref[c, k] for k in range(lat_c)] for c in range(lat_c)]

    # Per-channel pixel slabs (tr, 128): lane- and sublane-dense vregs.
    x = [x_ref[c] for c in range(img_c)]

    # --- encode_first_stage (VAE 1x1 stand-in; SCALE_FACTOR folded into we/be)
    #     fused with sampler.stochastic_encode — scalar-broadcast VPU FMAs. ---
    # TODO(synk): real SD uses a deep conv VAE encoder here (no weights available).
    z = []
    for c in range(lat_c):
        lat = x[0] * we_ref[c, 0]
        for k in range(1, img_c):
            lat = lat + x[k] * we_ref[c, k]
        lat = lat + be_ref[c]
        z.append(e0 * lat + e1 * eps_ref[c])

    # --- sampler.decode: t_enc DDIM steps.  CFG folded into g[c]; update
    #     collapsed to z = A*z + B*e_t with A,B precomputed per step (SMEM). ---
    # TODO(synk): eps-model ignores timestep embedding / UNet nonlinearity /
    #             v-prediction parameterization (no checkpoint weights).
    for i in range(t_enc):
        sa = stepA_ref[i]
        sb = stepB_ref[i]
        z_new = []
        for c in range(lat_c):
            e_t = z[0] * wz[c][0]
            for k in range(1, lat_c):
                e_t = e_t + z[k] * wz[c][k]
            e_t = e_t + g[c]
            z_new.append(sa * z[c] + sb * e_t)
        z = z_new

    # --- decode_first_stage (1/SCALE_FACTOR folded), clamp, squared error ---
    d2 = None
    for c in range(img_c):
        xd = z[0] * wd_ref[c, 0]
        for k in range(1, lat_c):
            xd = xd + z[k] * wd_ref[c, k]
        xd = xd + bd_ref[c]
        xs = jnp.clip((xd + 1.0) * 0.5, 0.0, 1.0)
        d = xs - x[c]
        d2 = d * d if d2 is None else d2 + d * d

    tn = tr * 128
    if n_j * tn != hw:   # static: padding exists -> mask only the last tile
        last = n_j - 1

        @pl.when(j == last)
        def _():
            sub = lax.broadcasted_iota(jnp.int32, (tr, 128), 0)
            ln = lax.broadcasted_iota(jnp.int32, (tr, 128), 1)
            pix = last * tn + sub * 128 + ln
            acc_ref[...] = acc_ref[...] + jnp.where(pix < hw, d2, 0.0)

        @pl.when(j != last)
        def _():
            acc_ref[...] = acc_ref[...] + d2
    else:
        acc_ref[...] = acc_ref[...] + d2

    # Finalize: fold (tr,128) accumulator to an (8,128) lane-dense partial SSE.
    @pl.when(j == n_j - 1)
    def _():
        a = acc_ref[...]
        r = a[0:8, :]
        for s in range(1, tr // 8):
            r = r + a[8 * s:8 * (s + 1), :]
        o_ref[...] = r


# ----------------------------------------------------------------------------
# Glue: schedules, synthetic params, prompt "embedding"
# ----------------------------------------------------------------------------
def make_ddim_schedule(ddim_num_steps=50, num_train_steps=1000,
                       beta_start=0.00085, beta_end=0.0120):
    betas = jnp.linspace(beta_start ** 0.5, beta_end ** 0.5, num_train_steps,
                         dtype=jnp.float32) ** 2
    alphas_cumprod = jnp.cumprod(1.0 - betas)
    c = num_train_steps // ddim_num_steps
    ddim_ts = jnp.arange(0, num_train_steps, c) + 1
    ddim_alphas = alphas_cumprod[ddim_ts]
    ddim_alphas_prev = jnp.concatenate(
        [alphas_cumprod[0:1], alphas_cumprod[ddim_ts[:-1]]])
    return {
        "sqrt_ddim_alphas": jnp.sqrt(ddim_alphas),
        "sqrt_one_minus_ddim_alphas": jnp.sqrt(1.0 - ddim_alphas),
        "sqrt_ddim_alphas_prev": jnp.sqrt(ddim_alphas_prev),
        "sqrt_one_minus_ddim_alphas_prev": jnp.sqrt(1.0 - ddim_alphas_prev),
    }


def make_params(key, img_c, lat_c, cond_d):
    ks = jax.random.split(key, 7)
    p = {
        "We": jax.random.normal(ks[0], (lat_c, img_c)) * 0.3,    # VAE-enc stand-in
        "be": jax.random.normal(ks[1], (lat_c,)) * 0.01,
        "Wz": jax.random.normal(ks[2], (lat_c, lat_c)) * 0.3,    # UNet stand-in
        "Wc": jax.random.normal(ks[3], (lat_c, cond_d)) * 0.05,  # cond projection
        "b_eps": jax.random.normal(ks[4], (lat_c,)) * 0.01,
        "Wd": jax.random.normal(ks[5], (img_c, lat_c)) * 0.3,    # VAE-dec stand-in
        "bd": jax.random.normal(ks[6], (img_c,)) * 0.01,
    }
    return jax.tree.map(lambda a: a.astype(jnp.float32), p)


def embed_prompts(prompts, key, dim):
    # TODO(synk): real module runs a frozen CLIP text encoder; hashed Gaussian
    # embeddings are a deterministic synthetic stand-in.
    embs = []
    for p in prompts:
        k = jax.random.fold_in(key, zlib.crc32(p.encode("utf-8")))
        embs.append(jax.random.normal(k, (dim,), jnp.float32))
    return jnp.stack(embs)


# ----------------------------------------------------------------------------
# Forward pass (mirrors DiffusionLoss.forward) — one fused pallas_call.
# ----------------------------------------------------------------------------
@partial(jax.jit, static_argnames=("t_enc", "cfg_scale"))
def diffusion_loss_forward(x_nchw, c_emb, uc_emb, noise, params, sched, *,
                           t_enc, cfg_scale):
    B, C, H, W = x_nchw.shape
    HW = H * W
    lat_c = params["We"].shape[0]
    n_ddim = sched["sqrt_ddim_alphas"].shape[0]
    if not (0 < t_enc < n_ddim):
        raise ValueError(
            f"t_enc={t_enc} must lie in [1, {n_ddim - 1}]: "
            "stochastic_encode indexes ddim_alphas[t_enc] (OOB gather clamps).")

    tr, r_pad = _choose_tile(HW)
    J = r_pad // tr

    # NCHW -> (B, C, HW) is a free reshape (no HBM transpose); pad the pixel
    # axis to r_pad*128 and view it as lane-dense (rows, 128) slabs.
    x3 = x_nchw.reshape(B, C, HW)
    n3 = noise.reshape(B, lat_c, HW)
    pad = r_pad * 128 - HW
    if pad:
        x3 = jnp.pad(x3, ((0, 0), (0, 0), (0, pad)))
        n3 = jnp.pad(n3, ((0, 0), (0, 0), (0, pad)))
    x4 = x3.reshape(B, C, r_pad, 128)
    n4 = n3.reshape(B, lat_c, r_pad, 128)

    # Fold the constant SCALE_FACTOR into the encoder/decoder weights.
    we_s = params["We"] * SCALE_FACTOR          # (lat_c, C)
    be_s = params["be"] * SCALE_FACTOR          # (lat_c,)
    wd_s = params["Wd"] / SCALE_FACTOR          # (C, lat_c)
    bd = params["bd"]                           # (C,)
    wz = params["Wz"]                           # (lat_c, lat_c)

    # Fold CFG: e_t = Wz@z + [b_eps + Wc@uc + cfg*(Wc@c - Wc@uc)]  (per batch).
    pc = c_emb @ params["Wc"].T                 # (B, lat_c)
    puc = uc_emb @ params["Wc"].T               # (B, lat_c)
    guid = params["b_eps"][None, :] + puc + jnp.float32(cfg_scale) * (pc - puc)

    # stochastic_encode coefficients.
    enc_coef = jnp.stack([sched["sqrt_ddim_alphas"][t_enc],
                          sched["sqrt_one_minus_ddim_alphas"][t_enc]])

    # DDIM step coefficients, pre-reversed to loop order i = 0..t_enc-1:
    #   x_prev = A*z + B*e_t with A = sqrt(a_prev)/sqrt(a_t),
    #   B = sqrt(1-a_prev) - sqrt(a_prev)*sqrt(1-a_t)/sqrt(a_t)   (eta = 0).
    idx = jnp.arange(t_enc - 1, -1, -1)
    sa = sched["sqrt_ddim_alphas"][idx]
    s1a = sched["sqrt_one_minus_ddim_alphas"][idx]
    sap = sched["sqrt_ddim_alphas_prev"][idx]
    s1ap = sched["sqrt_one_minus_ddim_alphas_prev"][idx]
    step_a = sap / sa
    step_b = s1ap - sap * s1a / sa

    smem = pl.BlockSpec(memory_space=pltpu.MemorySpace.SMEM)
    partial_sse = pl.pallas_call(
        partial(_diffusion_kernel, t_enc=t_enc, hw=HW, tr=tr,
                lat_c=lat_c, img_c=C, n_j=J),
        out_shape=jax.ShapeDtypeStruct((B, 8, 128), jnp.float32),
        grid=(B, J),
        in_specs=[
            smem,                                               # enc_coef (2,)
            smem,                                               # step_a  (t_enc,)
            smem,                                               # step_b  (t_enc,)
            smem,                                               # guid    (B, lat_c)
            smem,                                               # be_s    (lat_c,)
            smem,                                               # bd      (C,)
            smem,                                               # we_s    (lat_c, C)
            smem,                                               # wz      (lat_c, lat_c)
            smem,                                               # wd_s    (C, lat_c)
            pl.BlockSpec((None, C, tr, 128), lambda b, j: (b, 0, j, 0)),      # x
            pl.BlockSpec((None, lat_c, tr, 128), lambda b, j: (b, 0, j, 0)),  # eps
        ],
        # Per-batch lane-dense partial SSE; resident across the j (reduction)
        # axis, distinct block per b -> the b axis can be megacore-parallel.
        out_specs=pl.BlockSpec((None, 8, 128), lambda b, j: (b, 0, 0)),
        scratch_shapes=[pltpu.VMEM((tr, 128), jnp.float32)],
        compiler_params=pltpu.CompilerParams(
            dimension_semantics=("parallel", "arbitrary")),
    )(enc_coef, step_a, step_b, guid, be_s, bd, we_s, wz, wd_s, x4, n4)

    return jnp.sum(partial_sse) / (B * C * H * W)


if __name__ == "__main__":
    B, C, H, W = 2, 3, 16, 16
    LAT_C, COND_D = 4, 32
    DDIM_STEPS, STRENGTH, CFG_SCALE = 50, 0.5, 2.0
    t_enc = int(STRENGTH * DDIM_STEPS)

    key = jax.random.PRNGKey(0)
    k_x, k_noise, k_params, k_emb = jax.random.split(key, 4)

    prompts = ["a photo of a cat", "a painting of a dog"]
    x = jax.random.uniform(k_x, (B, C, H, W), jnp.float32)
    noise = jax.random.normal(k_noise, (B, LAT_C, H, W), jnp.float32)
    params = make_params(k_params, C, LAT_C, COND_D)
    sched = make_ddim_schedule(DDIM_STEPS)
    c_emb = embed_prompts(prompts, k_emb, COND_D)
    uc_emb = embed_prompts([""] * B, k_emb, COND_D)

    loss = diffusion_loss_forward(x, c_emb, uc_emb, noise, params, sched,
                                  t_enc=t_enc, cfg_scale=CFG_SCALE)
    jax.block_until_ready(loss)
    assert loss.shape == () and bool(jnp.isfinite(loss))
    print("KERNEL_OK")
</pallas_src>

<mosaic_0001>
module attributes {stable_mosaic.version = 11 : i64} {
  func.func @_diffusion_kernel(%arg0: i32, %arg1: i32, %arg2: memref<2xf32, #tpu.memory_space<smem>>, %arg3: memref<25xf32, #tpu.memory_space<smem>>, %arg4: memref<25xf32, #tpu.memory_space<smem>>, %arg5: memref<2x4xf32, #tpu.memory_space<smem>>, %arg6: memref<4xf32, #tpu.memory_space<smem>>, %arg7: memref<3xf32, #tpu.memory_space<smem>>, %arg8: memref<4x3xf32, #tpu.memory_space<smem>>, %arg9: memref<4x4xf32, #tpu.memory_space<smem>>, %arg10: memref<3x4xf32, #tpu.memory_space<smem>>, %arg11: memref<1x3x8x128xf32, #tpu.memory_space<vmem>>, %arg12: memref<1x4x8x128xf32, #tpu.memory_space<vmem>>, %arg13: memref<1x8x128xf32, #tpu.memory_space<vmem>>, %arg14: memref<8x128xf32, #tpu.memory_space<vmem>>) attributes {dimension_semantics = [#tpu.dimension_semantics<parallel>, #tpu.dimension_semantics<arbitrary>], iteration_bounds = array<i64: 2, 1>, scalar_prefetch = 0 : i64, scratch_operands = 1 : i64, tpu.core_type = #tpu.core_type<tc>, window_params = [{transform_indices = @transform_0, window_bounds = array<i64: 2>}, {transform_indices = @transform_1, window_bounds = array<i64: 25>}, {transform_indices = @transform_2, window_bounds = array<i64: 25>}, {transform_indices = @transform_3, window_bounds = array<i64: 2, 4>}, {transform_indices = @transform_4, window_bounds = array<i64: 4>}, {transform_indices = @transform_5, window_bounds = array<i64: 3>}, {transform_indices = @transform_6, window_bounds = array<i64: 4, 3>}, {transform_indices = @transform_7, window_bounds = array<i64: 4, 4>}, {transform_indices = @transform_8, window_bounds = array<i64: 3, 4>}, {transform_indices = @transform_9, window_bounds = array<i64: 1, 3, 8, 128>}, {transform_indices = @transform_10, window_bounds = array<i64: 1, 4, 8, 128>}, {transform_indices = @transform_11, window_bounds = array<i64: 1, 8, 128>}]} {
    %c0_i32 = arith.constant 0 : i32
    %0 = arith.cmpi eq, %arg1, %c0_i32 : i32
    %1 = arith.extui %0 : i1 to i32
    %c0_i32_0 = arith.constant 0 : i32
    %2 = arith.cmpi ne, %1, %c0_i32_0 : i32
    scf.if %2 {
      %cst_164 = arith.constant 0.000000e+00 : f32
      %2064 = vector.broadcast %cst_164 : f32 to vector<8x128xf32>
      %c0_165 = arith.constant 0 : index
      %c0_166 = arith.constant 0 : index
      %2065 = vector.load %arg14[%c0_165, %c0_166] : memref<8x128xf32, #tpu.memory_space<vmem>>, vector<8x128xf32>
      tpu.vector_store %arg14[%c0_165, %c0_166], %2064 {strides = array<i32>} : memref<8x128xf32, #tpu.memory_space<vmem>>, vector<8x128xf32>,
    } else {
    }
    %c0 = arith.constant 0 : index
    %3 = memref.load %arg2[%c0] : memref<2xf32, #tpu.memory_space<smem>>
    %c1 = arith.constant 1 : index
    %4 = memref.load %arg2[%c1] : memref<2xf32, #tpu.memory_space<smem>>
    %5 = arith.index_cast %arg0 : i32 to index
    %c0_1 = arith.constant 0 : index
    %6 = memref.load %arg5[%5, %c0_1] : memref<2x4xf32, #tpu.memory_space<smem>>
    %7 = arith.index_cast %arg0 : i32 to index
    %c1_2 = arith.constant 1 : index
    %8 = memref.load %arg5[%7, %c1_2] : memref<2x4xf32, #tpu.memory_space<smem>>
    %9 = arith.index_cast %arg0 : i32 to index
    %c2 = arith.constant 2 : index
    %10 = memref.load %arg5[%9, %c2] : memref<2x4xf32, #tpu.memory_space<smem>>
    %11 = arith.index_cast %arg0 : i32 to index
    %c3 = arith.constant 3 : index
    %12 = memref.load %arg5[%11, %c3] : memref<2x4xf32, #tpu.memory_space<smem>>
    %c0_3 = arith.constant 0 : index
    %c0_4 = arith.constant 0 : index
    %13 = memref.load %arg9[%c0_3, %c0_4] : memref<4x4xf32, #tpu.memory_space<smem>>
    %c0_5 = arith.constant 0 : index
    %c1_6 = arith.constant 1 : index
    %14 = memref.load %arg9[%c0_5, %c1_6] : memref<4x4xf32, #tpu.memory_space<smem>>
    %c0_7 = arith.constant 0 : index
    %c2_8 = arith.constant 2 : index
    %15 = memref.load %arg9[%c0_7, %c2_8] : memref<4x4xf32, #tpu.memory_space<smem>>
    %c0_9 = arith.constant 0 : index
    %c3_10 = arith.constant 3 : index
    %16 = memref.load %arg9[%c0_9, %c3_10] : memref<4x4xf32, #tpu.memory_space<smem>>
    %c1_11 = arith.constant 1 : index
    %c0_12 = arith.constant 0 : index
    %17 = memref.load %arg9[%c1_11, %c0_12] : memref<4x4xf32, #tpu.memory_space<smem>>
    %c1_13 = arith.constant 1 : index
    %c1_14 = arith.constant 1 : index
    %18 = memref.load %arg9[%c1_13, %c1_14] : memref<4x4xf32, #tpu.memory_space<smem>>
    %c1_15 = arith.constant 1 : index
    %c2_16 = arith.constant 2 : index
    %19 = memref.load %arg9[%c1_15, %c2_16] : memref<4x4xf32, #tpu.memory_space<smem>>
    %c1_17 = arith.constant 1 : index
    %c3_18 = arith.constant 3 : index
    %20 = memref.load %arg9[%c1_17, %c3_18] : memref<4x4xf32, #tpu.memory_space<smem>>
    %c2_19 = arith.constant 2 : index
    %c0_20 = arith.constant 0 : index
    %21 = memref.load %arg9[%c2_19, %c0_20] : memref<4x4xf32, #tpu.memory_space<smem>>
    %c2_21 = arith.constant 2 : index
    %c1_22 = arith.constant 1 : index
    %22 = memref.load %arg9[%c2_21, %c1_22] : memref<4x4xf32, #tpu.memory_space<smem>>
    %c2_23 = arith.constant 2 : index
    %c2_24 = arith.constant 2 : index
    %23 = memref.load %arg9[%c2_23, %c2_24] : memref<4x4xf32, #tpu.memory_space<smem>>
    %c2_25 = arith.constant 2 : index
    %c3_26 = arith.constant 3 : index
    %24 = memref.load %arg9[%c2_25, %c3_26] : memref<4x4xf32, #tpu.memory_space<smem>>
    %c3_27 = arith.constant 3 : index
    %c0_28 = arith.constant 0 : index
    %25 = memref.load %arg9[%c3_27, %c0_28] : memref<4x4xf32, #tpu.memory_space<smem>>
    %c3_29 = arith.constant 3 : index
    %c1_30 = arith.constant 1 : index
    %26 = memref.load %arg9[%c3_29, %c1_30] : memref<4x4xf32, #tpu.memory_space<smem>>
    %c3_31 = arith.constant 3 : index
    %c2_32 = arith.constant 2 : index
    %27 = memref.load %arg9[%c3_31, %c2_32] : memref<4x4xf32, #tpu.memory_space<smem>>
    %c3_33 = arith.constant 3 : index
    %c3_34 = arith.constant 3 : index
    %28 = memref.load %arg9[%c3_33, %c3_34] : memref<4x4xf32, #tpu.memory_space<smem>>
    %c0_35 = arith.constant 0 : index
    %c0_36 = arith.constant 0 : index
    %c0_37 = arith.constant 0 : index
    %c0_38 = arith.constant 0 : index
    %29 = vector.load %arg11[%c0_35, %c0_36, %c0_37, %c0_38] : memref<1x3x8x128xf32, #tpu.memory_space<vmem>>, vector<1x1x8x128xf32>
    %30 = vector.shape_cast %29 : vector<1x1x8x128xf32> to vector<8x128xf32>
    %c0_39 = arith.constant 0 : index
    %c1_40 = arith.constant 1 : index
    %c0_41 = arith.constant 0 : index
    %c0_42 = arith.constant 0 : index
    %31 = vector.load %arg11[%c0_39, %c1_40, %c0_41, %c0_42] : memref<1x3x8x128xf32, #tpu.memory_space<vmem>>, vector<1x1x8x128xf32>
    %32 = vector.shape_cast %31 : vector<1x1x8x128xf32> to vector<8x128xf32>
    %c0_43 = arith.constant 0 : index
    %c2_44 = arith.constant 2 : index
    %c0_45 = arith.constant 0 : index
    %c0_46 = arith.constant 0 : index
    %33 = vector.load %arg11[%c0_43, %c2_44, %c0_45, %c0_46] : memref<1x3x8x128xf32, #tpu.memory_space<vmem>>, vector<1x1x8x128xf32>
    %34 = vector.shape_cast %33 : vector<1x1x8x128xf32> to vector<8x128xf32>
    %c0_47 = arith.constant 0 : index
    %c0_48 = arith.constant 0 : index
    %35 = memref.load %arg8[%c0_47, %c0_48] : memref<4x3xf32, #tpu.memory_space<smem>>
    %36 = vector.broadcast %35 : f32 to vector<8x128xf32>
    %37 = arith.mulf %30, %36 : vector<8x128xf32>
    %c0_49 = arith.constant 0 : index
    %c1_50 = arith.constant 1 : index
    %38 = memref.load %arg8[%c0_49, %c1_50] : memref<4x3xf32, #tpu.memory_space<smem>>
    %39 = vector.broadcast %38 : f32 to vector<8x128xf32>
    %40 = arith.mulf %32, %39 : vector<8x128xf32>
    %41 = arith.addf %37, %40 : vector<8x128xf32>
    %c0_51 = arith.constant 0 : index
    %c2_52 = arith.constant 2 : index
    %42 = memref.load %arg8[%c0_51, %c2_52] : memref<4x3xf32, #tpu.memory_space<smem>>
    %43 = vector.broadcast %42 : f32 to vector<8x128xf32>
    %44 = arith.mulf %34, %43 : vector<8x128xf32>
    %45 = arith.addf %41, %44 : vector<8x128xf32>
    %c0_53 = arith.constant 0 : index
    %46 = memref.load %arg6[%c0_53] : memref<4xf32, #tpu.memory_space<smem>>
    %47 = vector.broadcast %46 : f32 to vector<8x128xf32>
    %48 = arith.addf %45, %47 : vector<8x128xf32>
    %49 = vector.broadcast %3 : f32 to vector<8x128xf32>
    %50 = arith.mulf %49, %48 : vector<8x128xf32>
    %c0_54 = arith.constant 0 : index
    %c0_55 = arith.constant 0 : index
    %c0_56 = arith.constant 0 : index
    %c0_57 = arith.constant 0 : index
    %51 = vector.load %arg12[%c0_54, %c0_55, %c0_56, %c0_57] : memref<1x4x8x128xf32, #tpu.memory_space<vmem>>, vector<1x1x8x128xf32>
    %52 = vector.shape_cast %51 : vector<1x1x8x128xf32> to vector<8x128xf32>
    %53 = vector.broadcast %4 : f32 to vector<8x128xf32>
    %54 = arith.mulf %53, %52 : vector<8x128xf32>
    %55 = arith.addf %50, %54 : vector<8x128xf32>
    %c1_58 = arith.constant 1 : index
    %c0_59 = arith.constant 0 : index
    %56 = memref.load %arg8[%c1_58, %c0_59] : memref<4x3xf32, #tpu.memory_space<smem>>
    %57 = vector.broadcast %56 : f32 to vector<8x128xf32>
    %58 = arith.mulf %30, %57 : vector<8x128xf32>
    %c1_60 = arith.constant 1 : index
    %c1_61 = arith.constant 1 : index
    %59 = memref.load %arg8[%c1_60, %c1_61] : memref<4x3xf32, #tpu.memory_space<smem>>
    %60 = vector.broadcast %59 : f32 to vector<8x128xf32>
    %61 = arith.mulf %32, %60 : vector<8x128xf32>
    %62 = arith.addf %58, %61 : vector<8x128xf32>
    %c1_62 = arith.constant 1 : index
    %c2_63 = arith.constant 2 : index
    %63 = memref.load %arg8[%c1_62, %c2_63] : memref<4x3xf32, #tpu.memory_space<smem>>
    %64 = vector.broadcast %63 : f32 to vector<8x128xf32>
    %65 = arith.mulf %34, %64 : vector<8x128xf32>
    %66 = arith.addf %62, %65 : vector<8x128xf32>
    %c1_64 = arith.constant 1 : index
    %67 = memref.load %arg6[%c1_64] : memref<4xf32, #tpu.memory_space<smem>>
    %68 = vector.broadcast %67 : f32 to vector<8x128xf32>
    %69 = arith.addf %66, %68 : vector<8x128xf32>
    %70 = vector.broadcast %3 : f32 to vector<8x128xf32>
    %71 = arith.mulf %70, %69 : vector<8x128xf32>
    %c0_65 = arith.constant 0 : index
    %c1_66 = arith.constant 1 : index
    %c0_67 = arith.constant 0 : index
    %c0_68 = arith.constant 0 : index
    %72 = vector.load %arg12[%c0_65, %c1_66, %c0_67, %c0_68] : memref<1x4x8x128xf32, #tpu.memory_space<vmem>>, vector<1x1x8x128xf32>
    %73 = vector.shape_cast %72 : vector<1x1x8x128xf32> to vector<8x128xf32>
    %74 = vector.broadcast %4 : f32 to vector<8x128xf32>
    %75 = arith.mulf %74, %73 : vector<8x128xf32>
    %76 = arith.addf %71, %75 : vector<8x128xf32>
    %c2_69 = arith.constant 2 : index
    %c0_70 = arith.constant 0 : index
    %77 = memref.load %arg8[%c2_69, %c0_70] : memref<4x3xf32, #tpu.memory_space<smem>>
    %78 = vector.broadcast %77 : f32 to vector<8x128xf32>
    %79 = arith.mulf %30, %78 : vector<8x128xf32>
    %c2_71 = arith.constant 2 : index
    %c1_72 = arith.constant 1 : index
    %80 = memref.load %arg8[%c2_71, %c1_72] : memref<4x3xf32, #tpu.memory_space<smem>>
    %81 = vector.broadcast %80 : f32 to vector<8x128xf32>
    %82 = arith.mulf %32, %81 : vector<8x128xf32>
    %83 = arith.addf %79, %82 : vector<8x128xf32>
    %c2_73 = arith.constant 2 : index
    %c2_74 = arith.constant 2 : index
    %84 = memref.load %arg8[%c2_73, %c2_74] : memref<4x3xf32, #tpu.memory_space<smem>>
    %85 = vector.broadcast %84 : f32 to vector<8x128xf32>
    %86 = arith.mulf %34, %85 : vector<8x128xf32>
    %87 = arith.addf %83, %86 : vector<8x128xf32>
    %c2_75 = arith.constant 2 : index
    %88 = memref.load %arg6[%c2_75] : memref<4xf32, #tpu.memory_space<smem>>
    %89 = vector.broadcast %88 : f32 to vector<8x128xf32>
    %90 = arith.addf %87, %89 : vector<8x128xf32>
    %91 = vector.broadcast %3 : f32 to vector<8x128xf32>
    %92 = arith.mulf %91, %90 : vector<8x128xf32>
    %c0_76 = arith.constant 0 : index
    %c2_77 = arith.constant 2 : index
    %c0_78 = arith.constant 0 : index
    %c0_79 = arith.constant 0 : index
    %93 = vector.load %arg12[%c0_76, %c2_77, %c0_78, %c0_79] : memref<1x4x8x128xf32, #tpu.memory_space<vmem>>, vector<1x1x8x128xf32>
    %94 = vector.shape_cast %93 : vector<1x1x8x128xf32> to vector<8x128xf32>
    %95 = vector.broadcast %4 : f32 to vector<8x128xf32>
    %96 = arith.mulf %95, %94 : vector<8x128xf32>
    %97 = arith.addf %92, %96 : vector<8x128xf32>
    %c3_80 = arith.constant 3 : index
    %c0_81 = arith.constant 0 : index
    %98 = memref.load %arg8[%c3_80, %c0_81] : memref<4x3xf32, #tpu.memory_space<smem>>
    %99 = vector.broadcast %98 : f32 to vector<8x128xf32>
    %100 = arith.mulf %30, %99 : vector<8x128xf32>
    %c3_82 = arith.constant 3 : index
    %c1_83 = arith.constant 1 : index
    %101 = memref.load %arg8[%c3_82, %c1_83] : memref<4x3xf32, #tpu.memory_space<smem>>
    %102 = vector.broadcast %101 : f32 to vector<8x128xf32>
    %103 = arith.mulf %32, %102 : vector<8x128xf32>
    %104 = arith.addf %100, %103 : vector<8x128xf32>
    %c3_84 = arith.constant 3 : index
    %c2_85 = arith.constant 2 : index
    %105 = memref.load %arg8[%c3_84, %c2_85] : memref<4x3xf32, #tpu.memory_space<smem>>
    %106 = vector.broadcast %105 : f32 to vector<8x128xf32>
    %107 = arith.mulf %34, %106 : vector<8x128xf32>
    %108 = arith.addf %104, %107 : vector<8x128xf32>
    %c3_86 = arith.constant 3 : index
    %109 = memref.load %arg6[%c3_86] : memref<4xf32, #tpu.memory_space<smem>>
    %110 = vector.broadcast %109 : f32 to vector<8x128xf32>
    %111 = arith.addf %108, %110 : vector<8x128xf32>
    %112 = vector.broadcast %3 : f32 to vector<8x128xf32>
    %113 = arith.mulf %112, %111 : vector<8x128xf32>
    %c0_87 = arith.constant 0 : index
    %c3_88 = arith.constant 3 : index
    %c0_89 = arith.constant 0 : index
    %c0_90 = arith.constant 0 : index
    %114 = vector.load %arg12[%c0_87, %c3_88, %c0_89, %c0_90] : memref<1x4x8x128xf32, #tpu.memory_space<vmem>>, vector<1x1x8x128xf32>
    %115 = vector.shape_cast %114 : vector<1x1x8x128xf32> to vector<8x128xf32>
    %116 = vector.broadcast %4 : f32 to vector<8x128xf32>
    %117 = arith.mulf %116, %115 : vector<8x128xf32>
    %118 = arith.addf %113, %117 : vector<8x128xf32>
    %c0_91 = arith.constant 0 : index
    %119 = memref.load %arg3[%c0_91] : memref<25xf32, #tpu.memory_space<smem>>
    %c0_92 = arith.constant 0 : index
    %120 = memref.load %arg4[%c0_92] : memref<25xf32, #tpu.memory_space<smem>>
    %121 = vector.broadcast %13 : f32 to vector<8x128xf32>
    %122 = arith.mulf %55, %121 : vector<8x128xf32>
    %123 = vector.broadcast %14 : f32 to vector<8x128xf32>
    %124 = arith.mulf %76, %123 : vector<8x128xf32>
    %125 = arith.addf %122, %124 : vector<8x128xf32>
    %126 = vector.broadcast %15 : f32 to vector<8x128xf32>
    %127 = arith.mulf %97, %126 : vector<8x128xf32>
    %128 = arith.addf %125, %127 : vector<8x128xf32>
    %129 = vector.broadcast %16 : f32 to vector<8x128xf32>
    %130 = arith.mulf %118, %129 : vector<8x128xf32>
    %131 = arith.addf %128, %130 : vector<8x128xf32>
    %132 = vector.broadcast %6 : f32 to vector<8x128xf32>
    %133 = arith.addf %131, %132 : vector<8x128xf32>
    %134 = vector.broadcast %119 : f32 to vector<8x128xf32>
    %135 = arith.mulf %134, %55 : vector<8x128xf32>
    %136 = vector.broadcast %120 : f32 to vector<8x128xf32>
    %137 = arith.mulf %136, %133 : vector<8x128xf32>
    %138 = arith.addf %135, %137 : vector<8x128xf32>
    %139 = vector.broadcast %17 : f32 to vector<8x128xf32>
    %140 = arith.mulf %55, %139 : vector<8x128xf32>
    %141 = vector.broadcast %18 : f32 to vector<8x128xf32>
    %142 = arith.mulf %76, %141 : vector<8x128xf32>
    %143 = arith.addf %140, %142 : vector<8x128xf32>
    %144 = vector.broadcast %19 : f32 to vector<8x128xf32>
    %145 = arith.mulf %97, %144 : vector<8x128xf32>
    %146 = arith.addf %143, %145 : vector<8x128xf32>
    %147 = vector.broadcast %20 : f32 to vector<8x128xf32>
    %148 = arith.mulf %118, %147 : vector<8x128xf32>
    %149 = arith.addf %146, %148 : vector<8x128xf32>
    %150 = vector.broadcast %8 : f32 to vector<8x128xf32>
    %151 = arith.addf %149, %150 : vector<8x128xf32>
    %152 = vector.broadcast %119 : f32 to vector<8x128xf32>
    %153 = arith.mulf %152, %76 : vector<8x128xf32>
    %154 = vector.broadcast %120 : f32 to vector<8x128xf32>
    %155 = arith.mulf %154, %151 : vector<8x128xf32>
    %156 = arith.addf %153, %155 : vector<8x128xf32>
    %157 = vector.broadcast %21 : f32 to vector<8x128xf32>
    %158 = arith.mulf %55, %157 : vector<8x128xf32>
    %159 = vector.broadcast %22 : f32 to vector<8x128xf32>
    %160 = arith.mulf %76, %159 : vector<8x128xf32>
    %161 = arith.addf %158, %160 : vector<8x128xf32>
    %162 = vector.broadcast %23 : f32 to vector<8x128xf32>
    %163 = arith.mulf %97, %162 : vector<8x128xf32>
    %164 = arith.addf %161, %163 : vector<8x128xf32>
    %165 = vector.broadcast %24 : f32 to vector<8x128xf32>
    %166 = arith.mulf %118, %165 : vector<8x128xf32>
    %167 = arith.addf %164, %166 : vector<8x128xf32>
    %168 = vector.broadcast %10 : f32 to vector<8x128xf32>
    %169 = arith.addf %167, %168 : vector<8x128xf32>
    %170 = vector.broadcast %119 : f32 to vector<8x128xf32>
    %171 = arith.mulf %170, %97 : vector<8x128xf32>
    %172 = vector.broadcast %120 : f32 to vector<8x128xf32>
    %173 = arith.mulf %172, %169 : vector<8x128xf32>
    %174 = arith.addf %171, %173 : vector<8x128xf32>
    %175 = vector.broadcast %25 : f32 to vector<8x128xf32>
    %176 = arith.mulf %55, %175 : vector<8x128xf32>
    %177 = vector.broadcast %26 : f32 to vector<8x128xf32>
    %178 = arith.mulf %76, %177 : vector<8x128xf32>
    %179 = arith.addf %176, %178 : vector<8x128xf32>
    %180 = vector.broadcast %27 : f32 to vector<8x128xf32>
    %181 = arith.mulf %97, %180 : vector<8x128xf32>
    %182 = arith.addf %179, %181 : vector<8x128xf32>
    %183 = vector.broadcast %28 : f32 to vector<8x128xf32>
    %184 = arith.mulf %118, %183 : vector<8x128xf32>
    %185 = arith.addf %182, %184 : vector<8x128xf32>
    %186 = vector.broadcast %12 : f32 to vector<8x128xf32>
    %187 = arith.addf %185, %186 : vector<8x128xf32>
    %188 = vector.broadcast %119 : f32 to vector<8x128xf32>
    %189 = arith.mulf %188, %118 : vector<8x128xf32>
    %190 = vector.broadcast %120 : f32 to vector<8x128xf32>
    %191 = arith.mulf %190, %187 : vector<8x128xf32>
    %192 = arith.addf %189, %191 : vector<8x128xf32>
    %c1_93 = arith.constant 1 : index
    %193 = memref.load %arg3[%c1_93] : memref<25xf32, #tpu.memory_space<smem>>
    %c1_94 = arith.constant 1 : index
    %194 = memref.load %arg4[%c1_94] : memref<25xf32, #tpu.memory_space<smem>>
    %195 = vector.broadcast %13 : f32 to vector<8x128xf32>
    %196 = arith.mulf %138, %195 : vector<8x128xf32>
    %197 = vector.broadcast %14 : f32 to vector<8x128xf32>
    %198 = arith.mulf %156, %197 : vector<8x128xf32>
    %199 = arith.addf %196, %198 : vector<8x128xf32>
    %200 = vector.broadcast %15 : f32 to vector<8x128xf32>
    %201 = arith.mulf %174, %200 : vector<8x128xf32>
    %202 = arith.addf %199, %201 : vector<8x128xf32>
    %203 = vector.broadcast %16 : f32 to vector<8x128xf32>
    %204 = arith.mulf %192, %203 : vector<8x128xf32>
    %205 = arith.addf %202, %204 : vector<8x128xf32>
    %206 = vector.broadcast %6 : f32 to vector<8x128xf32>
    %207 = arith.addf %205, %206 : vector<8x128xf32>
    %208 = vector.broadcast %193 : f32 to vector<8x128xf32>
    %209 = arith.mulf %208, %138 : vector<8x128xf32>
    %210 = vector.broadcast %194 : f32 to vector<8x128xf32>
    %211 = arith.mulf %210, %207 : vector<8x128xf32>
    %212 = arith.addf %209, %211 : vector<8x128xf32>
    %213 = vector.broadcast %17 : f32 to vector<8x128xf32>
    %214 = arith.mulf %138, %213 : vector<8x128xf32>
    %215 = vector.broadcast %18 : f32 to vector<8x128xf32>
    %216 = arith.mulf %156, %215 : vector<8x128xf32>
    %217 = arith.addf %214, %216 : vector<8x128xf32>
    %218 = vector.broadcast %19 : f32 to vector<8x128xf32>
    %219 = arith.mulf %174, %218 : vector<8x128xf32>
    %220 = arith.addf %217, %219 : vector<8x128xf32>
    %221 = vector.broadcast %20 : f32 to vector<8x128xf32>
    %222 = arith.mulf %192, %221 : vector<8x128xf32>
    %223 = arith.addf %220, %222 : vector<8x128xf32>
    %224 = vector.broadcast %8 : f32 to vector<8x128xf32>
    %225 = arith.addf %223, %224 : vector<8x128xf32>
    %226 = vector.broadcast %193 : f32 to vector<8x128xf32>
    %227 = arith.mulf %226, %156 : vector<8x128xf32>
    %228 = vector.broadcast %194 : f32 to vector<8x128xf32>
    %229 = arith.mulf %228, %225 : vector<8x128xf32>
    %230 = arith.addf %227, %229 : vector<8x128xf32>
    %231 = vector.broadcast %21 : f32 to vector<8x128xf32>
    %232 = arith.mulf %138, %231 : vector<8x128xf32>
    %233 = vector.broadcast %22 : f32 to vector<8x128xf32>
    %234 = arith.mulf %156, %233 : vector<8x128xf32>
    %235 = arith.addf %232, %234 : vector<8x128xf32>
    %236 = vector.broadcast %23 : f32 to vector<8x128xf32>
    %237 = arith.mulf %174, %236 : vector<8x128xf32>
    %238 = arith.addf %235, %237 : vector<8x128xf32>
    %239 = vector.broadcast %24 : f32 to vector<8x128xf32>
    %240 = arith.mulf %192, %239 : vector<8x128xf32>
    %241 = arith.addf %238, %240 : vector<8x128xf32>
    %242 = vector.broadcast %10 : f32 to vector<8x128xf32>
    %243 = arith.addf %241, %242 : vector<8x128xf32>
    %244 = vector.broadcast %193 : f32 to vector<8x128xf32>
    %245 = arith.mulf %244, %174 : vector<8x128xf32>
    %246 = vector.broadcast %194 : f32 to vector<8x128xf32>
    %247 = arith.mulf %246, %243 : vector<8x128xf32>
    %248 = arith.addf %245, %247 : vector<8x128xf32>
    %249 = vector.broadcast %25 : f32 to vector<8x128xf32>
    %250 = arith.mulf %138, %249 : vector<8x128xf32>
    %251 = vector.broadcast %26 : f32 to vector<8x128xf32>
    %252 = arith.mulf %156, %251 : vector<8x128xf32>
    %253 = arith.addf %250, %252 : vector<8x128xf32>
    %254 = vector.broadcast %27 : f32 to vector<8x128xf32>
    %255 = arith.mulf %174, %254 : vector<8x128xf32>
    %256 = arith.addf %253, %255 : vector<8x128xf32>
    %257 = vector.broadcast %28 : f32 to vector<8x128xf32>
    %258 = arith.mulf %192, %257 : vector<8x128xf32>
    %259 = arith.addf %256, %258 : vector<8x128xf32>
    %260 = vector.broadcast %12 : f32 to vector<8x128xf32>
    %261 = arith.addf %259, %260 : vector<8x128xf32>
    %262 = vector.broadcast %193 : f32 to vector<8x128xf32>
    %263 = arith.mulf %262, %192 : vector<8x128xf32>
    %264 = vector.broadcast %194 : f32 to vector<8x128xf32>
    %265 = arith.mulf %264, %261 : vector<8x128xf32>
    %266 = arith.addf %263, %265 : vector<8x128xf32>
    %c2_95 = arith.constant 2 : index
    %267 = memref.load %arg3[%c2_95] : memref<25xf32, #tpu.memory_space<smem>>
    %c2_96 = arith.constant 2 : index
    %268 = memref.load %arg4[%c2_96] : memref<25xf32, #tpu.memory_space<smem>>
    %269 = vector.broadcast %13 : f32 to vector<8x128xf32>
    %270 = arith.mulf %212, %269 : vector<8x128xf32>
    %271 = vector.broadcast %14 : f32 to vector<8x128xf32>
    %272 = arith.mulf %230, %271 : vector<8x128xf32>
    %273 = arith.addf %270, %272 : vector<8x128xf32>
    %274 = vector.broadcast %15 : f32 to vector<8x128xf32>
    %275 = arith.mulf %248, %274 : vector<8x128xf32>
    %276 = arith.addf %273, %275 : vector<8x128xf32>
    %277 = vector.broadcast %16 : f32 to vector<8x128xf32>
    %278 = arith.mulf %266, %277 : vector<8x128xf32>
    %279 = arith.addf %276, %278 : vector<8x128xf32>
    %280 = vector.broadcast %6 : f32 to vector<8x128xf32>
    %281 = arith.addf %279, %280 : vector<8x128xf32>
    %282 = vector.broadcast %267 : f32 to vector<8x128xf32>
    %283 = arith.mulf %282, %212 : vector<8x128xf32>
    %284 = vector.broadcast %268 : f32 to vector<8x128xf32>
    %285 = arith.mulf %284, %281 : vector<8x128xf32>
    %286 = arith.addf %283, %285 : vector<8x128xf32>
    %287 = vector.broadcast %17 : f32 to vector<8x128xf32>
    %288 = arith.mulf %212, %287 : vector<8x128xf32>
    %289 = vector.broadcast %18 : f32 to vector<8x128xf32>
    %290 = arith.mulf %230, %289 : vector<8x128xf32>
    %291 = arith.addf %288, %290 : vector<8x128xf32>
    %292 = vector.broadcast %19 : f32 to vector<8x128xf32>
    %293 = arith.mulf %248, %292 : vector<8x128xf32>
    %294 = arith.addf %291, %293 : vector<8x128xf32>
    %295 = vector.broadcast %20 : f32 to vector<8x128xf32>
    %296 = arith.mulf %266, %295 : vector<8x128xf32>
    %297 = arith.addf %294, %296 : vector<8x128xf32>
    %298 = vector.broadcast %8 : f32 to vector<8x128xf32>
    %299 = arith.addf %297, %298 : vector<8x128xf32>
    %300 = vector.broadcast %267 : f32 to vector<8x128xf32>
    %301 = arith.mulf %300, %230 : vector<8x128xf32>
    %302 = vector.broadcast %268 : f32 to vector<8x128xf32>
    %303 = arith.mulf %302, %299 : vector<8x128xf32>
    %304 = arith.addf %301, %303 : vector<8x128xf32>
    %305 = vector.broadcast %21 : f32 to vector<8x128xf32>
    %306 = arith.mulf %212, %305 : vector<8x128xf32>
    %307 = vector.broadcast %22 : f32 to vector<8x128xf32>
    %308 = arith.mulf %230, %307 : vector<8x128xf32>
    %309 = arith.addf %306, %308 : vector<8x128xf32>
    %310 = vector.broadcast %23 : f32 to vector<8x128xf32>
    %311 = arith.mulf %248, %310 : vector<8x128xf32>
    %312 = arith.addf %309, %311 : vector<8x128xf32>
    %313 = vector.broadcast %24 : f32 to vector<8x128xf32>
    %314 = arith.mulf %266, %313 : vector<8x128xf32>
    %315 = arith.addf %312, %314 : vector<8x128xf32>
    %316 = vector.broadcast %10 : f32 to vector<8x128xf32>
    %317 = arith.addf %315, %316 : vector<8x128xf32>
    %318 = vector.broadcast %267 : f32 to vector<8x128xf32>
    %319 = arith.mulf %318, %248 : vector<8x128xf32>
    %320 = vector.broadcast %268 : f32 to vector<8x128xf32>
    %321 = arith.mulf %320, %317 : vector<8x128xf32>
    %322 = arith.addf %319, %321 : vector<8x128xf32>
    %323 = vector.broadcast %25 : f32 to vector<8x128xf32>
    %324 = arith.mulf %212, %323 : vector<8x128xf32>
    %325 = vector.broadcast %26 : f32 to vector<8x128xf32>
    %326 = arith.mulf %230, %325 : vector<8x128xf32>
    %327 = arith.addf %324, %326 : vector<8x128xf32>
    %328 = vector.broadcast %27 : f32 to vector<8x128xf32>
    %329 = arith.mulf %248, %328 : vector<8x128xf32>
    %330 = arith.addf %327, %329 : vector<8x128xf32>
    %331 = vector.broadcast %28 : f32 to vector<8x128xf32>
    %332 = arith.mulf %266, %331 : vector<8x128xf32>
    %333 = arith.addf %330, %332 : vector<8x128xf32>
    %334 = vector.broadcast %12 : f32 to vector<8x128xf32>
    %335 = arith.addf %333, %334 : vector<8x128xf32>
    %336 = vector.broadcast %267 : f32 to vector<8x128xf32>
    %337 = arith.mulf %336, %266 : vector<8x128xf32>
    %338 = vector.broadcast %268 : f32 to vector<8x128xf32>
    %339 = arith.mulf %338, %335 : vector<8x128xf32>
    %340 = arith.addf %337, %339 : vector<8x128xf32>
    %c3_97 = arith.constant 3 : index
    %341 = memref.load %arg3[%c3_97] : memref<25xf32, #tpu.memory_space<smem>>
    %c3_98 = arith.constant 3 : index
    %342 = memref.load %arg4[%c3_98] : memref<25xf32, #tpu.memory_space<smem>>
    %343 = vector.broadcast %13 : f32 to vector<8x128xf32>
    %344 = arith.mulf %286, %343 : vector<8x128xf32>
    %345 = vector.broadcast %14 : f32 to vector<8x128xf32>
    %346 = arith.mulf %304, %345 : vector<8x128xf32>
    %347 = arith.addf %344, %346 : vector<8x128xf32>
    %348 = vector.broadcast %15 : f32 to vector<8x128xf32>
    %349 = arith.mulf %322, %348 : vector<8x128xf32>
    %350 = arith.addf %347, %349 : vector<8x128xf32>
    %351 = vector.broadcast %16 : f32 to vector<8x128xf32>
    %352 = arith.mulf %340, %351 : vector<8x128xf32>
    %353 = arith.addf %350, %352 : vector<8x128xf32>
    %354 = vector.broadcast %6 : f32 to vector<8x128xf32>
    %355 = arith.addf %353, %354 : vector<8x128xf32>
    %356 = vector.broadcast %341 : f32 to vector<8x128xf32>
    %357 = arith.mulf %356, %286 : vector<8x128xf32>
    %358 = vector.broadcast %342 : f32 to vector<8x128xf32>
    %359 = arith.mulf %358, %355 : vector<8x128xf32>
    %360 = arith.addf %357, %359 : vector<8x128xf32>
    %361 = vector.broadcast %17 : f32 to vector<8x128xf32>
    %362 = arith.mulf %286, %361 : vector<8x128xf32>
    %363 = vector.broadcast %18 : f32 to vector<8x128xf32>
    %364 = arith.mulf %304, %363 : vector<8x128xf32>
    %365 = arith.addf %362, %364 : vector<8x128xf32>
    %366 = vector.broadcast %19 : f32 to vector<8x128xf32>
    %367 = arith.mulf %322, %366 : vector<8x128xf32>
    %368 = arith.addf %365, %367 : vector<8x128xf32>
    %369 = vector.broadcast %20 : f32 to vector<8x128xf32>
    %370 = arith.mulf %340, %369 : vector<8x128xf32>
    %371 = arith.addf %368, %370 : vector<8x128xf32>
    %372 = vector.broadcast %8 : f32 to vector<8x128xf32>
    %373 = arith.addf %371, %372 : vector<8x128xf32>
    %374 = vector.broadcast %341 : f32 to vector<8x128xf32>
    %375 = arith.mulf %374, %304 : vector<8x128xf32>
    %376 = vector.broadcast %342 : f32 to vector<8x128xf32>
    %377 = arith.mulf %376, %373 : vector<8x128xf32>
    %378 = arith.addf %375, %377 : vector<8x128xf32>
    %379 = vector.broadcast %21 : f32 to vector<8x128xf32>
    %380 = arith.mulf %286, %379 : vector<8x128xf32>
    %381 = vector.broadcast %22 : f32 to vector<8x128xf32>
    %382 = arith.mulf %304, %381 : vector<8x128xf32>
    %383 = arith.addf %380, %382 : vector<8x128xf32>
    %384 = vector.broadcast %23 : f32 to vector<8x128xf32>
    %385 = arith.mulf %322, %384 : vector<8x128xf32>
    %386 = arith.addf %383, %385 : vector<8x128xf32>
    %387 = vector.broadcast %24 : f32 to vector<8x128xf32>
    %388 = arith.mulf %340, %387 : vector<8x128xf32>
    %389 = arith.addf %386, %388 : vector<8x128xf32>
    %390 = vector.broadcast %10 : f32 to vector<8x128xf32>
    %391 = arith.addf %389, %390 : vector<8x128xf32>
    %392 = vector.broadcast %341 : f32 to vector<8x128xf32>
    %393 = arith.mulf %392, %322 : vector<8x128xf32>
    %394 = vector.broadcast %342 : f32 to vector<8x128xf32>
    %395 = arith.mulf %394, %391 : vector<8x128xf32>
    %396 = arith.addf %393, %395 : vector<8x128xf32>
    %397 = vector.broadcast %25 : f32 to vector<8x128xf32>
    %398 = arith.mulf %286, %397 : vector<8x128xf32>
    %399 = vector.broadcast %26 : f32 to vector<8x128xf32>
    %400 = arith.mulf %304, %399 : vector<8x128xf32>
    %401 = arith.addf %398, %400 : vector<8x128xf32>
    %402 = vector.broadcast %27 : f32 to vector<8x128xf32>
    %403 = arith.mulf %322, %402 : vector<8x128xf32>
    %404 = arith.addf %401, %403 : vector<8x128xf32>
    %405 = vector.broadcast %28 : f32 to vector<8x128xf32>
    %406 = arith.mulf %340, %405 : vector<8x128xf32>
    %407 = arith.addf %404, %406 : vector<8x128xf32>
    %408 = vector.broadcast %12 : f32 to vector<8x128xf32>
    %409 = arith.addf %407, %408 : vector<8x128xf32>
    %410 = vector.broadcast %341 : f32 to vector<8x128xf32>
    %411 = arith.mulf %410, %340 : vector<8x128xf32>
    %412 = vector.broadcast %342 : f32 to vector<8x128xf32>
    %413 = arith.mulf %412, %409 : vector<8x128xf32>
    %414 = arith.addf %411, %413 : vector<8x128xf32>
    %c4 = arith.constant 4 : index
    %415 = memref.load %arg3[%c4] : memref<25xf32, #tpu.memory_space<smem>>
    %c4_99 = arith.constant 4 : index
    %416 = memref.load %arg4[%c4_99] : memref<25xf32, #tpu.memory_space<smem>>
    %417 = vector.broadcast %13 : f32 to vector<8x128xf32>
    %418 = arith.mulf %360, %417 : vector<8x128xf32>
    %419 = vector.broadcast %14 : f32 to vector<8x128xf32>
    %420 = arith.mulf %378, %419 : vector<8x128xf32>
    %421 = arith.addf %418, %420 : vector<8x128xf32>
    %422 = vector.broadcast %15 : f32 to vector<8x128xf32>
    %423 = arith.mulf %396, %422 : vector<8x128xf32>
    %424 = arith.addf %421, %423 : vector<8x128xf32>
    %425 = vector.broadcast %16 : f32 to vector<8x128xf32>
    %426 = arith.mulf %414, %425 : vector<8x128xf32>
    %427 = arith.addf %424, %426 : vector<8x128xf32>
    %428 = vector.broadcast %6 : f32 to vector<8x128xf32>
    %429 = arith.addf %427, %428 : vector<8x128xf32>
    %430 = vector.broadcast %415 : f32 to vector<8x128xf32>
    %431 = arith.mulf %430, %360 : vector<8x128xf32>
    %432 = vector.broadcast %416 : f32 to vector<8x128xf32>
    %433 = arith.mulf %432, %429 : vector<8x128xf32>
    %434 = arith.addf %431, %433 : vector<8x128xf32>
    %435 = vector.broadcast %17 : f32 to vector<8x128xf32>
    %436 = arith.mulf %360, %435 : vector<8x128xf32>
    %437 = vector.broadcast %18 : f32 to vector<8x128xf32>
    %438 = arith.mulf %378, %437 : vector<8x128xf32>
    %439 = arith.addf %436, %438 : vector<8x128xf32>
    %440 = vector.broadcast %19 : f32 to vector<8x128xf32>
    %441 = arith.mulf %396, %440 : vector<8x128xf32>
    %442 = arith.addf %439, %441 : vector<8x128xf32>
    %443 = vector.broadcast %20 : f32 to vector<8x128xf32>
    %444 = arith.mulf %414, %443 : vector<8x128xf32>
    %445 = arith.addf %442, %444 : vector<8x128xf32>
    %446 = vector.broadcast %8 : f32 to vector<8x128xf32>
    %447 = arith.addf %445, %446 : vector<8x128xf32>
    %448 = vector.broadcast %415 : f32 to vector<8x128xf32>
    %449 = arith.mulf %448, %378 : vector<8x128xf32>
    %450 = vector.broadcast %416 : f32 to vector<8x128xf32>
    %451 = arith.mulf %450, %447 : vector<8x128xf32>
    %452 = arith.addf %449, %451 : vector<8x128xf32>
    %453 = vector.broadcast %21 : f32 to vector<8x128xf32>
    %454 = arith.mulf %360, %453 : vector<8x128xf32>
    %455 = vector.broadcast %22 : f32 to vector<8x128xf32>
    %456 = arith.mulf %378, %455 : vector<8x128xf32>
    %457 = arith.addf %454, %456 : vector<8x128xf32>
    %458 = vector.broadcast %23 : f32 to vector<8x128xf32>
    %459 = arith.mulf %396, %458 : vector<8x128xf32>
    %460 = arith.addf %457, %459 : vector<8x128xf32>
    %461 = vector.broadcast %24 : f32 to vector<8x128xf32>
    %462 = arith.mulf %414, %461 : vector<8x128xf32>
    %463 = arith.addf %460, %462 : vector<8x128xf32>
    %464 = vector.broadcast %10 : f32 to vector<8x128xf32>
    %465 = arith.addf %463, %464 : vector<8x128xf32>
    %466 = vector.broadcast %415 : f32 to vector<8x128xf32>
    %467 = arith.mulf %466, %396 : vector<8x128xf32>
    %468 = vector.broadcast %416 : f32 to vector<8x128xf32>
    %469 = arith.mulf %468, %465 : vector<8x128xf32>
    %470 = arith.addf %467, %469 : vector<8x128xf32>
    %471 = vector.broadcast %25 : f32 to vector<8x128xf32>
    %472 = arith.mulf %360, %471 : vector<8x128xf32>
    %473 = vector.broadcast %26 : f32 to vector<8x128xf32>
    %474 = arith.mulf %378, %473 : vector<8x128xf32>
    %475 = arith.addf %472, %474 : vector<8x128xf32>
    %476 = vector.broadcast %27 : f32 to vector<8x128xf32>
    %477 = arith.mulf %396, %476 : vector<8x128xf32>
    %478 = arith.addf %475, %477 : vector<8x128xf32>
    %479 = vector.broadcast %28 : f32 to vector<8x128xf32>
    %480 = arith.mulf %414, %479 : vector<8x128xf32>
    %481 = arith.addf %478, %480 : vector<8x128xf32>
    %482 = vector.broadcast %12 : f32 to vector<8x128xf32>
    %483 = arith.addf %481, %482 : vector<8x128xf32>
    %484 = vector.broadcast %415 : f32 to vector<8x128xf32>
    %485 = arith.mulf %484, %414 : vector<8x128xf32>
    %486 = vector.broadcast %416 : f32 to vector<8x128xf32>
    %487 = arith.mulf %486, %483 : vector<8x128xf32>
    %488 = arith.addf %485, %487 : vector<8x128xf32>
    %c5 = arith.constant 5 : index
    %489 = memref.load %arg3[%c5] : memref<25xf32, #tpu.memory_space<smem>>
    %c5_100 = arith.constant 5 : index
    %490 = memref.load %arg4[%c5_100] : memref<25xf32, #tpu.memory_space<smem>>
    %491 = vector.broadcast %13 : f32 to vector<8x128xf32>
    %492 = arith.mulf %434, %491 : vector<8x128xf32>
    %493 = vector.broadcast %14 : f32 to vector<8x128xf32>
    %494 = arith.mulf %452, %493 : vector<8x128xf32>
    %495 = arith.addf %492, %494 : vector<8x128xf32>
    %496 = vector.broadcast %15 : f32 to vector<8x128xf32>
    %497 = arith.mulf %470, %496 : vector<8x128xf32>
    %498 = arith.addf %495, %497 : vector<8x128xf32>
    %499 = vector.broadcast %16 : f32 to vector<8x128xf32>
    %500 = arith.mulf %488, %499 : vector<8x128xf32>
    %501 = arith.addf %498, %500 : vector<8x128xf32>
    %502 = vector.broadcast %6 : f32 to vector<8x128xf32>
    %503 = arith.addf %501, %502 : vector<8x128xf32>
    %504 = vector.broadcast %489 : f32 to vector<8x128xf32>
    %505 = arith.mulf %504, %434 : vector<8x128xf32>
    %506 = vector.broadcast %490 : f32 to vector<8x128xf32>
    %507 = arith.mulf %506, %503 : vector<8x128xf32>
    %508 = arith.addf %505, %507 : vector<8x128xf32>
    %509 = vector.broadcast %17 : f32 to vector<8x128xf32>
    %510 = arith.mulf %434, %509 : vector<8x128xf32>
    %511 = vector.broadcast %18 : f32 to vector<8x128xf32>
    %512 = arith.mulf %452, %511 : vector<8x128xf32>
    %513 = arith.addf %510, %512 : vector<8x128xf32>
    %514 = vector.broadcast %19 : f32 to vector<8x128xf32>
    %515 = arith.mulf %470, %514 : vector<8x128xf32>
    %516 = arith.addf %513, %515 : vector<8x128xf32>
    %517 = vector.broadcast %20 : f32 to vector<8x128xf32>
    %518 = arith.mulf %488, %517 : vector<8x128xf32>
    %519 = arith.addf %516, %518 : vector<8x128xf32>
    %520 = vector.broadcast %8 : f32 to vector<8x128xf32>
    %521 = arith.addf %519, %520 : vector<8x128xf32>
    %522 = vector.broadcast %489 : f32 to vector<8x128xf32>
    %523 = arith.mulf %522, %452 : vector<8x128xf32>
    %524 = vector.broadcast %490 : f32 to vector<8x128xf32>
    %525 = arith.mulf %524, %521 : vector<8x128xf32>
    %526 = arith.addf %523, %525 : vector<8x128xf32>
    %527 = vector.broadcast %21 : f32 to vector<8x128xf32>
    %528 = arith.mulf %434, %527 : vector<8x128xf32>
    %529 = vector.broadcast %22 : f32 to vector<8x128xf32>
    %530 = arith.mulf %452, %529 : vector<8x128xf32>
    %531 = arith.addf %528, %530 : vector<8x128xf32>
    %532 = vector.broadcast %23 : f32 to vector<8x128xf32>
    %533 = arith.mulf %470, %532 : vector<8x128xf32>
    %534 = arith.addf %531, %533 : vector<8x128xf32>
    %535 = vector.broadcast %24 : f32 to vector<8x128xf32>
    %536 = arith.mulf %488, %535 : vector<8x128xf32>
    %537 = arith.addf %534, %536 : vector<8x128xf32>
    %538 = vector.broadcast %10 : f32 to vector<8x128xf32>
    %539 = arith.addf %537, %538 : vector<8x128xf32>
    %540 = vector.broadcast %489 : f32 to vector<8x128xf32>
    %541 = arith.mulf %540, %470 : vector<8x128xf32>
    %542 = vector.broadcast %490 : f32 to vector<8x128xf32>
    %543 = arith.mulf %542, %539 : vector<8x128xf32>
    %544 = arith.addf %541, %543 : vector<8x128xf32>
    %545 = vector.broadcast %25 : f32 to vector<8x128xf32>
    %546 = arith.mulf %434, %545 : vector<8x128xf32>
    %547 = vector.broadcast %26 : f32 to vector<8x128xf32>
    %548 = arith.mulf %452, %547 : vector<8x128xf32>
    %549 = arith.addf %546, %548 : vector<8x128xf32>
    %550 = vector.broadcast %27 : f32 to vector<8x128xf32>
    %551 = arith.mulf %470, %550 : vector<8x128xf32>
    %552 = arith.addf %549, %551 : vector<8x128xf32>
    %553 = vector.broadcast %28 : f32 to vector<8x128xf32>
    %554 = arith.mulf %488, %553 : vector<8x128xf32>
    %555 = arith.addf %552, %554 : vector<8x128xf32>
    %556 = vector.broadcast %12 : f32 to vector<8x128xf32>
    %557 = arith.addf %555, %556 : vector<8x128xf32>
    %558 = vector.broadcast %489 : f32 to vector<8x128xf32>
    %559 = arith.mulf %558, %488 : vector<8x128xf32>
    %560 = vector.broadcast %490 : f32 to vector<8x128xf32>
    %561 = arith.mulf %560, %557 : vector<8x128xf32>
    %562 = arith.addf %559, %561 : vector<8x128xf32>
    %c6 = arith.constant 6 : index
    %563 = memref.load %arg3[%c6] : memref<25xf32, #tpu.memory_space<smem>>
    %c6_101 = arith.constant 6 : index
    %564 = memref.load %arg4[%c6_101] : memref<25xf32, #tpu.memory_space<smem>>
    %565 = vector.broadcast %13 : f32 to vector<8x128xf32>
    %566 = arith.mulf %508, %565 : vector<8x128xf32>
    %567 = vector.broadcast %14 : f32 to vector<8x128xf32>
    %568 = arith.mulf %526, %567 : vector<8x128xf32>
    %569 = arith.addf %566, %568 : vector<8x128xf32>
    %570 = vector.broadcast %15 : f32 to vector<8x128xf32>
    %571 = arith.mulf %544, %570 : vector<8x128xf32>
    %572 = arith.addf %569, %571 : vector<8x128xf32>
    %573 = vector.broadcast %16 : f32 to vector<8x128xf32>
    %574 = arith.mulf %562, %573 : vector<8x128xf32>
    %575 = arith.addf %572, %574 : vector<8x128xf32>
    %576 = vector.broadcast %6 : f32 to vector<8x128xf32>
    %577 = arith.addf %575, %576 : vector<8x128xf32>
    %578 = vector.broadcast %563 : f32 to vector<8x128xf32>
    %579 = arith.mulf %578, %508 : vector<8x128xf32>
    %580 = vector.broadcast %564 : f32 to vector<8x128xf32>
    %581 = arith.mulf %580, %577 : vector<8x128xf32>
    %582 = arith.addf %579, %581 : vector<8x128xf32>
    %583 = vector.broadcast %17 : f32 to vector<8x128xf32>
    %584 = arith.mulf %508, %583 : vector<8x128xf32>
    %585 = vector.broadcast %18 : f32 to vector<8x128xf32>
    %586 = arith.mulf %526, %585 : vector<8x128xf32>
    %587 = arith.addf %584, %586 : vector<8x128xf32>
    %588 = vector.broadcast %19 : f32 to vector<8x128xf32>
    %589 = arith.mulf %544, %588 : vector<8x128xf32>
    %590 = arith.addf %587, %589 : vector<8x128xf32>
    %591 = vector.broadcast %20 : f32 to vector<8x128xf32>
    %592 = arith.mulf %562, %591 : vector<8x128xf32>
    %593 = arith.addf %590, %592 : vector<8x128xf32>
    %594 = vector.broadcast %8 : f32 to vector<8x128xf32>
    %595 = arith.addf %593, %594 : vector<8x128xf32>
    %596 = vector.broadcast %563 : f32 to vector<8x128xf32>
    %597 = arith.mulf %596, %526 : vector<8x128xf32>
    %598 = vector.broadcast %564 : f32 to vector<8x128xf32>
    %599 = arith.mulf %598, %595 : vector<8x128xf32>
    %600 = arith.addf %597, %599 : vector<8x128xf32>
    %601 = vector.broadcast %21 : f32 to vector<8x128xf32>
    %602 = arith.mulf %508, %601 : vector<8x128xf32>
    %603 = vector.broadcast %22 : f32 to vector<8x128xf32>
    %604 = arith.mulf %526, %603 : vector<8x128xf32>
    %605 = arith.addf %602, %604 : vector<8x128xf32>
    %606 = vector.broadcast %23 : f32 to vector<8x128xf32>
    %607 = arith.mulf %544, %606 : vector<8x128xf32>
    %608 = arith.addf %605, %607 : vector<8x128xf32>
    %609 = vector.broadcast %24 : f32 to vector<8x128xf32>
    %610 = arith.mulf %562, %609 : vector<8x128xf32>
    %611 = arith.addf %608, %610 : vector<8x128xf32>
    %612 = vector.broadcast %10 : f32 to vector<8x128xf32>
    %613 = arith.addf %611, %612 : vector<8x128xf32>
    %614 = vector.broadcast %563 : f32 to vector<8x128xf32>
    %615 = arith.mulf %614, %544 : vector<8x128xf32>
    %616 = vector.broadcast %564 : f32 to vector<8x128xf32>
    %617 = arith.mulf %616, %613 : vector<8x128xf32>
    %618 = arith.addf %615, %617 : vector<8x128xf32>
    %619 = vector.broadcast %25 : f32 to vector<8x128xf32>
    %620 = arith.mulf %508, %619 : vector<8x128xf32>
    %621 = vector.broadcast %26 : f32 to vector<8x128xf32>
    %622 = arith.mulf %526, %621 : vector<8x128xf32>
    %623 = arith.addf %620, %622 : vector<8x128xf32>
    %624 = vector.broadcast %27 : f32 to vector<8x128xf32>
    %625 = arith.mulf %544, %624 : vector<8x128xf32>
    %626 = arith.addf %623, %625 : vector<8x128xf32>
    %627 = vector.broadcast %28 : f32 to vector<8x128xf32>
    %628 = arith.mulf %562, %627 : vector<8x128xf32>
    %629 = arith.addf %626, %628 : vector<8x128xf32>
    %630 = vector.broadcast %12 : f32 to vector<8x128xf32>
    %631 = arith.addf %629, %630 : vector<8x128xf32>
    %632 = vector.broadcast %563 : f32 to vector<8x128xf32>
    %633 = arith.mulf %632, %562 : vector<8x128xf32>
    %634 = vector.broadcast %564 : f32 to vector<8x128xf32>
    %635 = arith.mulf %634, %631 : vector<8x128xf32>
    %636 = arith.addf %633, %635 : vector<8x128xf32>
    %c7 = arith.constant 7 : index
    %637 = memref.load %arg3[%c7] : memref<25xf32, #tpu.memory_space<smem>>
    %c7_102 = arith.constant 7 : index
    %638 = memref.load %arg4[%c7_102] : memref<25xf32, #tpu.memory_space<smem>>
    %639 = vector.broadcast %13 : f32 to vector<8x128xf32>
    %640 = arith.mulf %582, %639 : vector<8x128xf32>
    %641 = vector.broadcast %14 : f32 to vector<8x128xf32>
    %642 = arith.mulf %600, %641 : vector<8x128xf32>
    %643 = arith.addf %640, %642 : vector<8x128xf32>
    %644 = vector.broadcast %15 : f32 to vector<8x128xf32>
    %645 = arith.mulf %618, %644 : vector<8x128xf32>
    %646 = arith.addf %643, %645 : vector<8x128xf32>
    %647 = vector.broadcast %16 : f32 to vector<8x128xf32>
    %648 = arith.mulf %636, %647 : vector<8x128xf32>
    %649 = arith.addf %646, %648 : vector<8x128xf32>
    %650 = vector.broadcast %6 : f32 to vector<8x128xf32>
    %651 = arith.addf %649, %650 : vector<8x128xf32>
    %652 = vector.broadcast %637 : f32 to vector<8x128xf32>
    %653 = arith.mulf %652, %582 : vector<8x128xf32>
    %654 = vector.broadcast %638 : f32 to vector<8x128xf32>
    %655 = arith.mulf %654, %651 : vector<8x128xf32>
    %656 = arith.addf %653, %655 : vector<8x128xf32>
    %657 = vector.broadcast %17 : f32 to vector<8x128xf32>
    %658 = arith.mulf %582, %657 : vector<8x128xf32>
    %659 = vector.broadcast %18 : f32 to vector<8x128xf32>
    %660 = arith.mulf %600, %659 : vector<8x128xf32>
    %661 = arith.addf %658, %660 : vector<8x128xf32>
    %662 = vector.broadcast %19 : f32 to vector<8x128xf32>
    %663 = arith.mulf %618, %662 : vector<8x128xf32>
    %664 = arith.addf %661, %663 : vector<8x128xf32>
    %665 = vector.broadcast %20 : f32 to vector<8x128xf32>
    %666 = arith.mulf %636, %665 : vector<8x128xf32>
    %667 = arith.addf %664, %666 : vector<8x128xf32>
    %668 = vector.broadcast %8 : f32 to vector<8x128xf32>
    %669 = arith.addf %667, %668 : vector<8x128xf32>
    %670 = vector.broadcast %637 : f32 to vector<8x128xf32>
    %671 = arith.mulf %670, %600 : vector<8x128xf32>
    %672 = vector.broadcast %638 : f32 to vector<8x128xf32>
    %673 = arith.mulf %672, %669 : vector<8x128xf32>
    %674 = arith.addf %671, %673 : vector<8x128xf32>
    %675 = vector.broadcast %21 : f32 to vector<8x128xf32>
    %676 = arith.mulf %582, %675 : vector<8x128xf32>
    %677 = vector.broadcast %22 : f32 to vector<8x128xf32>
    %678 = arith.mulf %600, %677 : vector<8x128xf32>
    %679 = arith.addf %676, %678 : vector<8x128xf32>
    %680 = vector.broadcast %23 : f32 to vector<8x128xf32>
    %681 = arith.mulf %618, %680 : vector<8x128xf32>
    %682 = arith.addf %679, %681 : vector<8x128xf32>
    %683 = vector.broadcast %24 : f32 to vector<8x128xf32>
    %684 = arith.mulf %636, %683 : vector<8x128xf32>
    %685 = arith.addf %682, %684 : vector<8x128xf32>
    %686 = vector.broadcast %10 : f32 to vector<8x128xf32>
    %687 = arith.addf %685, %686 : vector<8x128xf32>
    %688 = vector.broadcast %637 : f32 to vector<8x128xf32>
    %689 = arith.mulf %688, %618 : vector<8x128xf32>
    %690 = vector.broadcast %638 : f32 to vector<8x128xf32>
    %691 = arith.mulf %690, %687 : vector<8x128xf32>
    %692 = arith.addf %689, %691 : vector<8x128xf32>
    %693 = vector.broadcast %25 : f32 to vector<8x128xf32>
    %694 = arith.mulf %582, %693 : vector<8x128xf32>
    %695 = vector.broadcast %26 : f32 to vector<8x128xf32>
    %696 = arith.mulf %600, %695 : vector<8x128xf32>
    %697 = arith.addf %694, %696 : vector<8x128xf32>
    %698 = vector.broadcast %27 : f32 to vector<8x128xf32>
    %699 = arith.mulf %618, %698 : vector<8x128xf32>
    %700 = arith.addf %697, %699 : vector<8x128xf32>
    %701 = vector.broadcast %28 : f32 to vector<8x128xf32>
    %702 = arith.mulf %636, %701 : vector<8x128xf32>
    %703 = arith.addf %700, %702 : vector<8x128xf32>
    %704 = vector.broadcast %12 : f32 to vector<8x128xf32>
    %705 = arith.addf %703, %704 : vector<8x128xf32>
    %706 = vector.broadcast %637 : f32 to vector<8x128xf32>
    %707 = arith.mulf %706, %636 : vector<8x128xf32>
    %708 = vector.broadcast %638 : f32 to vector<8x128xf32>
    %709 = arith.mulf %708, %705 : vector<8x128xf32>
    %710 = arith.addf %707, %709 : vector<8x128xf32>
    %c8 = arith.constant 8 : index
    %711 = memref.load %arg3[%c8] : memref<25xf32, #tpu.memory_space<smem>>
    %c8_103 = arith.constant 8 : index
    %712 = memref.load %arg4[%c8_103] : memref<25xf32, #tpu.memory_space<smem>>
    %713 = vector.broadcast %13 : f32 to vector<8x128xf32>
    %714 = arith.mulf %656, %713 : vector<8x128xf32>
    %715 = vector.broadcast %14 : f32 to vector<8x128xf32>
    %716 = arith.mulf %674, %715 : vector<8x128xf32>
    %717 = arith.addf %714, %716 : vector<8x128xf32>
    %718 = vector.broadcast %15 : f32 to vector<8x128xf32>
    %719 = arith.mulf %692, %718 : vector<8x128xf32>
    %720 = arith.addf %717, %719 : vector<8x128xf32>
    %721 = vector.broadcast %16 : f32 to vector<8x128xf32>
    %722 = arith.mulf %710, %721 : vector<8x128xf32>
    %723 = arith.addf %720, %722 : vector<8x128xf32>
    %724 = vector.broadcast %6 : f32 to vector<8x128xf32>
    %725 = arith.addf %723, %724 : vector<8x128xf32>
    %726 = vector.broadcast %711 : f32 to vector<8x128xf32>
    %727 = arith.mulf %726, %656 : vector<8x128xf32>
    %728 = vector.broadcast %712 : f32 to vector<8x128xf32>
    %729 = arith.mulf %728, %725 : vector<8x128xf32>
    %730 = arith.addf %727, %729 : vector<8x128xf32>
    %731 = vector.broadcast %17 : f32 to vector<8x128xf32>
    %732 = arith.mulf %656, %731 : vector<8x128xf32>
    %733 = vector.broadcast %18 : f32 to vector<8x128xf32>
    %734 = arith.mulf %674, %733 : vector<8x128xf32>
    %735 = arith.addf %732, %734 : vector<8x128xf32>
    %736 = vector.broadcast %19 : f32 to vector<8x128xf32>
    %737 = arith.mulf %692, %736 : vector<8x128xf32>
    %738 = arith.addf %735, %737 : vector<8x128xf32>
    %739 = vector.broadcast %20 : f32 to vector<8x128xf32>
    %740 = arith.mulf %710, %739 : vector<8x128xf32>
    %741 = arith.addf %738, %740 : vector<8x128xf32>
    %742 = vector.broadcast %8 : f32 to vector<8x128xf32>
    %743 = arith.addf %741, %742 : vector<8x128xf32>
    %744 = vector.broadcast %711 : f32 to vector<8x128xf32>
    %745 = arith.mulf %744, %674 : vector<8x128xf32>
    %746 = vector.broadcast %712 : f32 to vector<8x128xf32>
    %747 = arith.mulf %746, %743 : vector<8x128xf32>
    %748 = arith.addf %745, %747 : vector<8x128xf32>
    %749 = vector.broadcast %21 : f32 to vector<8x128xf32>
    %750 = arith.mulf %656, %749 : vector<8x128xf32>
    %751 = vector.broadcast %22 : f32 to vector<8x128xf32>
    %752 = arith.mulf %674, %751 : vector<8x128xf32>
    %753 = arith.addf %750, %752 : vector<8x128xf32>
    %754 = vector.broadcast %23 : f32 to vector<8x128xf32>
    %755 = arith.mulf %692, %754 : vector<8x128xf32>
    %756 = arith.addf %753, %755 : vector<8x128xf32>
    %757 = vector.broadcast %24 : f32 to vector<8x128xf32>
    %758 = arith.mulf %710, %757 : vector<8x128xf32>
    %759 = arith.addf %756, %758 : vector<8x128xf32>
    %760 = vector.broadcast %10 : f32 to vector<8x128xf32>
    %761 = arith.addf %759, %760 : vector<8x128xf32>
    %762 = vector.broadcast %711 : f32 to vector<8x128xf32>
    %763 = arith.mulf %762, %692 : vector<8x128xf32>
    %764 = vector.broadcast %712 : f32 to vector<8x128xf32>
    %765 = arith.mulf %764, %761 : vector<8x128xf32>
    %766 = arith.addf %763, %765 : vector<8x128xf32>
    %767 = vector.broadcast %25 : f32 to vector<8x128xf32>
    %768 = arith.mulf %656, %767 : vector<8x128xf32>
    %769 = vector.broadcast %26 : f32 to vector<8x128xf32>
    %770 = arith.mulf %674, %769 : vector<8x128xf32>
    %771 = arith.addf %768, %770 : vector<8x128xf32>
    %772 = vector.broadcast %27 : f32 to vector<8x128xf32>
    %773 = arith.mulf %692, %772 : vector<8x128xf32>
    %774 = arith.addf %771, %773 : vector<8x128xf32>
    %775 = vector.broadcast %28 : f32 to vector<8x128xf32>
    %776 = arith.mulf %710, %775 : vector<8x128xf32>
    %777 = arith.addf %774, %776 : vector<8x128xf32>
    %778 = vector.broadcast %12 : f32 to vector<8x128xf32>
    %779 = arith.addf %777, %778 : vector<8x128xf32>
    %780 = vector.broadcast %711 : f32 to vector<8x128xf32>
    %781 = arith.mulf %780, %710 : vector<8x128xf32>
    %782 = vector.broadcast %712 : f32 to vector<8x128xf32>
    %783 = arith.mulf %782, %779 : vector<8x128xf32>
    %784 = arith.addf %781, %783 : vector<8x128xf32>
    %c9 = arith.constant 9 : index
    %785 = memref.load %arg3[%c9] : memref<25xf32, #tpu.memory_space<smem>>
    %c9_104 = arith.constant 9 : index
    %786 = memref.load %arg4[%c9_104] : memref<25xf32, #tpu.memory_space<smem>>
    %787 = vector.broadcast %13 : f32 to vector<8x128xf32>
    %788 = arith.mulf %730, %787 : vector<8x128xf32>
    %789 = vector.broadcast %14 : f32 to vector<8x128xf32>
    %790 = arith.mulf %748, %789 : vector<8x128xf32>
    %791 = arith.addf %788, %790 : vector<8x128xf32>
    %792 = vector.broadcast %15 : f32 to vector<8x128xf32>
    %793 = arith.mulf %766, %792 : vector<8x128xf32>
    %794 = arith.addf %791, %793 : vector<8x128xf32>
    %795 = vector.broadcast %16 : f32 to vector<8x128xf32>
    %796 = arith.mulf %784, %795 : vector<8x128xf32>
    %797 = arith.addf %794, %796 : vector<8x128xf32>
    %798 = vector.broadcast %6 : f32 to vector<8x128xf32>
    %799 = arith.addf %797, %798 : vector<8x128xf32>
    %800 = vector.broadcast %785 : f32 to vector<8x128xf32>
    %801 = arith.mulf %800, %730 : vector<8x128xf32>
    %802 = vector.broadcast %786 : f32 to vector<8x128xf32>
    %803 = arith.mulf %802, %799 : vector<8x128xf32>
    %804 = arith.addf %801, %803 : vector<8x128xf32>
    %805 = vector.broadcast %17 : f32 to vector<8x128xf32>
    %806 = arith.mulf %730, %805 : vector<8x128xf32>
    %807 = vector.broadcast %18 : f32 to vector<8x128xf32>
    %808 = arith.mulf %748, %807 : vector<8x128xf32>
    %809 = arith.addf %806, %808 : vector<8x128xf32>
    %810 = vector.broadcast %19 : f32 to vector<8x128xf32>
    %811 = arith.mulf %766, %810 : vector<8x128xf32>
    %812 = arith.addf %809, %811 : vector<8x128xf32>
    %813 = vector.broadcast %20 : f32 to vector<8x128xf32>
    %814 = arith.mulf %784, %813 : vector<8x128xf32>
    %815 = arith.addf %812, %814 : vector<8x128xf32>
    %816 = vector.broadcast %8 : f32 to vector<8x128xf32>
    %817 = arith.addf %815, %816 : vector<8x128xf32>
    %818 = vector.broadcast %785 : f32 to vector<8x128xf32>
    %819 = arith.mulf %818, %748 : vector<8x128xf32>
    %820 = vector.broadcast %786 : f32 to vector<8x128xf32>
    %821 = arith.mulf %820, %817 : vector<8x128xf32>
    %822 = arith.addf %819, %821 : vector<8x128xf32>
    %823 = vector.broadcast %21 : f32 to vector<8x128xf32>
    %824 = arith.mulf %730, %823 : vector<8x128xf32>
    %825 = vector.broadcast %22 : f32 to vector<8x128xf32>
    %826 = arith.mulf %748, %825 : vector<8x128xf32>
    %827 = arith.addf %824, %826 : vector<8x128xf32>
    %828 = vector.broadcast %23 : f32 to vector<8x128xf32>
    %829 = arith.mulf %766, %828 : vector<8x128xf32>
    %830 = arith.addf %827, %829 : vector<8x128xf32>
    %831 = vector.broadcast %24 : f32 to vector<8x128xf32>
    %832 = arith.mulf %784, %831 : vector<8x128xf32>
    %833 = arith.addf %830, %832 : vector<8x128xf32>
    %834 = vector.broadcast %10 : f32 to vector<8x128xf32>
    %835 = arith.addf %833, %834 : vector<8x128xf32>
    %836 = vector.broadcast %785 : f32 to vector<8x128xf32>
    %837 = arith.mulf %836, %766 : vector<8x128xf32>
    %838 = vector.broadcast %786 : f32 to vector<8x128xf32>
    %839 = arith.mulf %838, %835 : vector<8x128xf32>
    %840 = arith.addf %837, %839 : vector<8x128xf32>
    %841 = vector.broadcast %25 : f32 to vector<8x128xf32>
    %842 = arith.mulf %730, %841 : vector<8x128xf32>
    %843 = vector.broadcast %26 : f32 to vector<8x128xf32>
    %844 = arith.mulf %748, %843 : vector<8x128xf32>
    %845 = arith.addf %842, %844 : vector<8x128xf32>
    %846 = vector.broadcast %27 : f32 to vector<8x128xf32>
    %847 = arith.mulf %766, %846 : vector<8x128xf32>
    %848 = arith.addf %845, %847 : vector<8x128xf32>
    %849 = vector.broadcast %28 : f32 to vector<8x128xf32>
    %850 = arith.mulf %784, %849 : vector<8x128xf32>
    %851 = arith.addf %848, %850 : vector<8x128xf32>
    %852 = vector.broadcast %12 : f32 to vector<8x128xf32>
    %853 = arith.addf %851, %852 : vector<8x128xf32>
    %854 = vector.broadcast %785 : f32 to vector<8x128xf32>
    %855 = arith.mulf %854, %784 : vector<8x128xf32>
    %856 = vector.broadcast %786 : f32 to vector<8x128xf32>
    %857 = arith.mulf %856, %853 : vector<8x128xf32>
    %858 = arith.addf %855, %857 : vector<8x128xf32>
    %c10 = arith.constant 10 : index
    %859 = memref.load %arg3[%c10] : memref<25xf32, #tpu.memory_space<smem>>
    %c10_105 = arith.constant 10 : index
    %860 = memref.load %arg4[%c10_105] : memref<25xf32, #tpu.memory_space<smem>>
    %861 = vector.broadcast %13 : f32 to vector<8x128xf32>
    %862 = arith.mulf %804, %861 : vector<8x128xf32>
    %863 = vector.broadcast %14 : f32 to vector<8x128xf32>
    %864 = arith.mulf %822, %863 : vector<8x128xf32>
    %865 = arith.addf %862, %864 : vector<8x128xf32>
    %866 = vector.broadcast %15 : f32 to vector<8x128xf32>
    %867 = arith.mulf %840, %866 : vector<8x128xf32>
    %868 = arith.addf %865, %867 : vector<8x128xf32>
    %869 = vector.broadcast %16 : f32 to vector<8x128xf32>
    %870 = arith.mulf %858, %869 : vector<8x128xf32>
    %871 = arith.addf %868, %870 : vector<8x128xf32>
    %872 = vector.broadcast %6 : f32 to vector<8x128xf32>
    %873 = arith.addf %871, %872 : vector<8x128xf32>
    %874 = vector.broadcast %859 : f32 to vector<8x128xf32>
    %875 = arith.mulf %874, %804 : vector<8x128xf32>
    %876 = vector.broadcast %860 : f32 to vector<8x128xf32>
    %877 = arith.mulf %876, %873 : vector<8x128xf32>
    %878 = arith.addf %875, %877 : vector<8x128xf32>
    %879 = vector.broadcast %17 : f32 to vector<8x128xf32>
    %880 = arith.mulf %804, %879 : vector<8x128xf32>
    %881 = vector.broadcast %18 : f32 to vector<8x128xf32>
    %882 = arith.mulf %822, %881 : vector<8x128xf32>
    %883 = arith.addf %880, %882 : vector<8x128xf32>
    %884 = vector.broadcast %19 : f32 to vector<8x128xf32>
    %885 = arith.mulf %840, %884 : vector<8x128xf32>
    %886 = arith.addf %883, %885 : vector<8x128xf32>
    %887 = vector.broadcast %20 : f32 to vector<8x128xf32>
    %888 = arith.mulf %858, %887 : vector<8x128xf32>
    %889 = arith.addf %886, %888 : vector<8x128xf32>
    %890 = vector.broadcast %8 : f32 to vector<8x128xf32>
    %891 = arith.addf %889, %890 : vector<8x128xf32>
    %892 = vector.broadcast %859 : f32 to vector<8x128xf32>
    %893 = arith.mulf %892, %822 : vector<8x128xf32>
    %894 = vector.broadcast %860 : f32 to vector<8x128xf32>
    %895 = arith.mulf %894, %891 : vector<8x128xf32>
    %896 = arith.addf %893, %895 : vector<8x128xf32>
    %897 = vector.broadcast %21 : f32 to vector<8x128xf32>
    %898 = arith.mulf %804, %897 : vector<8x128xf32>
    %899 = vector.broadcast %22 : f32 to vector<8x128xf32>
    %900 = arith.mulf %822, %899 : vector<8x128xf32>
    %901 = arith.addf %898, %900 : vector<8x128xf32>
    %902 = vector.broadcast %23 : f32 to vector<8x128xf32>
    %903 = arith.mulf %840, %902 : vector<8x128xf32>
    %904 = arith.addf %901, %903 : vector<8x128xf32>
    %905 = vector.broadcast %24 : f32 to vector<8x128xf32>
    %906 = arith.mulf %858, %905 : vector<8x128xf32>
    %907 = arith.addf %904, %906 : vector<8x128xf32>
    %908 = vector.broadcast %10 : f32 to vector<8x128xf32>
    %909 = arith.addf %907, %908 : vector<8x128xf32>
    %910 = vector.broadcast %859 : f32 to vector<8x128xf32>
    %911 = arith.mulf %910, %840 : vector<8x128xf32>
    %912 = vector.broadcast %860 : f32 to vector<8x128xf32>
    %913 = arith.mulf %912, %909 : vector<8x128xf32>
    %914 = arith.addf %911, %913 : vector<8x128xf32>
    %915 = vector.broadcast %25 : f32 to vector<8x128xf32>
    %916 = arith.mulf %804, %915 : vector<8x128xf32>
    %917 = vector.broadcast %26 : f32 to vector<8x128xf32>
    %918 = arith.mulf %822, %917 : vector<8x128xf32>
    %919 = arith.addf %916, %918 : vector<8x128xf32>
    %920 = vector.broadcast %27 : f32 to vector<8x128xf32>
    %921 = arith.mulf %840, %920 : vector<8x128xf32>
    %922 = arith.addf %919, %921 : vector<8x128xf32>
    %923 = vector.broadcast %28 : f32 to vector<8x128xf32>
    %924 = arith.mulf %858, %923 : vector<8x128xf32>
    %925 = arith.addf %922, %924 : vector<8x128xf32>
    %926 = vector.broadcast %12 : f32 to vector<8x128xf32>
    %927 = arith.addf %925, %926 : vector<8x128xf32>
    %928 = vector.broadcast %859 : f32 to vector<8x128xf32>
    %929 = arith.mulf %928, %858 : vector<8x128xf32>
    %930 = vector.broadcast %860 : f32 to vector<8x128xf32>
    %931 = arith.mulf %930, %927 : vector<8x128xf32>
    %932 = arith.addf %929, %931 : vector<8x128xf32>
    %c11 = arith.constant 11 : index
    %933 = memref.load %arg3[%c11] : memref<25xf32, #tpu.memory_space<smem>>
    %c11_106 = arith.constant 11 : index
    %934 = memref.load %arg4[%c11_106] : memref<25xf32, #tpu.memory_space<smem>>
    %935 = vector.broadcast %13 : f32 to vector<8x128xf32>
    %936 = arith.mulf %878, %935 : vector<8x128xf32>
    %937 = vector.broadcast %14 : f32 to vector<8x128xf32>
    %938 = arith.mulf %896, %937 : vector<8x128xf32>
    %939 = arith.addf %936, %938 : vector<8x128xf32>
    %940 = vector.broadcast %15 : f32 to vector<8x128xf32>
    %941 = arith.mulf %914, %940 : vector<8x128xf32>
    %942 = arith.addf %939, %941 : vector<8x128xf32>
    %943 = vector.broadcast %16 : f32 to vector<8x128xf32>
    %944 = arith.mulf %932, %943 : vector<8x128xf32>
    %945 = arith.addf %942, %944 : vector<8x128xf32>
    %946 = vector.broadcast %6 : f32 to vector<8x128xf32>
    %947 = arith.addf %945, %946 : vector<8x128xf32>
    %948 = vector.broadcast %933 : f32 to vector<8x128xf32>
    %949 = arith.mulf %948, %878 : vector<8x128xf32>
    %950 = vector.broadcast %934 : f32 to vector<8x128xf32>
    %951 = arith.mulf %950, %947 : vector<8x128xf32>
    %952 = arith.addf %949, %951 : vector<8x128xf32>
    %953 = vector.broadcast %17 : f32 to vector<8x128xf32>
    %954 = arith.mulf %878, %953 : vector<8x128xf32>
    %955 = vector.broadcast %18 : f32 to vector<8x128xf32>
    %956 = arith.mulf %896, %955 : vector<8x128xf32>
    %957 = arith.addf %954, %956 : vector<8x128xf32>
    %958 = vector.broadcast %19 : f32 to vector<8x128xf32>
    %959 = arith.mulf %914, %958 : vector<8x128xf32>
    %960 = arith.addf %957, %959 : vector<8x128xf32>
    %961 = vector.broadcast %20 : f32 to vector<8x128xf32>
    %962 = arith.mulf %932, %961 : vector<8x128xf32>
    %963 = arith.addf %960, %962 : vector<8x128xf32>
    %964 = vector.broadcast %8 : f32 to vector<8x128xf32>
    %965 = arith.addf %963, %964 : vector<8x128xf32>
    %966 = vector.broadcast %933 : f32 to vector<8x128xf32>
    %967 = arith.mulf %966, %896 : vector<8x128xf32>
    %968 = vector.broadcast %934 : f32 to vector<8x128xf32>
    %969 = arith.mulf %968, %965 : vector<8x128xf32>
    %970 = arith.addf %967, %969 : vector<8x128xf32>
    %971 = vector.broadcast %21 : f32 to vector<8x128xf32>
    %972 = arith.mulf %878, %971 : vector<8x128xf32>
    %973 = vector.broadcast %22 : f32 to vector<8x128xf32>
    %974 = arith.mulf %896, %973 : vector<8x128xf32>
    %975 = arith.addf %972, %974 : vector<8x128xf32>
    %976 = vector.broadcast %23 : f32 to vector<8x128xf32>
    %977 = arith.mulf %914, %976 : vector<8x128xf32>
    %978 = arith.addf %975, %977 : vector<8x128xf32>
    %979 = vector.broadcast %24 : f32 to vector<8x128xf32>
    %980 = arith.mulf %932, %979 : vector<8x128xf32>
    %981 = arith.addf %978, %980 : vector<8x128xf32>
    %982 = vector.broadcast %10 : f32 to vector<8x128xf32>
    %983 = arith.addf %981, %982 : vector<8x128xf32>
    %984 = vector.broadcast %933 : f32 to vector<8x128xf32>
    %985 = arith.mulf %984, %914 : vector<8x128xf32>
    %986 = vector.broadcast %934 : f32 to vector<8x128xf32>
    %987 = arith.mulf %986, %983 : vector<8x128xf32>
    %988 = arith.addf %985, %987 : vector<8x128xf32>
    %989 = vector.broadcast %25 : f32 to vector<8x128xf32>
    %990 = arith.mulf %878, %989 : vector<8x128xf32>
    %991 = vector.broadcast %26 : f32 to vector<8x128xf32>
    %992 = arith.mulf %896, %991 : vector<8x128xf32>
    %993 = arith.addf %990, %992 : vector<8x128xf32>
    %994 = vector.broadcast %27 : f32 to vector<8x128xf32>
    %995 = arith.mulf %914, %994 : vector<8x128xf32>
    %996 = arith.addf %993, %995 : vector<8x128xf32>
    %997 = vector.broadcast %28 : f32 to vector<8x128xf32>
    %998 = arith.mulf %932, %997 : vector<8x128xf32>
    %999 = arith.addf %996, %998 : vector<8x128xf32>
    %1000 = vector.broadcast %12 : f32 to vector<8x128xf32>
    %1001 = arith.addf %999, %1000 : vector<8x128xf32>
    %1002 = vector.broadcast %933 : f32 to vector<8x128xf32>
    %1003 = arith.mulf %1002, %932 : vector<8x128xf32>
    %1004 = vector.broadcast %934 : f32 to vector<8x128xf32>
    %1005 = arith.mulf %1004, %1001 : vector<8x128xf32>
    %1006 = arith.addf %1003, %1005 : vector<8x128xf32>
    %c12 = arith.constant 12 : index
    %1007 = memref.load %arg3[%c12] : memref<25xf32, #tpu.memory_space<smem>>
    %c12_107 = arith.constant 12 : index
    %1008 = memref.load %arg4[%c12_107] : memref<25xf32, #tpu.memory_space<smem>>
    %1009 = vector.broadcast %13 : f32 to vector<8x128xf32>
    %1010 = arith.mulf %952, %1009 : vector<8x128xf32>
    %1011 = vector.broadcast %14 : f32 to vector<8x128xf32>
    %1012 = arith.mulf %970, %1011 : vector<8x128xf32>
    %1013 = arith.addf %1010, %1012 : vector<8x128xf32>
    %1014 = vector.broadcast %15 : f32 to vector<8x128xf32>
    %1015 = arith.mulf %988, %1014 : vector<8x128xf32>
    %1016 = arith.addf %1013, %1015 : vector<8x128xf32>
    %1017 = vector.broadcast %16 : f32 to vector<8x128xf32>
    %1018 = arith.mulf %1006, %1017 : vector<8x128xf32>
    %1019 = arith.addf %1016, %1018 : vector<8x128xf32>
    %1020 = vector.broadcast %6 : f32 to vector<8x128xf32>
    %1021 = arith.addf %1019, %1020 : vector<8x128xf32>
    %1022 = vector.broadcast %1007 : f32 to vector<8x128xf32>
    %1023 = arith.mulf %1022, %952 : vector<8x128xf32>
    %1024 = vector.broadcast %1008 : f32 to vector<8x128xf32>
    %1025 = arith.mulf %1024, %1021 : vector<8x128xf32>
    %1026 = arith.addf %1023, %1025 : vector<8x128xf32>
    %1027 = vector.broadcast %17 : f32 to vector<8x128xf32>
    %1028 = arith.mulf %952, %1027 : vector<8x128xf32>
    %1029 = vector.broadcast %18 : f32 to vector<8x128xf32>
    %1030 = arith.mulf %970, %1029 : vector<8x128xf32>
    %1031 = arith.addf %1028, %1030 : vector<8x128xf32>
    %1032 = vector.broadcast %19 : f32 to vector<8x128xf32>
    %1033 = arith.mulf %988, %1032 : vector<8x128xf32>
    %1034 = arith.addf %1031, %1033 : vector<8x128xf32>
    %1035 = vector.broadcast %20 : f32 to vector<8x128xf32>
    %1036 = arith.mulf %1006, %1035 : vector<8x128xf32>
    %1037 = arith.addf %1034, %1036 : vector<8x128xf32>
    %1038 = vector.broadcast %8 : f32 to vector<8x128xf32>
    %1039 = arith.addf %1037, %1038 : vector<8x128xf32>
    %1040 = vector.broadcast %1007 : f32 to vector<8x128xf32>
    %1041 = arith.mulf %1040, %970 : vector<8x128xf32>
    %1042 = vector.broadcast %1008 : f32 to vector<8x128xf32>
    %1043 = arith.mulf %1042, %1039 : vector<8x128xf32>
    %1044 = arith.addf %1041, %1043 : vector<8x128xf32>
    %1045 = vector.broadcast %21 : f32 to vector<8x128xf32>
    %1046 = arith.mulf %952, %1045 : vector<8x128xf32>
    %1047 = vector.broadcast %22 : f32 to vector<8x128xf32>
    %1048 = arith.mulf %970, %1047 : vector<8x128xf32>
    %1049 = arith.addf %1046, %1048 : vector<8x128xf32>
    %1050 = vector.broadcast %23 : f32 to vector<8x128xf32>
    %1051 = arith.mulf %988, %1050 : vector<8x128xf32>
    %1052 = arith.addf %1049, %1051 : vector<8x128xf32>
    %1053 = vector.broadcast %24 : f32 to vector<8x128xf32>
    %1054 = arith.mulf %1006, %1053 : vector<8x128xf32>
    %1055 = arith.addf %1052, %1054 : vector<8x128xf32>
    %1056 = vector.broadcast %10 : f32 to vector<8x128xf32>
    %1057 = arith.addf %1055, %1056 : vector<8x128xf32>
    %1058 = vector.broadcast %1007 : f32 to vector<8x128xf32>
    %1059 = arith.mulf %1058, %988 : vector<8x128xf32>
    %1060 = vector.broadcast %1008 : f32 to vector<8x128xf32>
    %1061 = arith.mulf %1060, %1057 : vector<8x128xf32>
    %1062 = arith.addf %1059, %1061 : vector<8x128xf32>
    %1063 = vector.broadcast %25 : f32 to vector<8x128xf32>
    %1064 = arith.mulf %952, %1063 : vector<8x128xf32>
    %1065 = vector.broadcast %26 : f32 to vector<8x128xf32>
    %1066 = arith.mulf %970, %1065 : vector<8x128xf32>
    %1067 = arith.addf %1064, %1066 : vector<8x128xf32>
    %1068 = vector.broadcast %27 : f32 to vector<8x128xf32>
    %1069 = arith.mulf %988, %1068 : vector<8x128xf32>
    %1070 = arith.addf %1067, %1069 : vector<8x128xf32>
    %1071 = vector.broadcast %28 : f32 to vector<8x128xf32>
    %1072 = arith.mulf %1006, %1071 : vector<8x128xf32>
    %1073 = arith.addf %1070, %1072 : vector<8x128xf32>
    %1074 = vector.broadcast %12 : f32 to vector<8x128xf32>
    %1075 = arith.addf %1073, %1074 : vector<8x128xf32>
    %1076 = vector.broadcast %1007 : f32 to vector<8x128xf32>
    %1077 = arith.mulf %1076, %1006 : vector<8x128xf32>
    %1078 = vector.broadcast %1008 : f32 to vector<8x128xf32>
    %1079 = arith.mulf %1078, %1075 : vector<8x128xf32>
    %1080 = arith.addf %1077, %1079 : vector<8x128xf32>
    %c13 = arith.constant 13 : index
    %1081 = memref.load %arg3[%c13] : memref<25xf32, #tpu.memory_space<smem>>
    %c13_108 = arith.constant 13 : index
    %1082 = memref.load %arg4[%c13_108] : memref<25xf32, #tpu.memory_space<smem>>
    %1083 = vector.broadcast %13 : f32 to vector<8x128xf32>
    %1084 = arith.mulf %1026, %1083 : vector<8x128xf32>
    %1085 = vector.broadcast %14 : f32 to vector<8x128xf32>
    %1086 = arith.mulf %1044, %1085 : vector<8x128xf32>
    %1087 = arith.addf %1084, %1086 : vector<8x128xf32>
    %1088 = vector.broadcast %15 : f32 to vector<8x128xf32>
    %1089 = arith.mulf %1062, %1088 : vector<8x128xf32>
    %1090 = arith.addf %1087, %1089 : vector<8x128xf32>
    %1091 = vector.broadcast %16 : f32 to vector<8x128xf32>
    %1092 = arith.mulf %1080, %1091 : vector<8x128xf32>
    %1093 = arith.addf %1090, %1092 : vector<8x128xf32>
    %1094 = vector.broadcast %6 : f32 to vector<8x128xf32>
    %1095 = arith.addf %1093, %1094 : vector<8x128xf32>
    %1096 = vector.broadcast %1081 : f32 to vector<8x128xf32>
    %1097 = arith.mulf %1096, %1026 : vector<8x128xf32>
    %1098 = vector.broadcast %1082 : f32 to vector<8x128xf32>
    %1099 = arith.mulf %1098, %1095 : vector<8x128xf32>
    %1100 = arith.addf %1097, %1099 : vector<8x128xf32>
    %1101 = vector.broadcast %17 : f32 to vector<8x128xf32>
    %1102 = arith.mulf %1026, %1101 : vector<8x128xf32>
    %1103 = vector.broadcast %18 : f32 to vector<8x128xf32>
    %1104 = arith.mulf %1044, %1103 : vector<8x128xf32>
    %1105 = arith.addf %1102, %1104 : vector<8x128xf32>
    %1106 = vector.broadcast %19 : f32 to vector<8x128xf32>
    %1107 = arith.mulf %1062, %1106 : vector<8x128xf32>
    %1108 = arith.addf %1105, %1107 : vector<8x128xf32>
    %1109 = vector.broadcast %20 : f32 to vector<8x128xf32>
    %1110 = arith.mulf %1080, %1109 : vector<8x128xf32>
    %1111 = arith.addf %1108, %1110 : vector<8x128xf32>
    %1112 = vector.broadcast %8 : f32 to vector<8x128xf32>
    %1113 = arith.addf %1111, %1112 : vector<8x128xf32>
    %1114 = vector.broadcast %1081 : f32 to vector<8x128xf32>
    %1115 = arith.mulf %1114, %1044 : vector<8x128xf32>
    %1116 = vector.broadcast %1082 : f32 to vector<8x128xf32>
    %1117 = arith.mulf %1116, %1113 : vector<8x128xf32>
    %1118 = arith.addf %1115, %1117 : vector<8x128xf32>
    %1119 = vector.broadcast %21 : f32 to vector<8x128xf32>
    %1120 = arith.mulf %1026, %1119 : vector<8x128xf32>
    %1121 = vector.broadcast %22 : f32 to vector<8x128xf32>
    %1122 = arith.mulf %1044, %1121 : vector<8x128xf32>
    %1123 = arith.addf %1120, %1122 : vector<8x128xf32>
    %1124 = vector.broadcast %23 : f32 to vector<8x128xf32>
    %1125 = arith.mulf %1062, %1124 : vector<8x128xf32>
    %1126 = arith.addf %1123, %1125 : vector<8x128xf32>
    %1127 = vector.broadcast %24 : f32 to vector<8x128xf32>
    %1128 = arith.mulf %1080, %1127 : vector<8x128xf32>
    %1129 = arith.addf %1126, %1128 : vector<8x128xf32>
    %1130 = vector.broadcast %10 : f32 to vector<8x128xf32>
    %1131 = arith.addf %1129, %1130 : vector<8x128xf32>
    %1132 = vector.broadcast %1081 : f32 to vector<8x128xf32>
    %1133 = arith.mulf %1132, %1062 : vector<8x128xf32>
    %1134 = vector.broadcast %1082 : f32 to vector<8x128xf32>
    %1135 = arith.mulf %1134, %1131 : vector<8x128xf32>
    %1136 = arith.addf %1133, %1135 : vector<8x128xf32>
    %1137 = vector.broadcast %25 : f32 to vector<8x128xf32>
    %1138 = arith.mulf %1026, %1137 : vector<8x128xf32>
    %1139 = vector.broadcast %26 : f32 to vector<8x128xf32>
    %1140 = arith.mulf %1044, %1139 : vector<8x128xf32>
    %1141 = arith.addf %1138, %1140 : vector<8x128xf32>
    %1142 = vector.broadcast %27 : f32 to vector<8x128xf32>
    %1143 = arith.mulf %1062, %1142 : vector<8x128xf32>
    %1144 = arith.addf %1141, %1143 : vector<8x128xf32>
    %1145 = vector.broadcast %28 : f32 to vector<8x128xf32>
    %1146 = arith.mulf %1080, %1145 : vector<8x128xf32>
    %1147 = arith.addf %1144, %1146 : vector<8x128xf32>
    %1148 = vector.broadcast %12 : f32 to vector<8x128xf32>
    %1149 = arith.addf %1147, %1148 : vector<8x128xf32>
    %1150 = vector.broadcast %1081 : f32 to vector<8x128xf32>
    %1151 = arith.mulf %1150, %1080 : vector<8x128xf32>
    %1152 = vector.broadcast %1082 : f32 to vector<8x128xf32>
    %1153 = arith.mulf %1152, %1149 : vector<8x128xf32>
    %1154 = arith.addf %1151, %1153 : vector<8x128xf32>
    %c14 = arith.constant 14 : index
    %1155 = memref.load %arg3[%c14] : memref<25xf32, #tpu.memory_space<smem>>
    %c14_109 = arith.constant 14 : index
    %1156 = memref.load %arg4[%c14_109] : memref<25xf32, #tpu.memory_space<smem>>
    %1157 = vector.broadcast %13 : f32 to vector<8x128xf32>
    %1158 = arith.mulf %1100, %1157 : vector<8x128xf32>
    %1159 = vector.broadcast %14 : f32 to vector<8x128xf32>
    %1160 = arith.mulf %1118, %1159 : vector<8x128xf32>
    %1161 = arith.addf %1158, %1160 : vector<8x128xf32>
    %1162 = vector.broadcast %15 : f32 to vector<8x128xf32>
    %1163 = arith.mulf %1136, %1162 : vector<8x128xf32>
    %1164 = arith.addf %1161, %1163 : vector<8x128xf32>
    %1165 = vector.broadcast %16 : f32 to vector<8x128xf32>
    %1166 = arith.mulf %1154, %1165 : vector<8x128xf32>
    %1167 = arith.addf %1164, %1166 : vector<8x128xf32>
    %1168 = vector.broadcast %6 : f32 to vector<8x128xf32>
    %1169 = arith.addf %1167, %1168 : vector<8x128xf32>
    %1170 = vector.broadcast %1155 : f32 to vector<8x128xf32>
    %1171 = arith.mulf %1170, %1100 : vector<8x128xf32>
    %1172 = vector.broadcast %1156 : f32 to vector<8x128xf32>
    %1173 = arith.mulf %1172, %1169 : vector<8x128xf32>
    %1174 = arith.addf %1171, %1173 : vector<8x128xf32>
    %1175 = vector.broadcast %17 : f32 to vector<8x128xf32>
    %1176 = arith.mulf %1100, %1175 : vector<8x128xf32>
    %1177 = vector.broadcast %18 : f32 to vector<8x128xf32>
    %1178 = arith.mulf %1118, %1177 : vector<8x128xf32>
    %1179 = arith.addf %1176, %1178 : vector<8x128xf32>
    %1180 = vector.broadcast %19 : f32 to vector<8x128xf32>
    %1181 = arith.mulf %1136, %1180 : vector<8x128xf32>
    %1182 = arith.addf %1179, %1181 : vector<8x128xf32>
    %1183 = vector.broadcast %20 : f32 to vector<8x128xf32>
    %1184 = arith.mulf %1154, %1183 : vector<8x128xf32>
    %1185 = arith.addf %1182, %1184 : vector<8x128xf32>
    %1186 = vector.broadcast %8 : f32 to vector<8x128xf32>
    %1187 = arith.addf %1185, %1186 : vector<8x128xf32>
    %1188 = vector.broadcast %1155 : f32 to vector<8x128xf32>
    %1189 = arith.mulf %1188, %1118 : vector<8x128xf32>
    %1190 = vector.broadcast %1156 : f32 to vector<8x128xf32>
    %1191 = arith.mulf %1190, %1187 : vector<8x128xf32>
    %1192 = arith.addf %1189, %1191 : vector<8x128xf32>
    %1193 = vector.broadcast %21 : f32 to vector<8x128xf32>
    %1194 = arith.mulf %1100, %1193 : vector<8x128xf32>
    %1195 = vector.broadcast %22 : f32 to vector<8x128xf32>
    %1196 = arith.mulf %1118, %1195 : vector<8x128xf32>
    %1197 = arith.addf %1194, %1196 : vector<8x128xf32>
    %1198 = vector.broadcast %23 : f32 to vector<8x128xf32>
    %1199 = arith.mulf %1136, %1198 : vector<8x128xf32>
    %1200 = arith.addf %1197, %1199 : vector<8x128xf32>
    %1201 = vector.broadcast %24 : f32 to vector<8x128xf32>
    %1202 = arith.mulf %1154, %1201 : vector<8x128xf32>
    %1203 = arith.addf %1200, %1202 : vector<8x128xf32>
    %1204 = vector.broadcast %10 : f32 to vector<8x128xf32>
    %1205 = arith.addf %1203, %1204 : vector<8x128xf32>
    %1206 = vector.broadcast %1155 : f32 to vector<8x128xf32>
    %1207 = arith.mulf %1206, %1136 : vector<8x128xf32>
    %1208 = vector.broadcast %1156 : f32 to vector<8x128xf32>
    %1209 = arith.mulf %1208, %1205 : vector<8x128xf32>
    %1210 = arith.addf %1207, %1209 : vector<8x128xf32>
    %1211 = vector.broadcast %25 : f32 to vector<8x128xf32>
    %1212 = arith.mulf %1100, %1211 : vector<8x128xf32>
    %1213 = vector.broadcast %26 : f32 to vector<8x128xf32>
    %1214 = arith.mulf %1118, %1213 : vector<8x128xf32>
    %1215 = arith.addf %1212, %1214 : vector<8x128xf32>
    %1216 = vector.broadcast %27 : f32 to vector<8x128xf32>
    %1217 = arith.mulf %1136, %1216 : vector<8x128xf32>
    %1218 = arith.addf %1215, %1217 : vector<8x128xf32>
    %1219 = vector.broadcast %28 : f32 to vector<8x128xf32>
    %1220 = arith.mulf %1154, %1219 : vector<8x128xf32>
    %1221 = arith.addf %1218, %1220 : vector<8x128xf32>
    %1222 = vector.broadcast %12 : f32 to vector<8x128xf32>
    %1223 = arith.addf %1221, %1222 : vector<8x128xf32>
    %1224 = vector.broadcast %1155 : f32 to vector<8x128xf32>
    %1225 = arith.mulf %1224, %1154 : vector<8x128xf32>
    %1226 = vector.broadcast %1156 : f32 to vector<8x128xf32>
    %1227 = arith.mulf %1226, %1223 : vector<8x128xf32>
    %1228 = arith.addf %1225, %1227 : vector<8x128xf32>
    %c15 = arith.constant 15 : index
    %1229 = memref.load %arg3[%c15] : memref<25xf32, #tpu.memory_space<smem>>
    %c15_110 = arith.constant 15 : index
    %1230 = memref.load %arg4[%c15_110] : memref<25xf32, #tpu.memory_space<smem>>
    %1231 = vector.broadcast %13 : f32 to vector<8x128xf32>
    %1232 = arith.mulf %1174, %1231 : vector<8x128xf32>
    %1233 = vector.broadcast %14 : f32 to vector<8x128xf32>
    %1234 = arith.mulf %1192, %1233 : vector<8x128xf32>
    %1235 = arith.addf %1232, %1234 : vector<8x128xf32>
    %1236 = vector.broadcast %15 : f32 to vector<8x128xf32>
    %1237 = arith.mulf %1210, %1236 : vector<8x128xf32>
    %1238 = arith.addf %1235, %1237 : vector<8x128xf32>
    %1239 = vector.broadcast %16 : f32 to vector<8x128xf32>
    %1240 = arith.mulf %1228, %1239 : vector<8x128xf32>
    %1241 = arith.addf %1238, %1240 : vector<8x128xf32>
    %1242 = vector.broadcast %6 : f32 to vector<8x128xf32>
    %1243 = arith.addf %1241, %1242 : vector<8x128xf32>
    %1244 = vector.broadcast %1229 : f32 to vector<8x128xf32>
    %1245 = arith.mulf %1244, %1174 : vector<8x128xf32>
    %1246 = vector.broadcast %1230 : f32 to vector<8x128xf32>
    %1247 = arith.mulf %1246, %1243 : vector<8x128xf32>
    %1248 = arith.addf %1245, %1247 : vector<8x128xf32>
    %1249 = vector.broadcast %17 : f32 to vector<8x128xf32>
    %1250 = arith.mulf %1174, %1249 : vector<8x128xf32>
    %1251 = vector.broadcast %18 : f32 to vector<8x128xf32>
    %1252 = arith.mulf %1192, %1251 : vector<8x128xf32>
    %1253 = arith.addf %1250, %1252 : vector<8x128xf32>
    %1254 = vector.broadcast %19 : f32 to vector<8x128xf32>
    %1255 = arith.mulf %1210, %1254 : vector<8x128xf32>
    %1256 = arith.addf %1253, %1255 : vector<8x128xf32>
    %1257 = vector.broadcast %20 : f32 to vector<8x128xf32>
    %1258 = arith.mulf %1228, %1257 : vector<8x128xf32>
    %1259 = arith.addf %1256, %1258 : vector<8x128xf32>
    %1260 = vector.broadcast %8 : f32 to vector<8x128xf32>
    %1261 = arith.addf %1259, %1260 : vector<8x128xf32>
    %1262 = vector.broadcast %1229 : f32 to vector<8x128xf32>
    %1263 = arith.mulf %1262, %1192 : vector<8x128xf32>
    %1264 = vector.broadcast %1230 : f32 to vector<8x128xf32>
    %1265 = arith.mulf %1264, %1261 : vector<8x128xf32>
    %1266 = arith.addf %1263, %1265 : vector<8x128xf32>
    %1267 = vector.broadcast %21 : f32 to vector<8x128xf32>
    %1268 = arith.mulf %1174, %1267 : vector<8x128xf32>
    %1269 = vector.broadcast %22 : f32 to vector<8x128xf32>
    %1270 = arith.mulf %1192, %1269 : vector<8x128xf32>
    %1271 = arith.addf %1268, %1270 : vector<8x128xf32>
    %1272 = vector.broadcast %23 : f32 to vector<8x128xf32>
    %1273 = arith.mulf %1210, %1272 : vector<8x128xf32>
    %1274 = arith.addf %1271, %1273 : vector<8x128xf32>
    %1275 = vector.broadcast %24 : f32 to vector<8x128xf32>
    %1276 = arith.mulf %1228, %1275 : vector<8x128xf32>
    %1277 = arith.addf %1274, %1276 : vector<8x128xf32>
    %1278 = vector.broadcast %10 : f32 to vector<8x128xf32>
    %1279 = arith.addf %1277, %1278 : vector<8x128xf32>
    %1280 = vector.broadcast %1229 : f32 to vector<8x128xf32>
    %1281 = arith.mulf %1280, %1210 : vector<8x128xf32>
    %1282 = vector.broadcast %1230 : f32 to vector<8x128xf32>
    %1283 = arith.mulf %1282, %1279 : vector<8x128xf32>
    %1284 = arith.addf %1281, %1283 : vector<8x128xf32>
    %1285 = vector.broadcast %25 : f32 to vector<8x128xf32>
    %1286 = arith.mulf %1174, %1285 : vector<8x128xf32>
    %1287 = vector.broadcast %26 : f32 to vector<8x128xf32>
    %1288 = arith.mulf %1192, %1287 : vector<8x128xf32>
    %1289 = arith.addf %1286, %1288 : vector<8x128xf32>
    %1290 = vector.broadcast %27 : f32 to vector<8x128xf32>
    %1291 = arith.mulf %1210, %1290 : vector<8x128xf32>
    %1292 = arith.addf %1289, %1291 : vector<8x128xf32>
    %1293 = vector.broadcast %28 : f32 to vector<8x128xf32>
    %1294 = arith.mulf %1228, %1293 : vector<8x128xf32>
    %1295 = arith.addf %1292, %1294 : vector<8x128xf32>
    %1296 = vector.broadcast %12 : f32 to vector<8x128xf32>
    %1297 = arith.addf %1295, %1296 : vector<8x128xf32>
    %1298 = vector.broadcast %1229 : f32 to vector<8x128xf32>
    %1299 = arith.mulf %1298, %1228 : vector<8x128xf32>
    %1300 = vector.broadcast %1230 : f32 to vector<8x128xf32>
    %1301 = arith.mulf %1300, %1297 : vector<8x128xf32>
    %1302 = arith.addf %1299, %1301 : vector<8x128xf32>
    %c16 = arith.constant 16 : index
    %1303 = memref.load %arg3[%c16] : memref<25xf32, #tpu.memory_space<smem>>
    %c16_111 = arith.constant 16 : index
    %1304 = memref.load %arg4[%c16_111] : memref<25xf32, #tpu.memory_space<smem>>
    %1305 = vector.broadcast %13 : f32 to vector<8x128xf32>
    %1306 = arith.mulf %1248, %1305 : vector<8x128xf32>
    %1307 = vector.broadcast %14 : f32 to vector<8x128xf32>
    %1308 = arith.mulf %1266, %1307 : vector<8x128xf32>
    %1309 = arith.addf %1306, %1308 : vector<8x128xf32>
    %1310 = vector.broadcast %15 : f32 to vector<8x128xf32>
    %1311 = arith.mulf %1284, %1310 : vector<8x128xf32>
    %1312 = arith.addf %1309, %1311 : vector<8x128xf32>
    %1313 = vector.broadcast %16 : f32 to vector<8x128xf32>
    %1314 = arith.mulf %1302, %1313 : vector<8x128xf32>
    %1315 = arith.addf %1312, %1314 : vector<8x128xf32>
    %1316 = vector.broadcast %6 : f32 to vector<8x128xf32>
    %1317 = arith.addf %1315, %1316 : vector<8x128xf32>
    %1318 = vector.broadcast %1303 : f32 to vector<8x128xf32>
    %1319 = arith.mulf %1318, %1248 : vector<8x128xf32>
    %1320 = vector.broadcast %1304 : f32 to vector<8x128xf32>
    %1321 = arith.mulf %1320, %1317 : vector<8x128xf32>
    %1322 = arith.addf %1319, %1321 : vector<8x128xf32>
    %1323 = vector.broadcast %17 : f32 to vector<8x128xf32>
    %1324 = arith.mulf %1248, %1323 : vector<8x128xf32>
    %1325 = vector.broadcast %18 : f32 to vector<8x128xf32>
    %1326 = arith.mulf %1266, %1325 : vector<8x128xf32>
    %1327 = arith.addf %1324, %1326 : vector<8x128xf32>
    %1328 = vector.broadcast %19 : f32 to vector<8x128xf32>
    %1329 = arith.mulf %1284, %1328 : vector<8x128xf32>
    %1330 = arith.addf %1327, %1329 : vector<8x128xf32>
    %1331 = vector.broadcast %20 : f32 to vector<8x128xf32>
    %1332 = arith.mulf %1302, %1331 : vector<8x128xf32>
    %1333 = arith.addf %1330, %1332 : vector<8x128xf32>
    %1334 = vector.broadcast %8 : f32 to vector<8x128xf32>
    %1335 = arith.addf %1333, %1334 : vector<8x128xf32>
    %1336 = vector.broadcast %1303 : f32 to vector<8x128xf32>
    %1337 = arith.mulf %1336, %1266 : vector<8x128xf32>
    %1338 = vector.broadcast %1304 : f32 to vector<8x128xf32>
    %1339 = arith.mulf %1338, %1335 : vector<8x128xf32>
    %1340 = arith.addf %1337, %1339 : vector<8x128xf32>
    %1341 = vector.broadcast %21 : f32 to vector<8x128xf32>
    %1342 = arith.mulf %1248, %1341 : vector<8x128xf32>
    %1343 = vector.broadcast %22 : f32 to vector<8x128xf32>
    %1344 = arith.mulf %1266, %1343 : vector<8x128xf32>
    %1345 = arith.addf %1342, %1344 : vector<8x128xf32>
    %1346 = vector.broadcast %23 : f32 to vector<8x128xf32>
    %1347 = arith.mulf %1284, %1346 : vector<8x128xf32>
    %1348 = arith.addf %1345, %1347 : vector<8x128xf32>
    %1349 = vector.broadcast %24 : f32 to vector<8x128xf32>
    %1350 = arith.mulf %1302, %1349 : vector<8x128xf32>
    %1351 = arith.addf %1348, %1350 : vector<8x128xf32>
    %1352 = vector.broadcast %10 : f32 to vector<8x128xf32>
    %1353 = arith.addf %1351, %1352 : vector<8x128xf32>
    %1354 = vector.broadcast %1303 : f32 to vector<8x128xf32>
    %1355 = arith.mulf %1354, %1284 : vector<8x128xf32>
    %1356 = vector.broadcast %1304 : f32 to vector<8x128xf32>
    %1357 = arith.mulf %1356, %1353 : vector<8x128xf32>
    %1358 = arith.addf %1355, %1357 : vector<8x128xf32>
    %1359 = vector.broadcast %25 : f32 to vector<8x128xf32>
    %1360 = arith.mulf %1248, %1359 : vector<8x128xf32>
    %1361 = vector.broadcast %26 : f32 to vector<8x128xf32>
    %1362 = arith.mulf %1266, %1361 : vector<8x128xf32>
    %1363 = arith.addf %1360, %1362 : vector<8x128xf32>
    %1364 = vector.broadcast %27 : f32 to vector<8x128xf32>
    %1365 = arith.mulf %1284, %1364 : vector<8x128xf32>
    %1366 = arith.addf %1363, %1365 : vector<8x128xf32>
    %1367 = vector.broadcast %28 : f32 to vector<8x128xf32>
    %1368 = arith.mulf %1302, %1367 : vector<8x128xf32>
    %1369 = arith.addf %1366, %1368 : vector<8x128xf32>
    %1370 = vector.broadcast %12 : f32 to vector<8x128xf32>
    %1371 = arith.addf %1369, %1370 : vector<8x128xf32>
    %1372 = vector.broadcast %1303 : f32 to vector<8x128xf32>
    %1373 = arith.mulf %1372, %1302 : vector<8x128xf32>
    %1374 = vector.broadcast %1304 : f32 to vector<8x128xf32>
    %1375 = arith.mulf %1374, %1371 : vector<8x128xf32>
    %1376 = arith.addf %1373, %1375 : vector<8x128xf32>
    %c17 = arith.constant 17 : index
    %1377 = memref.load %arg3[%c17] : memref<25xf32, #tpu.memory_space<smem>>
    %c17_112 = arith.constant 17 : index
    %1378 = memref.load %arg4[%c17_112] : memref<25xf32, #tpu.memory_space<smem>>
    %1379 = vector.broadcast %13 : f32 to vector<8x128xf32>
    %1380 = arith.mulf %1322, %1379 : vector<8x128xf32>
    %1381 = vector.broadcast %14 : f32 to vector<8x128xf32>
    %1382 = arith.mulf %1340, %1381 : vector<8x128xf32>
    %1383 = arith.addf %1380, %1382 : vector<8x128xf32>
    %1384 = vector.broadcast %15 : f32 to vector<8x128xf32>
    %1385 = arith.mulf %1358, %1384 : vector<8x128xf32>
    %1386 = arith.addf %1383, %1385 : vector<8x128xf32>
    %1387 = vector.broadcast %16 : f32 to vector<8x128xf32>
    %1388 = arith.mulf %1376, %1387 : vector<8x128xf32>
    %1389 = arith.addf %1386, %1388 : vector<8x128xf32>
    %1390 = vector.broadcast %6 : f32 to vector<8x128xf32>
    %1391 = arith.addf %1389, %1390 : vector<8x128xf32>
    %1392 = vector.broadcast %1377 : f32 to vector<8x128xf32>
    %1393 = arith.mulf %1392, %1322 : vector<8x128xf32>
    %1394 = vector.broadcast %1378 : f32 to vector<8x128xf32>
    %1395 = arith.mulf %1394, %1391 : vector<8x128xf32>
    %1396 = arith.addf %1393, %1395 : vector<8x128xf32>
    %1397 = vector.broadcast %17 : f32 to vector<8x128xf32>
    %1398 = arith.mulf %1322, %1397 : vector<8x128xf32>
    %1399 = vector.broadcast %18 : f32 to vector<8x128xf32>
    %1400 = arith.mulf %1340, %1399 : vector<8x128xf32>
    %1401 = arith.addf %1398, %1400 : vector<8x128xf32>
    %1402 = vector.broadcast %19 : f32 to vector<8x128xf32>
    %1403 = arith.mulf %1358, %1402 : vector<8x128xf32>
    %1404 = arith.addf %1401, %1403 : vector<8x128xf32>
    %1405 = vector.broadcast %20 : f32 to vector<8x128xf32>
    %1406 = arith.mulf %1376, %1405 : vector<8x128xf32>
    %1407 = arith.addf %1404, %1406 : vector<8x128xf32>
    %1408 = vector.broadcast %8 : f32 to vector<8x128xf32>
    %1409 = arith.addf %1407, %1408 : vector<8x128xf32>
    %1410 = vector.broadcast %1377 : f32 to vector<8x128xf32>
    %1411 = arith.mulf %1410, %1340 : vector<8x128xf32>
    %1412 = vector.broadcast %1378 : f32 to vector<8x128xf32>
    %1413 = arith.mulf %1412, %1409 : vector<8x128xf32>
    %1414 = arith.addf %1411, %1413 : vector<8x128xf32>
    %1415 = vector.broadcast %21 : f32 to vector<8x128xf32>
    %1416 = arith.mulf %1322, %1415 : vector<8x128xf32>
    %1417 = vector.broadcast %22 : f32 to vector<8x128xf32>
    %1418 = arith.mulf %1340, %1417 : vector<8x128xf32>
    %1419 = arith.addf %1416, %1418 : vector<8x128xf32>
    %1420 = vector.broadcast %23 : f32 to vector<8x128xf32>
    %1421 = arith.mulf %1358, %1420 : vector<8x128xf32>
    %1422 = arith.addf %1419, %1421 : vector<8x128xf32>
    %1423 = vector.broadcast %24 : f32 to vector<8x128xf32>
    %1424 = arith.mulf %1376, %1423 : vector<8x128xf32>
    %1425 = arith.addf %1422, %1424 : vector<8x128xf32>
    %1426 = vector.broadcast %10 : f32 to vector<8x128xf32>
    %1427 = arith.addf %1425, %1426 : vector<8x128xf32>
    %1428 = vector.broadcast %1377 : f32 to vector<8x128xf32>
    %1429 = arith.mulf %1428, %1358 : vector<8x128xf32>
    %1430 = vector.broadcast %1378 : f32 to vector<8x128xf32>
    %1431 = arith.mulf %1430, %1427 : vector<8x128xf32>
    %1432 = arith.addf %1429, %1431 : vector<8x128xf32>
    %1433 = vector.broadcast %25 : f32 to vector<8x128xf32>
    %1434 = arith.mulf %1322, %1433 : vector<8x128xf32>
    %1435 = vector.broadcast %26 : f32 to vector<8x128xf32>
    %1436 = arith.mulf %1340, %1435 : vector<8x128xf32>
    %1437 = arith.addf %1434, %1436 : vector<8x128xf32>
    %1438 = vector.broadcast %27 : f32 to vector<8x128xf32>
    %1439 = arith.mulf %1358, %1438 : vector<8x128xf32>
    %1440 = arith.addf %1437, %1439 : vector<8x128xf32>
    %1441 = vector.broadcast %28 : f32 to vector<8x128xf32>
    %1442 = arith.mulf %1376, %1441 : vector<8x128xf32>
    %1443 = arith.addf %1440, %1442 : vector<8x128xf32>
    %1444 = vector.broadcast %12 : f32 to vector<8x128xf32>
    %1445 = arith.addf %1443, %1444 : vector<8x128xf32>
    %1446 = vector.broadcast %1377 : f32 to vector<8x128xf32>
    %1447 = arith.mulf %1446, %1376 : vector<8x128xf32>
    %1448 = vector.broadcast %1378 : f32 to vector<8x128xf32>
    %1449 = arith.mulf %1448, %1445 : vector<8x128xf32>
    %1450 = arith.addf %1447, %1449 : vector<8x128xf32>
    %c18 = arith.constant 18 : index
    %1451 = memref.load %arg3[%c18] : memref<25xf32, #tpu.memory_space<smem>>
    %c18_113 = arith.constant 18 : index
    %1452 = memref.load %arg4[%c18_113] : memref<25xf32, #tpu.memory_space<smem>>
    %1453 = vector.broadcast %13 : f32 to vector<8x128xf32>
    %1454 = arith.mulf %1396, %1453 : vector<8x128xf32>
    %1455 = vector.broadcast %14 : f32 to vector<8x128xf32>
    %1456 = arith.mulf %1414, %1455 : vector<8x128xf32>
    %1457 = arith.addf %1454, %1456 : vector<8x128xf32>
    %1458 = vector.broadcast %15 : f32 to vector<8x128xf32>
    %1459 = arith.mulf %1432, %1458 : vector<8x128xf32>
    %1460 = arith.addf %1457, %1459 : vector<8x128xf32>
    %1461 = vector.broadcast %16 : f32 to vector<8x128xf32>
    %1462 = arith.mulf %1450, %1461 : vector<8x128xf32>
    %1463 = arith.addf %1460, %1462 : vector<8x128xf32>
    %1464 = vector.broadcast %6 : f32 to vector<8x128xf32>
    %1465 = arith.addf %1463, %1464 : vector<8x128xf32>
    %1466 = vector.broadcast %1451 : f32 to vector<8x128xf32>
    %1467 = arith.mulf %1466, %1396 : vector<8x128xf32>
    %1468 = vector.broadcast %1452 : f32 to vector<8x128xf32>
    %1469 = arith.mulf %1468, %1465 : vector<8x128xf32>
    %1470 = arith.addf %1467, %1469 : vector<8x128xf32>
    %1471 = vector.broadcast %17 : f32 to vector<8x128xf32>
    %1472 = arith.mulf %1396, %1471 : vector<8x128xf32>
    %1473 = vector.broadcast %18 : f32 to vector<8x128xf32>
    %1474 = arith.mulf %1414, %1473 : vector<8x128xf32>
    %1475 = arith.addf %1472, %1474 : vector<8x128xf32>
    %1476 = vector.broadcast %19 : f32 to vector<8x128xf32>
    %1477 = arith.mulf %1432, %1476 : vector<8x128xf32>
    %1478 = arith.addf %1475, %1477 : vector<8x128xf32>
    %1479 = vector.broadcast %20 : f32 to vector<8x128xf32>
    %1480 = arith.mulf %1450, %1479 : vector<8x128xf32>
    %1481 = arith.addf %1478, %1480 : vector<8x128xf32>
    %1482 = vector.broadcast %8 : f32 to vector<8x128xf32>
    %1483 = arith.addf %1481, %1482 : vector<8x128xf32>
    %1484 = vector.broadcast %1451 : f32 to vector<8x128xf32>
    %1485 = arith.mulf %1484, %1414 : vector<8x128xf32>
    %1486 = vector.broadcast %1452 : f32 to vector<8x128xf32>
    %1487 = arith.mulf %1486, %1483 : vector<8x128xf32>
    %1488 = arith.addf %1485, %1487 : vector<8x128xf32>
    %1489 = vector.broadcast %21 : f32 to vector<8x128xf32>
    %1490 = arith.mulf %1396, %1489 : vector<8x128xf32>
    %1491 = vector.broadcast %22 : f32 to vector<8x128xf32>
    %1492 = arith.mulf %1414, %1491 : vector<8x128xf32>
    %1493 = arith.addf %1490, %1492 : vector<8x128xf32>
    %1494 = vector.broadcast %23 : f32 to vector<8x128xf32>
    %1495 = arith.mulf %1432, %1494 : vector<8x128xf32>
    %1496 = arith.addf %1493, %1495 : vector<8x128xf32>
    %1497 = vector.broadcast %24 : f32 to vector<8x128xf32>
    %1498 = arith.mulf %1450, %1497 : vector<8x128xf32>
    %1499 = arith.addf %1496, %1498 : vector<8x128xf32>
    %1500 = vector.broadcast %10 : f32 to vector<8x128xf32>
    %1501 = arith.addf %1499, %1500 : vector<8x128xf32>
    %1502 = vector.broadcast %1451 : f32 to vector<8x128xf32>
    %1503 = arith.mulf %1502, %1432 : vector<8x128xf32>
    %1504 = vector.broadcast %1452 : f32 to vector<8x128xf32>
    %1505 = arith.mulf %1504, %1501 : vector<8x128xf32>
    %1506 = arith.addf %1503, %1505 : vector<8x128xf32>
    %1507 = vector.broadcast %25 : f32 to vector<8x128xf32>
    %1508 = arith.mulf %1396, %1507 : vector<8x128xf32>
    %1509 = vector.broadcast %26 : f32 to vector<8x128xf32>
    %1510 = arith.mulf %1414, %1509 : vector<8x128xf32>
    %1511 = arith.addf %1508, %1510 : vector<8x128xf32>
    %1512 = vector.broadcast %27 : f32 to vector<8x128xf32>
    %1513 = arith.mulf %1432, %1512 : vector<8x128xf32>
    %1514 = arith.addf %1511, %1513 : vector<8x128xf32>
    %1515 = vector.broadcast %28 : f32 to vector<8x128xf32>
    %1516 = arith.mulf %1450, %1515 : vector<8x128xf32>
    %1517 = arith.addf %1514, %1516 : vector<8x128xf32>
    %1518 = vector.broadcast %12 : f32 to vector<8x128xf32>
    %1519 = arith.addf %1517, %1518 : vector<8x128xf32>
    %1520 = vector.broadcast %1451 : f32 to vector<8x128xf32>
    %1521 = arith.mulf %1520, %1450 : vector<8x128xf32>
    %1522 = vector.broadcast %1452 : f32 to vector<8x128xf32>
    %1523 = arith.mulf %1522, %1519 : vector<8x128xf32>
    %1524 = arith.addf %1521, %1523 : vector<8x128xf32>
    %c19 = arith.constant 19 : index
    %1525 = memref.load %arg3[%c19] : memref<25xf32, #tpu.memory_space<smem>>
    %c19_114 = arith.constant 19 : index
    %1526 = memref.load %arg4[%c19_114] : memref<25xf32, #tpu.memory_space<smem>>
    %1527 = vector.broadcast %13 : f32 to vector<8x128xf32>
    %1528 = arith.mulf %1470, %1527 : vector<8x128xf32>
    %1529 = vector.broadcast %14 : f32 to vector<8x128xf32>
    %1530 = arith.mulf %1488, %1529 : vector<8x128xf32>
    %1531 = arith.addf %1528, %1530 : vector<8x128xf32>
    %1532 = vector.broadcast %15 : f32 to vector<8x128xf32>
    %1533 = arith.mulf %1506, %1532 : vector<8x128xf32>
    %1534 = arith.addf %1531, %1533 : vector<8x128xf32>
    %1535 = vector.broadcast %16 : f32 to vector<8x128xf32>
    %1536 = arith.mulf %1524, %1535 : vector<8x128xf32>
    %1537 = arith.addf %1534, %1536 : vector<8x128xf32>
    %1538 = vector.broadcast %6 : f32 to vector<8x128xf32>
    %1539 = arith.addf %1537, %1538 : vector<8x128xf32>
    %1540 = vector.broadcast %1525 : f32 to vector<8x128xf32>
    %1541 = arith.mulf %1540, %1470 : vector<8x128xf32>
    %1542 = vector.broadcast %1526 : f32 to vector<8x128xf32>
    %1543 = arith.mulf %1542, %1539 : vector<8x128xf32>
    %1544 = arith.addf %1541, %1543 : vector<8x128xf32>
    %1545 = vector.broadcast %17 : f32 to vector<8x128xf32>
    %1546 = arith.mulf %1470, %1545 : vector<8x128xf32>
    %1547 = vector.broadcast %18 : f32 to vector<8x128xf32>
    %1548 = arith.mulf %1488, %1547 : vector<8x128xf32>
    %1549 = arith.addf %1546, %1548 : vector<8x128xf32>
    %1550 = vector.broadcast %19 : f32 to vector<8x128xf32>
    %1551 = arith.mulf %1506, %1550 : vector<8x128xf32>
    %1552 = arith.addf %1549, %1551 : vector<8x128xf32>
    %1553 = vector.broadcast %20 : f32 to vector<8x128xf32>
    %1554 = arith.mulf %1524, %1553 : vector<8x128xf32>
    %1555 = arith.addf %1552, %1554 : vector<8x128xf32>
    %1556 = vector.broadcast %8 : f32 to vector<8x128xf32>
    %1557 = arith.addf %1555, %1556 : vector<8x128xf32>
    %1558 = vector.broadcast %1525 : f32 to vector<8x128xf32>
    %1559 = arith.mulf %1558, %1488 : vector<8x128xf32>
    %1560 = vector.broadcast %1526 : f32 to vector<8x128xf32>
    %1561 = arith.mulf %1560, %1557 : vector<8x128xf32>
    %1562 = arith.addf %1559, %1561 : vector<8x128xf32>
    %1563 = vector.broadcast %21 : f32 to vector<8x128xf32>
    %1564 = arith.mulf %1470, %1563 : vector<8x128xf32>
    %1565 = vector.broadcast %22 : f32 to vector<8x128xf32>
    %1566 = arith.mulf %1488, %1565 : vector<8x128xf32>
    %1567 = arith.addf %1564, %1566 : vector<8x128xf32>
    %1568 = vector.broadcast %23 : f32 to vector<8x128xf32>
    %1569 = arith.mulf %1506, %1568 : vector<8x128xf32>
    %1570 = arith.addf %1567, %1569 : vector<8x128xf32>
    %1571 = vector.broadcast %24 : f32 to vector<8x128xf32>
    %1572 = arith.mulf %1524, %1571 : vector<8x128xf32>
    %1573 = arith.addf %1570, %1572 : vector<8x128xf32>
    %1574 = vector.broadcast %10 : f32 to vector<8x128xf32>
    %1575 = arith.addf %1573, %1574 : vector<8x128xf32>
    %1576 = vector.broadcast %1525 : f32 to vector<8x128xf32>
    %1577 = arith.mulf %1576, %1506 : vector<8x128xf32>
    %1578 = vector.broadcast %1526 : f32 to vector<8x128xf32>
    %1579 = arith.mulf %1578, %1575 : vector<8x128xf32>
    %1580 = arith.addf %1577, %1579 : vector<8x128xf32>
    %1581 = vector.broadcast %25 : f32 to vector<8x128xf32>
    %1582 = arith.mulf %1470, %1581 : vector<8x128xf32>
    %1583 = vector.broadcast %26 : f32 to vector<8x128xf32>
    %1584 = arith.mulf %1488, %1583 : vector<8x128xf32>
    %1585 = arith.addf %1582, %1584 : vector<8x128xf32>
    %1586 = vector.broadcast %27 : f32 to vector<8x128xf32>
    %1587 = arith.mulf %1506, %1586 : vector<8x128xf32>
    %1588 = arith.addf %1585, %1587 : vector<8x128xf32>
    %1589 = vector.broadcast %28 : f32 to vector<8x128xf32>
    %1590 = arith.mulf %1524, %1589 : vector<8x128xf32>
    %1591 = arith.addf %1588, %1590 : vector<8x128xf32>
    %1592 = vector.broadcast %12 : f32 to vector<8x128xf32>
    %1593 = arith.addf %1591, %1592 : vector<8x128xf32>
    %1594 = vector.broadcast %1525 : f32 to vector<8x128xf32>
    %1595 = arith.mulf %1594, %1524 : vector<8x128xf32>
    %1596 = vector.broadcast %1526 : f32 to vector<8x128xf32>
    %1597 = arith.mulf %1596, %1593 : vector<8x128xf32>
    %1598 = arith.addf %1595, %1597 : vector<8x128xf32>
    %c20 = arith.constant 20 : index
    %1599 = memref.load %arg3[%c20] : memref<25xf32, #tpu.memory_space<smem>>
    %c20_115 = arith.constant 20 : index
    %1600 = memref.load %arg4[%c20_115] : memref<25xf32, #tpu.memory_space<smem>>
    %1601 = vector.broadcast %13 : f32 to vector<8x128xf32>
    %1602 = arith.mulf %1544, %1601 : vector<8x128xf32>
    %1603 = vector.broadcast %14 : f32 to vector<8x128xf32>
    %1604 = arith.mulf %1562, %1603 : vector<8x128xf32>
    %1605 = arith.addf %1602, %1604 : vector<8x128xf32>
    %1606 = vector.broadcast %15 : f32 to vector<8x128xf32>
    %1607 = arith.mulf %1580, %1606 : vector<8x128xf32>
    %1608 = arith.addf %1605, %1607 : vector<8x128xf32>
    %1609 = vector.broadcast %16 : f32 to vector<8x128xf32>
    %1610 = arith.mulf %1598, %1609 : vector<8x128xf32>
    %1611 = arith.addf %1608, %1610 : vector<8x128xf32>
    %1612 = vector.broadcast %6 : f32 to vector<8x128xf32>
    %1613 = arith.addf %1611, %1612 : vector<8x128xf32>
    %1614 = vector.broadcast %1599 : f32 to vector<8x128xf32>
    %1615 = arith.mulf %1614, %1544 : vector<8x128xf32>
    %1616 = vector.broadcast %1600 : f32 to vector<8x128xf32>
    %1617 = arith.mulf %1616, %1613 : vector<8x128xf32>
    %1618 = arith.addf %1615, %1617 : vector<8x128xf32>
    %1619 = vector.broadcast %17 : f32 to vector<8x128xf32>
    %1620 = arith.mulf %1544, %1619 : vector<8x128xf32>
    %1621 = vector.broadcast %18 : f32 to vector<8x128xf32>
    %1622 = arith.mulf %1562, %1621 : vector<8x128xf32>
    %1623 = arith.addf %1620, %1622 : vector<8x128xf32>
    %1624 = vector.broadcast %19 : f32 to vector<8x128xf32>
    %1625 = arith.mulf %1580, %1624 : vector<8x128xf32>
    %1626 = arith.addf %1623, %1625 : vector<8x128xf32>
    %1627 = vector.broadcast %20 : f32 to vector<8x128xf32>
    %1628 = arith.mulf %1598, %1627 : vector<8x128xf32>
    %1629 = arith.addf %1626, %1628 : vector<8x128xf32>
    %1630 = vector.broadcast %8 : f32 to vector<8x128xf32>
    %1631 = arith.addf %1629, %1630 : vector<8x128xf32>
    %1632 = vector.broadcast %1599 : f32 to vector<8x128xf32>
    %1633 = arith.mulf %1632, %1562 : vector<8x128xf32>
    %1634 = vector.broadcast %1600 : f32 to vector<8x128xf32>
    %1635 = arith.mulf %1634, %1631 : vector<8x128xf32>
    %1636 = arith.addf %1633, %1635 : vector<8x128xf32>
    %1637 = vector.broadcast %21 : f32 to vector<8x128xf32>
    %1638 = arith.mulf %1544, %1637 : vector<8x128xf32>
    %1639 = vector.broadcast %22 : f32 to vector<8x128xf32>
    %1640 = arith.mulf %1562, %1639 : vector<8x128xf32>
    %1641 = arith.addf %1638, %1640 : vector<8x128xf32>
    %1642 = vector.broadcast %23 : f32 to vector<8x128xf32>
    %1643 = arith.mulf %1580, %1642 : vector<8x128xf32>
    %1644 = arith.addf %1641, %1643 : vector<8x128xf32>
    %1645 = vector.broadcast %24 : f32 to vector<8x128xf32>
    %1646 = arith.mulf %1598, %1645 : vector<8x128xf32>
    %1647 = arith.addf %1644, %1646 : vector<8x128xf32>
    %1648 = vector.broadcast %10 : f32 to vector<8x128xf32>
    %1649 = arith.addf %1647, %1648 : vector<8x128xf32>
    %1650 = vector.broadcast %1599 : f32 to vector<8x128xf32>
    %1651 = arith.mulf %1650, %1580 : vector<8x128xf32>
    %1652 = vector.broadcast %1600 : f32 to vector<8x128xf32>
    %1653 = arith.mulf %1652, %1649 : vector<8x128xf32>
    %1654 = arith.addf %1651, %1653 : vector<8x128xf32>
    %1655 = vector.broadcast %25 : f32 to vector<8x128xf32>
    %1656 = arith.mulf %1544, %1655 : vector<8x128xf32>
    %1657 = vector.broadcast %26 : f32 to vector<8x128xf32>
    %1658 = arith.mulf %1562, %1657 : vector<8x128xf32>
    %1659 = arith.addf %1656, %1658 : vector<8x128xf32>
    %1660 = vector.broadcast %27 : f32 to vector<8x128xf32>
    %1661 = arith.mulf %1580, %1660 : vector<8x128xf32>
    %1662 = arith.addf %1659, %1661 : vector<8x128xf32>
    %1663 = vector.broadcast %28 : f32 to vector<8x128xf32>
    %1664 = arith.mulf %1598, %1663 : vector<8x128xf32>
    %1665 = arith.addf %1662, %1664 : vector<8x128xf32>
    %1666 = vector.broadcast %12 : f32 to vector<8x128xf32>
    %1667 = arith.addf %1665, %1666 : vector<8x128xf32>
    %1668 = vector.broadcast %1599 : f32 to vector<8x128xf32>
    %1669 = arith.mulf %1668, %1598 : vector<8x128xf32>
    %1670 = vector.broadcast %1600 : f32 to vector<8x128xf32>
    %1671 = arith.mulf %1670, %1667 : vector<8x128xf32>
    %1672 = arith.addf %1669, %1671 : vector<8x128xf32>
    %c21 = arith.constant 21 : index
    %1673 = memref.load %arg3[%c21] : memref<25xf32, #tpu.memory_space<smem>>
    %c21_116 = arith.constant 21 : index
    %1674 = memref.load %arg4[%c21_116] : memref<25xf32, #tpu.memory_space<smem>>
    %1675 = vector.broadcast %13 : f32 to vector<8x128xf32>
    %1676 = arith.mulf %1618, %1675 : vector<8x128xf32>
    %1677 = vector.broadcast %14 : f32 to vector<8x128xf32>
    %1678 = arith.mulf %1636, %1677 : vector<8x128xf32>
    %1679 = arith.addf %1676, %1678 : vector<8x128xf32>
    %1680 = vector.broadcast %15 : f32 to vector<8x128xf32>
    %1681 = arith.mulf %1654, %1680 : vector<8x128xf32>
    %1682 = arith.addf %1679, %1681 : vector<8x128xf32>
    %1683 = vector.broadcast %16 : f32 to vector<8x128xf32>
    %1684 = arith.mulf %1672, %1683 : vector<8x128xf32>
    %1685 = arith.addf %1682, %1684 : vector<8x128xf32>
    %1686 = vector.broadcast %6 : f32 to vector<8x128xf32>
    %1687 = arith.addf %1685, %1686 : vector<8x128xf32>
    %1688 = vector.broadcast %1673 : f32 to vector<8x128xf32>
    %1689 = arith.mulf %1688, %1618 : vector<8x128xf32>
    %1690 = vector.broadcast %1674 : f32 to vector<8x128xf32>
    %1691 = arith.mulf %1690, %1687 : vector<8x128xf32>
    %1692 = arith.addf %1689, %1691 : vector<8x128xf32>
    %1693 = vector.broadcast %17 : f32 to vector<8x128xf32>
    %1694 = arith.mulf %1618, %1693 : vector<8x128xf32>
    %1695 = vector.broadcast %18 : f32 to vector<8x128xf32>
    %1696 = arith.mulf %1636, %1695 : vector<8x128xf32>
    %1697 = arith.addf %1694, %1696 : vector<8x128xf32>
    %1698 = vector.broadcast %19 : f32 to vector<8x128xf32>
    %1699 = arith.mulf %1654, %1698 : vector<8x128xf32>
    %1700 = arith.addf %1697, %1699 : vector<8x128xf32>
    %1701 = vector.broadcast %20 : f32 to vector<8x128xf32>
    %1702 = arith.mulf %1672, %1701 : vector<8x128xf32>
    %1703 = arith.addf %1700, %1702 : vector<8x128xf32>
    %1704 = vector.broadcast %8 : f32 to vector<8x128xf32>
    %1705 = arith.addf %1703, %1704 : vector<8x128xf32>
    %1706 = vector.broadcast %1673 : f32 to vector<8x128xf32>
    %1707 = arith.mulf %1706, %1636 : vector<8x128xf32>
    %1708 = vector.broadcast %1674 : f32 to vector<8x128xf32>
    %1709 = arith.mulf %1708, %1705 : vector<8x128xf32>
    %1710 = arith.addf %1707, %1709 : vector<8x128xf32>
    %1711 = vector.broadcast %21 : f32 to vector<8x128xf32>
    %1712 = arith.mulf %1618, %1711 : vector<8x128xf32>
    %1713 = vector.broadcast %22 : f32 to vector<8x128xf32>
    %1714 = arith.mulf %1636, %1713 : vector<8x128xf32>
    %1715 = arith.addf %1712, %1714 : vector<8x128xf32>
    %1716 = vector.broadcast %23 : f32 to vector<8x128xf32>
    %1717 = arith.mulf %1654, %1716 : vector<8x128xf32>
    %1718 = arith.addf %1715, %1717 : vector<8x128xf32>
    %1719 = vector.broadcast %24 : f32 to vector<8x128xf32>
    %1720 = arith.mulf %1672, %1719 : vector<8x128xf32>
    %1721 = arith.addf %1718, %1720 : vector<8x128xf32>
    %1722 = vector.broadcast %10 : f32 to vector<8x128xf32>
    %1723 = arith.addf %1721, %1722 : vector<8x128xf32>
    %1724 = vector.broadcast %1673 : f32 to vector<8x128xf32>
    %1725 = arith.mulf %1724, %1654 : vector<8x128xf32>
    %1726 = vector.broadcast %1674 : f32 to vector<8x128xf32>
    %1727 = arith.mulf %1726, %1723 : vector<8x128xf32>
    %1728 = arith.addf %1725, %1727 : vector<8x128xf32>
    %1729 = vector.broadcast %25 : f32 to vector<8x128xf32>
    %1730 = arith.mulf %1618, %1729 : vector<8x128xf32>
    %1731 = vector.broadcast %26 : f32 to vector<8x128xf32>
    %1732 = arith.mulf %1636, %1731 : vector<8x128xf32>
    %1733 = arith.addf %1730, %1732 : vector<8x128xf32>
    %1734 = vector.broadcast %27 : f32 to vector<8x128xf32>
    %1735 = arith.mulf %1654, %1734 : vector<8x128xf32>
    %1736 = arith.addf %1733, %1735 : vector<8x128xf32>
    %1737 = vector.broadcast %28 : f32 to vector<8x128xf32>
    %1738 = arith.mulf %1672, %1737 : vector<8x128xf32>
    %1739 = arith.addf %1736, %1738 : vector<8x128xf32>
    %1740 = vector.broadcast %12 : f32 to vector<8x128xf32>
    %1741 = arith.addf %1739, %1740 : vector<8x128xf32>
    %1742 = vector.broadcast %1673 : f32 to vector<8x128xf32>
    %1743 = arith.mulf %1742, %1672 : vector<8x128xf32>
    %1744 = vector.broadcast %1674 : f32 to vector<8x128xf32>
    %1745 = arith.mulf %1744, %1741 : vector<8x128xf32>
    %1746 = arith.addf %1743, %1745 : vector<8x128xf32>
    %c22 = arith.constant 22 : index
    %1747 = memref.load %arg3[%c22] : memref<25xf32, #tpu.memory_space<smem>>
    %c22_117 = arith.constant 22 : index
    %1748 = memref.load %arg4[%c22_117] : memref<25xf32, #tpu.memory_space<smem>>
    %1749 = vector.broadcast %13 : f32 to vector<8x128xf32>
    %1750 = arith.mulf %1692, %1749 : vector<8x128xf32>
    %1751 = vector.broadcast %14 : f32 to vector<8x128xf32>
    %1752 = arith.mulf %1710, %1751 : vector<8x128xf32>
    %1753 = arith.addf %1750, %1752 : vector<8x128xf32>
    %1754 = vector.broadcast %15 : f32 to vector<8x128xf32>
    %1755 = arith.mulf %1728, %1754 : vector<8x128xf32>
    %1756 = arith.addf %1753, %1755 : vector<8x128xf32>
    %1757 = vector.broadcast %16 : f32 to vector<8x128xf32>
    %1758 = arith.mulf %1746, %1757 : vector<8x128xf32>
    %1759 = arith.addf %1756, %1758 : vector<8x128xf32>
    %1760 = vector.broadcast %6 : f32 to vector<8x128xf32>
    %1761 = arith.addf %1759, %1760 : vector<8x128xf32>
    %1762 = vector.broadcast %1747 : f32 to vector<8x128xf32>
    %1763 = arith.mulf %1762, %1692 : vector<8x128xf32>
    %1764 = vector.broadcast %1748 : f32 to vector<8x128xf32>
    %1765 = arith.mulf %1764, %1761 : vector<8x128xf32>
    %1766 = arith.addf %1763, %1765 : vector<8x128xf32>
    %1767 = vector.broadcast %17 : f32 to vector<8x128xf32>
    %1768 = arith.mulf %1692, %1767 : vector<8x128xf32>
    %1769 = vector.broadcast %18 : f32 to vector<8x128xf32>
    %1770 = arith.mulf %1710, %1769 : vector<8x128xf32>
    %1771 = arith.addf %1768, %1770 : vector<8x128xf32>
    %1772 = vector.broadcast %19 : f32 to vector<8x128xf32>
    %1773 = arith.mulf %1728, %1772 : vector<8x128xf32>
    %1774 = arith.addf %1771, %1773 : vector<8x128xf32>
    %1775 = vector.broadcast %20 : f32 to vector<8x128xf32>
    %1776 = arith.mulf %1746, %1775 : vector<8x128xf32>
    %1777 = arith.addf %1774, %1776 : vector<8x128xf32>
    %1778 = vector.broadcast %8 : f32 to vector<8x128xf32>
    %1779 = arith.addf %1777, %1778 : vector<8x128xf32>
    %1780 = vector.broadcast %1747 : f32 to vector<8x128xf32>
    %1781 = arith.mulf %1780, %1710 : vector<8x128xf32>
    %1782 = vector.broadcast %1748 : f32 to vector<8x128xf32>
    %1783 = arith.mulf %1782, %1779 : vector<8x128xf32>
    %1784 = arith.addf %1781, %1783 : vector<8x128xf32>
    %1785 = vector.broadcast %21 : f32 to vector<8x128xf32>
    %1786 = arith.mulf %1692, %1785 : vector<8x128xf32>
    %1787 = vector.broadcast %22 : f32 to vector<8x128xf32>
    %1788 = arith.mulf %1710, %1787 : vector<8x128xf32>
    %1789 = arith.addf %1786, %1788 : vector<8x128xf32>
    %1790 = vector.broadcast %23 : f32 to vector<8x128xf32>
    %1791 = arith.mulf %1728, %1790 : vector<8x128xf32>
    %1792 = arith.addf %1789, %1791 : vector<8x128xf32>
    %1793 = vector.broadcast %24 : f32 to vector<8x128xf32>
    %1794 = arith.mulf %1746, %1793 : vector<8x128xf32>
    %1795 = arith.addf %1792, %1794 : vector<8x128xf32>
    %1796 = vector.broadcast %10 : f32 to vector<8x128xf32>
    %1797 = arith.addf %1795, %1796 : vector<8x128xf32>
    %1798 = vector.broadcast %1747 : f32 to vector<8x128xf32>
    %1799 = arith.mulf %1798, %1728 : vector<8x128xf32>
    %1800 = vector.broadcast %1748 : f32 to vector<8x128xf32>
    %1801 = arith.mulf %1800, %1797 : vector<8x128xf32>
    %1802 = arith.addf %1799, %1801 : vector<8x128xf32>
    %1803 = vector.broadcast %25 : f32 to vector<8x128xf32>
    %1804 = arith.mulf %1692, %1803 : vector<8x128xf32>
    %1805 = vector.broadcast %26 : f32 to vector<8x128xf32>
    %1806 = arith.mulf %1710, %1805 : vector<8x128xf32>
    %1807 = arith.addf %1804, %1806 : vector<8x128xf32>
    %1808 = vector.broadcast %27 : f32 to vector<8x128xf32>
    %1809 = arith.mulf %1728, %1808 : vector<8x128xf32>
    %1810 = arith.addf %1807, %1809 : vector<8x128xf32>
    %1811 = vector.broadcast %28 : f32 to vector<8x128xf32>
    %1812 = arith.mulf %1746, %1811 : vector<8x128xf32>
    %1813 = arith.addf %1810, %1812 : vector<8x128xf32>
    %1814 = vector.broadcast %12 : f32 to vector<8x128xf32>
    %1815 = arith.addf %1813, %1814 : vector<8x128xf32>
    %1816 = vector.broadcast %1747 : f32 to vector<8x128xf32>
    %1817 = arith.mulf %1816, %1746 : vector<8x128xf32>
    %1818 = vector.broadcast %1748 : f32 to vector<8x128xf32>
    %1819 = arith.mulf %1818, %1815 : vector<8x128xf32>
    %1820 = arith.addf %1817, %1819 : vector<8x128xf32>
    %c23 = arith.constant 23 : index
    %1821 = memref.load %arg3[%c23] : memref<25xf32, #tpu.memory_space<smem>>
    %c23_118 = arith.constant 23 : index
    %1822 = memref.load %arg4[%c23_118] : memref<25xf32, #tpu.memory_space<smem>>
    %1823 = vector.broadcast %13 : f32 to vector<8x128xf32>
    %1824 = arith.mulf %1766, %1823 : vector<8x128xf32>
    %1825 = vector.broadcast %14 : f32 to vector<8x128xf32>
    %1826 = arith.mulf %1784, %1825 : vector<8x128xf32>
    %1827 = arith.addf %1824, %1826 : vector<8x128xf32>
    %1828 = vector.broadcast %15 : f32 to vector<8x128xf32>
    %1829 = arith.mulf %1802, %1828 : vector<8x128xf32>
    %1830 = arith.addf %1827, %1829 : vector<8x128xf32>
    %1831 = vector.broadcast %16 : f32 to vector<8x128xf32>
    %1832 = arith.mulf %1820, %1831 : vector<8x128xf32>
    %1833 = arith.addf %1830, %1832 : vector<8x128xf32>
    %1834 = vector.broadcast %6 : f32 to vector<8x128xf32>
    %1835 = arith.addf %1833, %1834 : vector<8x128xf32>
    %1836 = vector.broadcast %1821 : f32 to vector<8x128xf32>
    %1837 = arith.mulf %1836, %1766 : vector<8x128xf32>
    %1838 = vector.broadcast %1822 : f32 to vector<8x128xf32>
    %1839 = arith.mulf %1838, %1835 : vector<8x128xf32>
    %1840 = arith.addf %1837, %1839 : vector<8x128xf32>
    %1841 = vector.broadcast %17 : f32 to vector<8x128xf32>
    %1842 = arith.mulf %1766, %1841 : vector<8x128xf32>
    %1843 = vector.broadcast %18 : f32 to vector<8x128xf32>
    %1844 = arith.mulf %1784, %1843 : vector<8x128xf32>
    %1845 = arith.addf %1842, %1844 : vector<8x128xf32>
    %1846 = vector.broadcast %19 : f32 to vector<8x128xf32>
    %1847 = arith.mulf %1802, %1846 : vector<8x128xf32>
    %1848 = arith.addf %1845, %1847 : vector<8x128xf32>
    %1849 = vector.broadcast %20 : f32 to vector<8x128xf32>
    %1850 = arith.mulf %1820, %1849 : vector<8x128xf32>
    %1851 = arith.addf %1848, %1850 : vector<8x128xf32>
    %1852 = vector.broadcast %8 : f32 to vector<8x128xf32>
    %1853 = arith.addf %1851, %1852 : vector<8x128xf32>
    %1854 = vector.broadcast %1821 : f32 to vector<8x128xf32>
    %1855 = arith.mulf %1854, %1784 : vector<8x128xf32>
    %1856 = vector.broadcast %1822 : f32 to vector<8x128xf32>
    %1857 = arith.mulf %1856, %1853 : vector<8x128xf32>
    %1858 = arith.addf %1855, %1857 : vector<8x128xf32>
    %1859 = vector.broadcast %21 : f32 to vector<8x128xf32>
    %1860 = arith.mulf %1766, %1859 : vector<8x128xf32>
    %1861 = vector.broadcast %22 : f32 to vector<8x128xf32>
    %1862 = arith.mulf %1784, %1861 : vector<8x128xf32>
    %1863 = arith.addf %1860, %1862 : vector<8x128xf32>
    %1864 = vector.broadcast %23 : f32 to vector<8x128xf32>
    %1865 = arith.mulf %1802, %1864 : vector<8x128xf32>
    %1866 = arith.addf %1863, %1865 : vector<8x128xf32>
    %1867 = vector.broadcast %24 : f32 to vector<8x128xf32>
    %1868 = arith.mulf %1820, %1867 : vector<8x128xf32>
    %1869 = arith.addf %1866, %1868 : vector<8x128xf32>
    %1870 = vector.broadcast %10 : f32 to vector<8x128xf32>
    %1871 = arith.addf %1869, %1870 : vector<8x128xf32>
    %1872 = vector.broadcast %1821 : f32 to vector<8x128xf32>
    %1873 = arith.mulf %1872, %1802 : vector<8x128xf32>
    %1874 = vector.broadcast %1822 : f32 to vector<8x128xf32>
    %1875 = arith.mulf %1874, %1871 : vector<8x128xf32>
    %1876 = arith.addf %1873, %1875 : vector<8x128xf32>
    %1877 = vector.broadcast %25 : f32 to vector<8x128xf32>
    %1878 = arith.mulf %1766, %1877 : vector<8x128xf32>
    %1879 = vector.broadcast %26 : f32 to vector<8x128xf32>
    %1880 = arith.mulf %1784, %1879 : vector<8x128xf32>
    %1881 = arith.addf %1878, %1880 : vector<8x128xf32>
    %1882 = vector.broadcast %27 : f32 to vector<8x128xf32>
    %1883 = arith.mulf %1802, %1882 : vector<8x128xf32>
    %1884 = arith.addf %1881, %1883 : vector<8x128xf32>
    %1885 = vector.broadcast %28 : f32 to vector<8x128xf32>
    %1886 = arith.mulf %1820, %1885 : vector<8x128xf32>
    %1887 = arith.addf %1884, %1886 : vector<8x128xf32>
    %1888 = vector.broadcast %12 : f32 to vector<8x128xf32>
    %1889 = arith.addf %1887, %1888 : vector<8x128xf32>
    %1890 = vector.broadcast %1821 : f32 to vector<8x128xf32>
    %1891 = arith.mulf %1890, %1820 : vector<8x128xf32>
    %1892 = vector.broadcast %1822 : f32 to vector<8x128xf32>
    %1893 = arith.mulf %1892, %1889 : vector<8x128xf32>
    %1894 = arith.addf %1891, %1893 : vector<8x128xf32>
    %c24 = arith.constant 24 : index
    %1895 = memref.load %arg3[%c24] : memref<25xf32, #tpu.memory_space<smem>>
    %c24_119 = arith.constant 24 : index
    %1896 = memref.load %arg4[%c24_119] : memref<25xf32, #tpu.memory_space<smem>>
    %1897 = vector.broadcast %13 : f32 to vector<8x128xf32>
    %1898 = arith.mulf %1840, %1897 : vector<8x128xf32>
    %1899 = vector.broadcast %14 : f32 to vector<8x128xf32>
    %1900 = arith.mulf %1858, %1899 : vector<8x128xf32>
    %1901 = arith.addf %1898, %1900 : vector<8x128xf32>
    %1902 = vector.broadcast %15 : f32 to vector<8x128xf32>
    %1903 = arith.mulf %1876, %1902 : vector<8x128xf32>
    %1904 = arith.addf %1901, %1903 : vector<8x128xf32>
    %1905 = vector.broadcast %16 : f32 to vector<8x128xf32>
    %1906 = arith.mulf %1894, %1905 : vector<8x128xf32>
    %1907 = arith.addf %1904, %1906 : vector<8x128xf32>
    %1908 = vector.broadcast %6 : f32 to vector<8x128xf32>
    %1909 = arith.addf %1907, %1908 : vector<8x128xf32>
    %1910 = vector.broadcast %1895 : f32 to vector<8x128xf32>
    %1911 = arith.mulf %1910, %1840 : vector<8x128xf32>
    %1912 = vector.broadcast %1896 : f32 to vector<8x128xf32>
    %1913 = arith.mulf %1912, %1909 : vector<8x128xf32>
    %1914 = arith.addf %1911, %1913 : vector<8x128xf32>
    %1915 = vector.broadcast %17 : f32 to vector<8x128xf32>
    %1916 = arith.mulf %1840, %1915 : vector<8x128xf32>
    %1917 = vector.broadcast %18 : f32 to vector<8x128xf32>
    %1918 = arith.mulf %1858, %1917 : vector<8x128xf32>
    %1919 = arith.addf %1916, %1918 : vector<8x128xf32>
    %1920 = vector.broadcast %19 : f32 to vector<8x128xf32>
    %1921 = arith.mulf %1876, %1920 : vector<8x128xf32>
    %1922 = arith.addf %1919, %1921 : vector<8x128xf32>
    %1923 = vector.broadcast %20 : f32 to vector<8x128xf32>
    %1924 = arith.mulf %1894, %1923 : vector<8x128xf32>
    %1925 = arith.addf %1922, %1924 : vector<8x128xf32>
    %1926 = vector.broadcast %8 : f32 to vector<8x128xf32>
    %1927 = arith.addf %1925, %1926 : vector<8x128xf32>
    %1928 = vector.broadcast %1895 : f32 to vector<8x128xf32>
    %1929 = arith.mulf %1928, %1858 : vector<8x128xf32>
    %1930 = vector.broadcast %1896 : f32 to vector<8x128xf32>
    %1931 = arith.mulf %1930, %1927 : vector<8x128xf32>
    %1932 = arith.addf %1929, %1931 : vector<8x128xf32>
    %1933 = vector.broadcast %21 : f32 to vector<8x128xf32>
    %1934 = arith.mulf %1840, %1933 : vector<8x128xf32>
    %1935 = vector.broadcast %22 : f32 to vector<8x128xf32>
    %1936 = arith.mulf %1858, %1935 : vector<8x128xf32>
    %1937 = arith.addf %1934, %1936 : vector<8x128xf32>
    %1938 = vector.broadcast %23 : f32 to vector<8x128xf32>
    %1939 = arith.mulf %1876, %1938 : vector<8x128xf32>
    %1940 = arith.addf %1937, %1939 : vector<8x128xf32>
    %1941 = vector.broadcast %24 : f32 to vector<8x128xf32>
    %1942 = arith.mulf %1894, %1941 : vector<8x128xf32>
    %1943 = arith.addf %1940, %1942 : vector<8x128xf32>
    %1944 = vector.broadcast %10 : f32 to vector<8x128xf32>
    %1945 = arith.addf %1943, %1944 : vector<8x128xf32>
    %1946 = vector.broadcast %1895 : f32 to vector<8x128xf32>
    %1947 = arith.mulf %1946, %1876 : vector<8x128xf32>
    %1948 = vector.broadcast %1896 : f32 to vector<8x128xf32>
    %1949 = arith.mulf %1948, %1945 : vector<8x128xf32>
    %1950 = arith.addf %1947, %1949 : vector<8x128xf32>
    %1951 = vector.broadcast %25 : f32 to vector<8x128xf32>
    %1952 = arith.mulf %1840, %1951 : vector<8x128xf32>
    %1953 = vector.broadcast %26 : f32 to vector<8x128xf32>
    %1954 = arith.mulf %1858, %1953 : vector<8x128xf32>
    %1955 = arith.addf %1952, %1954 : vector<8x128xf32>
    %1956 = vector.broadcast %27 : f32 to vector<8x128xf32>
    %1957 = arith.mulf %1876, %1956 : vector<8x128xf32>
    %1958 = arith.addf %1955, %1957 : vector<8x128xf32>
    %1959 = vector.broadcast %28 : f32 to vector<8x128xf32>
    %1960 = arith.mulf %1894, %1959 : vector<8x128xf32>
    %1961 = arith.addf %1958, %1960 : vector<8x128xf32>
    %1962 = vector.broadcast %12 : f32 to vector<8x128xf32>
    %1963 = arith.addf %1961, %1962 : vector<8x128xf32>
    %1964 = vector.broadcast %1895 : f32 to vector<8x128xf32>
    %1965 = arith.mulf %1964, %1894 : vector<8x128xf32>
    %1966 = vector.broadcast %1896 : f32 to vector<8x128xf32>
    %1967 = arith.mulf %1966, %1963 : vector<8x128xf32>
    %1968 = arith.addf %1965, %1967 : vector<8x128xf32>
    %c0_120 = arith.constant 0 : index
    %c0_121 = arith.constant 0 : index
    %1969 = memref.load %arg10[%c0_120, %c0_121] : memref<3x4xf32, #tpu.memory_space<smem>>
    %1970 = vector.broadcast %1969 : f32 to vector<8x128xf32>
    %1971 = arith.mulf %1914, %1970 : vector<8x128xf32>
    %c0_122 = arith.constant 0 : index
    %c1_123 = arith.constant 1 : index
    %1972 = memref.load %arg10[%c0_122, %c1_123] : memref<3x4xf32, #tpu.memory_space<smem>>
    %1973 = vector.broadcast %1972 : f32 to vector<8x128xf32>
    %1974 = arith.mulf %1932, %1973 : vector<8x128xf32>
    %1975 = arith.addf %1971, %1974 : vector<8x128xf32>
    %c0_124 = arith.constant 0 : index
    %c2_125 = arith.constant 2 : index
    %1976 = memref.load %arg10[%c0_124, %c2_125] : memref<3x4xf32, #tpu.memory_space<smem>>
    %1977 = vector.broadcast %1976 : f32 to vector<8x128xf32>
    %1978 = arith.mulf %1950, %1977 : vector<8x128xf32>
    %1979 = arith.addf %1975, %1978 : vector<8x128xf32>
    %c0_126 = arith.constant 0 : index
    %c3_127 = arith.constant 3 : index
    %1980 = memref.load %arg10[%c0_126, %c3_127] : memref<3x4xf32, #tpu.memory_space<smem>>
    %1981 = vector.broadcast %1980 : f32 to vector<8x128xf32>
    %1982 = arith.mulf %1968, %1981 : vector<8x128xf32>
    %1983 = arith.addf %1979, %1982 : vector<8x128xf32>
    %c0_128 = arith.constant 0 : index
    %1984 = memref.load %arg7[%c0_128] : memref<3xf32, #tpu.memory_space<smem>>
    %1985 = vector.broadcast %1984 : f32 to vector<8x128xf32>
    %1986 = arith.addf %1983, %1985 : vector<8x128xf32>
    %cst = arith.constant 1.000000e+00 : f32
    %1987 = vector.broadcast %cst : f32 to vector<8x128xf32>
    %1988 = arith.addf %1986, %1987 : vector<8x128xf32>
    %cst_129 = arith.constant 5.000000e-01 : f32
    %1989 = vector.broadcast %cst_129 : f32 to vector<8x128xf32>
    %1990 = arith.mulf %1988, %1989 : vector<8x128xf32>
    %cst_130 = arith.constant 0.000000e+00 : f32
    %cst_131 = arith.constant 1.000000e+00 : f32
    %1991 = vector.broadcast %cst_130 : f32 to vector<8x128xf32>
    %1992 = arith.maximumf %1991, %1990 : vector<8x128xf32>
    %1993 = vector.broadcast %cst_131 : f32 to vector<8x128xf32>
    %1994 = arith.minimumf %1993, %1992 : vector<8x128xf32>
    %1995 = arith.subf %1994, %30 : vector<8x128xf32>
    %1996 = arith.mulf %1995, %1995 : vector<8x128xf32>
    %c1_132 = arith.constant 1 : index
    %c0_133 = arith.constant 0 : index
    %1997 = memref.load %arg10[%c1_132, %c0_133] : memref<3x4xf32, #tpu.memory_space<smem>>
    %1998 = vector.broadcast %1997 : f32 to vector<8x128xf32>
    %1999 = arith.mulf %1914, %1998 : vector<8x128xf32>
    %c1_134 = arith.constant 1 : index
    %c1_135 = arith.constant 1 : index
    %2000 = memref.load %arg10[%c1_134, %c1_135] : memref<3x4xf32, #tpu.memory_space<smem>>
    %2001 = vector.broadcast %2000 : f32 to vector<8x128xf32>
    %2002 = arith.mulf %1932, %2001 : vector<8x128xf32>
    %2003 = arith.addf %1999, %2002 : vector<8x128xf32>
    %c1_136 = arith.constant 1 : index
    %c2_137 = arith.constant 2 : index
    %2004 = memref.load %arg10[%c1_136, %c2_137] : memref<3x4xf32, #tpu.memory_space<smem>>
    %2005 = vector.broadcast %2004 : f32 to vector<8x128xf32>
    %2006 = arith.mulf %1950, %2005 : vector<8x128xf32>
    %2007 = arith.addf %2003, %2006 : vector<8x128xf32>
    %c1_138 = arith.constant 1 : index
    %c3_139 = arith.constant 3 : index
    %2008 = memref.load %arg10[%c1_138, %c3_139] : memref<3x4xf32, #tpu.memory_space<smem>>
    %2009 = vector.broadcast %2008 : f32 to vector<8x128xf32>
    %2010 = arith.mulf %1968, %2009 : vector<8x128xf32>
    %2011 = arith.addf %2007, %2010 : vector<8x128xf32>
    %c1_140 = arith.constant 1 : index
    %2012 = memref.load %arg7[%c1_140] : memref<3xf32, #tpu.memory_space<smem>>
    %2013 = vector.broadcast %2012 : f32 to vector<8x128xf32>
    %2014 = arith.addf %2011, %2013 : vector<8x128xf32>
    %cst_141 = arith.constant 1.000000e+00 : f32
    %2015 = vector.broadcast %cst_141 : f32 to vector<8x128xf32>
    %2016 = arith.addf %2014, %2015 : vector<8x128xf32>
    %cst_142 = arith.constant 5.000000e-01 : f32
    %2017 = vector.broadcast %cst_142 : f32 to vector<8x128xf32>
    %2018 = arith.mulf %2016, %2017 : vector<8x128xf32>
    %cst_143 = arith.constant 0.000000e+00 : f32
    %cst_144 = arith.constant 1.000000e+00 : f32
    %2019 = vector.broadcast %cst_143 : f32 to vector<8x128xf32>
    %2020 = arith.maximumf %2019, %2018 : vector<8x128xf32>
    %2021 = vector.broadcast %cst_144 : f32 to vector<8x128xf32>
    %2022 = arith.minimumf %2021, %2020 : vector<8x128xf32>
    %2023 = arith.subf %2022, %32 : vector<8x128xf32>
    %2024 = arith.mulf %2023, %2023 : vector<8x128xf32>
    %2025 = arith.addf %1996, %2024 : vector<8x128xf32>
    %c2_145 = arith.constant 2 : index
    %c0_146 = arith.constant 0 : index
    %2026 = memref.load %arg10[%c2_145, %c0_146] : memref<3x4xf32, #tpu.memory_space<smem>>
    %2027 = vector.broadcast %2026 : f32 to vector<8x128xf32>
    %2028 = arith.mulf %1914, %2027 : vector<8x128xf32>
    %c2_147 = arith.constant 2 : index
    %c1_148 = arith.constant 1 : index
    %2029 = memref.load %arg10[%c2_147, %c1_148] : memref<3x4xf32, #tpu.memory_space<smem>>
    %2030 = vector.broadcast %2029 : f32 to vector<8x128xf32>
    %2031 = arith.mulf %1932, %2030 : vector<8x128xf32>
    %2032 = arith.addf %2028, %2031 : vector<8x128xf32>
    %c2_149 = arith.constant 2 : index
    %c2_150 = arith.constant 2 : index
    %2033 = memref.load %arg10[%c2_149, %c2_150] : memref<3x4xf32, #tpu.memory_space<smem>>
    %2034 = vector.broadcast %2033 : f32 to vector<8x128xf32>
    %2035 = arith.mulf %1950, %2034 : vector<8x128xf32>
    %2036 = arith.addf %2032, %2035 : vector<8x128xf32>
    %c2_151 = arith.constant 2 : index
    %c3_152 = arith.constant 3 : index
    %2037 = memref.load %arg10[%c2_151, %c3_152] : memref<3x4xf32, #tpu.memory_space<smem>>
    %2038 = vector.broadcast %2037 : f32 to vector<8x128xf32>
    %2039 = arith.mulf %1968, %2038 : vector<8x128xf32>
    %2040 = arith.addf %2036, %2039 : vector<8x128xf32>
    %c2_153 = arith.constant 2 : index
    %2041 = memref.load %arg7[%c2_153] : memref<3xf32, #tpu.memory_space<smem>>
    %2042 = vector.broadcast %2041 : f32 to vector<8x128xf32>
    %2043 = arith.addf %2040, %2042 : vector<8x128xf32>
    %cst_154 = arith.constant 1.000000e+00 : f32
    %2044 = vector.broadcast %cst_154 : f32 to vector<8x128xf32>
    %2045 = arith.addf %2043, %2044 : vector<8x128xf32>
    %cst_155 = arith.constant 5.000000e-01 : f32
    %2046 = vector.broadcast %cst_155 : f32 to vector<8x128xf32>
    %2047 = arith.mulf %2045, %2046 : vector<8x128xf32>
    %cst_156 = arith.constant 0.000000e+00 : f32
    %cst_157 = arith.constant 1.000000e+00 : f32
    %2048 = vector.broadcast %cst_156 : f32 to vector<8x128xf32>
    %2049 = arith.maximumf %2048, %2047 : vector<8x128xf32>
    %2050 = vector.broadcast %cst_157 : f32 to vector<8x128xf32>
    %2051 = arith.minimumf %2050, %2049 : vector<8x128xf32>
    %2052 = arith.subf %2051, %34 : vector<8x128xf32>
    %2053 = arith.mulf %2052, %2052 : vector<8x128xf32>
    %2054 = arith.addf %2025, %2053 : vector<8x128xf32>
    %c0_i32_158 = arith.constant 0 : i32
    %2055 = arith.cmpi eq, %arg1, %c0_i32_158 : i32
    %2056 = arith.extui %2055 : i1 to i32
    %c0_i32_159 = arith.constant 0 : i32
    %2057 = arith.cmpi ne, %2056, %c0_i32_159 : i32
    scf.if %2057 {
      %2064 = tpu.iota {dimensions = array<i32: 0>} : vector<8x128xi32>
      %2065 = tpu.iota {dimensions = array<i32: 1>} : vector<8x128xi32>
      %c128_i32 = arith.constant 128 : i32
      %2066 = vector.broadcast %c128_i32 : i32 to vector<8x128xi32>
      %2067 = arith.muli %2064, %2066 : vector<8x128xi32>
      %c0_i32_164 = arith.constant 0 : i32
      %2068 = vector.broadcast %c0_i32_164 : i32 to vector<8x128xi32>
      %2069 = arith.addi %2068, %2067 : vector<8x128xi32>
      %2070 = arith.addi %2069, %2065 : vector<8x128xi32>
      %c0_165 = arith.constant 0 : index
      %c0_166 = arith.constant 0 : index
      %2071 = vector.load %arg14[%c0_165, %c0_166] : memref<8x128xf32, #tpu.memory_space<vmem>>, vector<8x128xf32>
      %c256_i32 = arith.constant 256 : i32
      %2072 = vector.broadcast %c256_i32 : i32 to vector<8x128xi32>
      %2073 = arith.cmpi slt, %2070, %2072 : vector<8x128xi32>
      %cst_167 = arith.constant 0.000000e+00 : f32
      %2074 = vector.broadcast %cst_167 : f32 to vector<8x128xf32>
      %2075 = arith.select %2073, %2054, %2074 : vector<8x128xi1>, vector<8x128xf32>
      %2076 = arith.addf %2071, %2075 : vector<8x128xf32>
      %c0_168 = arith.constant 0 : index
      %c0_169 = arith.constant 0 : index
      %2077 = vector.load %arg14[%c0_168, %c0_169] : memref<8x128xf32, #tpu.memory_space<vmem>>, vector<8x128xf32>
      tpu.vector_store %arg14[%c0_168, %c0_169], %2076 {strides = array<i32>} : memref<8x128xf32, #tpu.memory_space<vmem>>, vector<8x128xf32>,
    } else {
    }
    %c0_i32_160 = arith.constant 0 : i32
    %2058 = arith.cmpi ne, %arg1, %c0_i32_160 : i32
    %2059 = arith.extui %2058 : i1 to i32
    %c0_i32_161 = arith.constant 0 : i32
    %2060 = arith.cmpi ne, %2059, %c0_i32_161 : i32
    scf.if %2060 {
      %c0_164 = arith.constant 0 : index
      %c0_165 = arith.constant 0 : index
      %2064 = vector.load %arg14[%c0_164, %c0_165] : memref<8x128xf32, #tpu.memory_space<vmem>>, vector<8x128xf32>
      %2065 = arith.addf %2064, %2054 : vector<8x128xf32>
      %c0_166 = arith.constant 0 : index
      %c0_167 = arith.constant 0 : index
      %2066 = vector.load %arg14[%c0_166, %c0_167] : memref<8x128xf32, #tpu.memory_space<vmem>>, vector<8x128xf32>
      tpu.vector_store %arg14[%c0_166, %c0_167], %2065 {strides = array<i32>} : memref<8x128xf32, #tpu.memory_space<vmem>>, vector<8x128xf32>,
    } else {
    }
    %c0_i32_162 = arith.constant 0 : i32
    %2061 = arith.cmpi eq, %arg1, %c0_i32_162 : i32
    %2062 = arith.extui %2061 : i1 to i32
    %c0_i32_163 = arith.constant 0 : i32
    %2063 = arith.cmpi ne, %2062, %c0_i32_163 : i32
    scf.if %2063 {
      %c0_164 = arith.constant 0 : index
      %c0_165 = arith.constant 0 : index
      %2064 = vector.load %arg14[%c0_164, %c0_165] : memref<8x128xf32, #tpu.memory_space<vmem>>, vector<8x128xf32>
      %c0_166 = arith.constant 0 : index
      %c0_167 = arith.constant 0 : index
      %c0_168 = arith.constant 0 : index
      %2065 = vector.load %arg13[%c0_166, %c0_167, %c0_168] : memref<1x8x128xf32, #tpu.memory_space<vmem>>, vector<1x8x128xf32>
      %2066 = vector.shape_cast %2065 : vector<1x8x128xf32> to vector<8x128xf32>
      %2067 = vector.shape_cast %2064 : vector<8x128xf32> to vector<1x8x128xf32>
      tpu.vector_store %arg13[%c0_166, %c0_167, %c0_168], %2067 {strides = array<i32>} : memref<1x8x128xf32, #tpu.memory_space<vmem>>, vector<1x8x128xf32>,
    } else {
    }
    return
  }
  func.func @transform_0(%arg0: i32, %arg1: i32) -> i32 {
    %c0_i32 = arith.constant 0 : i32
    %c0_i32_0 = arith.constant 0 : i32
    return %c0_i32 : i32
  }
  func.func @transform_1(%arg0: i32, %arg1: i32) -> i32 {
    %c0_i32 = arith.constant 0 : i32
    %c0_i32_0 = arith.constant 0 : i32
    return %c0_i32 : i32
  }
  func.func @transform_2(%arg0: i32, %arg1: i32) -> i32 {
    %c0_i32 = arith.constant 0 : i32
    %c0_i32_0 = arith.constant 0 : i32
    return %c0_i32 : i32
  }
  func.func @transform_3(%arg0: i32, %arg1: i32) -> (i32, i32) {
    %c0_i32 = arith.constant 0 : i32
    %c0_i32_0 = arith.constant 0 : i32
    %c0_i32_1 = arith.constant 0 : i32
    return %c0_i32, %c0_i32_0 : i32, i32
  }
  func.func @transform_4(%arg0: i32, %arg1: i32) -> i32 {
    %c0_i32 = arith.constant 0 : i32
    %c0_i32_0 = arith.constant 0 : i32
    return %c0_i32 : i32
  }
  func.func @transform_5(%arg0: i32, %arg1: i32) -> i32 {
    %c0_i32 = arith.constant 0 : i32
    %c0_i32_0 = arith.constant 0 : i32
    return %c0_i32 : i32
  }
  func.func @transform_6(%arg0: i32, %arg1: i32) -> (i32, i32) {
    %c0_i32 = arith.constant 0 : i32
    %c0_i32_0 = arith.constant 0 : i32
    %c0_i32_1 = arith.constant 0 : i32
    return %c0_i32, %c0_i32_0 : i32, i32
  }
  func.func @transform_7(%arg0: i32, %arg1: i32) -> (i32, i32) {
    %c0_i32 = arith.constant 0 : i32
    %c0_i32_0 = arith.constant 0 : i32
    %c0_i32_1 = arith.constant 0 : i32
    return %c0_i32, %c0_i32_0 : i32, i32
  }
  func.func @transform_8(%arg0: i32, %arg1: i32) -> (i32, i32) {
    %c0_i32 = arith.constant 0 : i32
    %c0_i32_0 = arith.constant 0 : i32
    %c0_i32_1 = arith.constant 0 : i32
    return %c0_i32, %c0_i32_0 : i32, i32
  }
  func.func @transform_9(%arg0: i32, %arg1: i32) -> (i32, i32, i32, i32) {
    %c0_i32 = arith.constant 0 : i32
    %c0_i32_0 = arith.constant 0 : i32
    %c0_i32_1 = arith.constant 0 : i32
    return %arg0, %c0_i32, %arg1, %c0_i32_0 : i32, i32, i32, i32
  }
  func.func @transform_10(%arg0: i32, %arg1: i32) -> (i32, i32, i32, i32) {
    %c0_i32 = arith.constant 0 : i32
    %c0_i32_0 = arith.constant 0 : i32
    %c0_i32_1 = arith.constant 0 : i32
    return %arg0, %c0_i32, %arg1, %c0_i32_0 : i32, i32, i32, i32
  }
  func.func @transform_11(%arg0: i32, %arg1: i32) -> (i32, i32, i32) {
    %c0_i32 = arith.constant 0 : i32
    %c0_i32_0 = arith.constant 0 : i32
    %c0_i32_1 = arith.constant 0 : i32
    return %arg0, %c0_i32, %c0_i32_0 : i32, i32, i32
  }
}

</mosaic_0001>

<llo_original>
// kernel: diffusion_loss_forward.1
$region0: #{diffusion_loss_forward.1}
  #allocation0 [shape = 'u32[]', space=smem, size = 0x4, offset = 0x4, fixed_abs, tag = 'smem constant byte address 0x4 - core index']
  #allocation1 [shape = 'u32[144,128]{1,0:T(1,128)}', space=vmem, size = 0x12000, scoped, tag = 'internal scratch']
  #allocation2 [shape = 'f32[8,128]{1,0:T(8,128)}', space=vmem, size = 0x1000, scoped, tag = 'scratch operand']
  %s0 = inlined_call_operand.vmem [shape: f32[2], index: 0, kind: input, shape index: {}]
  %s1 = inlined_call_operand.vmem [shape: f32[25], index: 1, kind: input, shape index: {}]
  %s2 = inlined_call_operand.vmem [shape: f32[25], index: 2, kind: input, shape index: {}]
  %s3 = inlined_call_operand.vmem [shape: f32[2,4], index: 3, kind: input, shape index: {}]
  %s4 = inlined_call_operand.vmem [shape: f32[4], index: 4, kind: input, shape index: {}]
  %s5 = inlined_call_operand.vmem [shape: f32[3], index: 5, kind: input, shape index: {}]
  %s6 = inlined_call_operand.vmem [shape: f32[4,3], index: 6, kind: input, shape index: {}]
  %s7 = inlined_call_operand.vmem [shape: f32[4,4], index: 7, kind: input, shape index: {}]
  %s8 = inlined_call_operand.vmem [shape: f32[3,4], index: 8, kind: input, shape index: {}]
  %s9 = inlined_call_operand.vmem [shape: f32[2,3,8,128], index: 9, kind: input, shape index: {}]
  %s10 = inlined_call_operand.vmem [shape: f32[2,4,8,128], index: 10, kind: input, shape index: {}]
  %s11 = inlined_call_operand.vmem [shape: f32[2,8,128], index: 11, kind: output, shape index: {}]
  %s12 = sld [smem:[#allocation0]]
  $region129: #{diffusion_loss_forward.1} parent=0
    _
  %s14 = ssub.s32 1, %s12
  %s15 = scalar_select 0, %s14, %s12
  $region1: #{diffusion_loss_forward.1} parent=0
    #allocation3 [shape = 'u8[512]{0}', space=smem, size = 0x200, scoped, tag = 'input window, operand 0, single buffered']
    #allocation4 [shape = 's32[2]{0}', space=sflag, size = 0x8, scoped, tag = 'scoped memory for diffusion_loss_forward.1']
    #allocation5 [shape = 'u8[512]{0}', space=smem, size = 0x200, scoped, tag = 'input window, operand 1, single buffered']
    #allocation6 [shape = 's32[1]{0}', space=sflag, size = 0x4, scoped, tag = 'scoped memory for diffusion_loss_forward.1']
    #allocation7 [shape = 'u8[512]{0}', space=smem, size = 0x200, scoped, tag = 'input window, operand 2, single buffered']
    #allocation8 [shape = 'u8[1024]{0}', space=smem, size = 0x400, scoped, tag = 'input window, operand 3, single buffered']
    #allocation9 [shape = 's32[1]{0}', space=sflag, size = 0x4, scoped, tag = 'scoped memory for diffusion_loss_forward.1']
    #allocation10 [shape = 'u8[512]{0}', space=smem, size = 0x200, scoped, tag = 'input window, operand 4, single buffered']
    #allocation11 [shape = 'u8[512]{0}', space=smem, size = 0x200, scoped, tag = 'input window, operand 5, single buffered']
    #allocation12 [shape = 's32[1]{0}', space=sflag, size = 0x4, scoped, tag = 'scoped memory for diffusion_loss_forward.1']
    #allocation13 [shape = 'u8[2048]{0}', space=smem, size = 0x800, scoped, tag = 'input window, operand 6, single buffered']
    #allocation14 [shape = 'u8[2048]{0}', space=smem, size = 0x800, scoped, tag = 'input window, operand 7, single buffered']
    #allocation15 [shape = 's32[1]{0}', space=sflag, size = 0x4, scoped, tag = 'scoped memory for diffusion_loss_forward.1']
    #allocation16 [shape = 'u8[2048]{0}', space=smem, size = 0x800, scoped, tag = 'input window, operand 8, single buffered']
    %16 = vsyncpa [#allocation4], 0
    %17 = vsyncpa [#allocation6], 0
    %18 = vsyncpa [#allocation9], 0
    %19 = vsyncpa [#allocation12], 0
    %20 = vsyncpa [#allocation15], 0
    loop: start=0, step=1, limit=4
    $region2: #{diffusion_loss_forward.1} parent=1 // loop_pre_header
      _
    $region3: #{diffusion_loss_forward.1} parent=1 // loop_header
      %s22 = sphi 0, %s26
      %p23 = scmp.ge.s32.totalorder %s22, 4
      %s29 = sphi 0, %s41
      %s30 = sphi 0, %s37
      %s31 = sphi 0, %s29
      %s32 = sphi 0, %s30
      %s33 = sphi 0, %s31
      %s34 = sphi 0, %s32
      %s42 = sphi 0, %s42
      %s44 = sphi 0, %s42
      %s45 = sphi 0, %s44
      %s59 = sphi 0, %s45
      %s63 = sphi 0, %s63
      %s65 = sphi 0, %s63
      %s66 = sphi 0, %s65
      %s80 = sphi 0, %s66
      %s84 = sphi 0, %s84
      %s86 = sphi 0, %s84
      %s87 = sphi 0, %s86
      %s101 = sphi 0, %s87
      %s105 = sphi 0, %s105
      %s107 = sphi 0, %s105
      %s108 = sphi 0, %s107
      %s122 = sphi 0, %s108
      %s126 = sphi 0, %s126
      %s128 = sphi 0, %s126
      %s129 = sphi 0, %s128
      %s143 = sphi 0, %s129
      %s147 = sphi 0, %s147
      %s149 = sphi 0, %s147
      %s150 = sphi 0, %s149
      %s164 = sphi 0, %s150
      %s168 = sphi 0, %s168
      %s170 = sphi 0, %s168
      %s171 = sphi 0, %s170
      %s185 = sphi 0, %s171
      %s189 = sphi 0, %s189
      %s191 = sphi 0, %s189
      %s192 = sphi 0, %s191
      %s206 = sphi 0, %s192
      %s210 = sphi 0, %s210
      %s212 = sphi 0, %s210
      %s213 = sphi 0, %s212
      %s227 = sphi 0, %s213
      %s235 = sphi 0, %s237
      %s238 = sphi 0, %s235
      %s239 = sphi 0, %s238
      %s255 = sphi 0, %s239
      %s263 = sphi 0, %s265
      %s266 = sphi 0, %s263
      %s267 = sphi 0, %s266
      %s283 = sphi 0, %s267
      %s289 = sphi 0, %s291
      %s292 = sphi 0, %s289
      %s293 = sphi 0, %s292
      %s309 = sphi 0, %s293
    $region4: #{diffusion_loss_forward.1} parent=1 // loop_header_branch
      %25 = sbr.rel (%p23) target = $region8
    $region5: #{diffusion_loss_forward.1} parent=1 // loop_body
      %s27 = ssub.s32 %s22, 1
      %s28 = ssub.s32 %s22, 2
      %s35 = sadd.s32 1, %s30
      %p36 = scmp.ge.s32.totalorder %s35, 1
      %s37 = scalar_select %p36, 0, %s35
      %s38 = sadd.s32 1, %s29
      %s39 = scalar_select %p36, %s38, %s29
      %p40 = scmp.ge.s32.totalorder %s39, 2
      %s41 = scalar_select %p40, 0, %s39
      %s43 = sadd.s32 %s42, 1
      %p46 = scmp.eq.s32.totalorder %s22, 1
      %p47 = scmp.ne.s32.totalorder %s42, %s44
      %p48 = scmp.eq.s32.totalorder %s22, 0
      %p49 = por %p47, %p48
      %p50 = scmp.ne.s32.totalorder %s42, %s44
      %p51 = scmp.eq.s32.totalorder %s27, 1
      %p52 = por %p50, %p51
      %p53 = scmp.ne.s32.totalorder %s44, %s45
      %p54 = scmp.eq.s32.totalorder %s27, 0
      %p55 = por %p53, %p54
      %p56 = scmp.ne.s32.totalorder %s44, %s45
      %p57 = scmp.eq.s32.totalorder %s28, 1
      %p58 = por %p56, %p57
      %p60 = scmp.ne.s32.totalorder %s45, %s59
      %p61 = scmp.eq.s32.totalorder %s28, 0
      %p62 = por %p60, %p61
      %s64 = sadd.s32 %s63, 1
      %p67 = scmp.eq.s32.totalorder %s22, 1
      %p68 = scmp.ne.s32.totalorder %s63, %s65
      %p69 = scmp.eq.s32.totalorder %s22, 0
      %p70 = por %p68, %p69
      %p71 = scmp.ne.s32.totalorder %s63, %s65
      %p72 = scmp.eq.s32.totalorder %s27, 1
      %p73 = por %p71, %p72
      %p74 = scmp.ne.s32.totalorder %s65, %s66
      %p75 = scmp.eq.s32.totalorder %s27, 0
      %p76 = por %p74, %p75
      %p77 = scmp.ne.s32.totalorder %s65, %s66
      %p78 = scmp.eq.s32.totalorder %s28, 1
      %p79 = por %p77, %p78
      %p81 = scmp.ne.s32.totalorder %s66, %s80
      %p82 = scmp.eq.s32.totalorder %s28, 0
      %p83 = por %p81, %p82
      %s85 = sadd.s32 %s84, 1
      %p88 = scmp.eq.s32.totalorder %s22, 1
      %p89 = scmp.ne.s32.totalorder %s84, %s86
      %p90 = scmp.eq.s32.totalorder %s22, 0
      %p91 = por %p89, %p90
      %p92 = scmp.ne.s32.totalorder %s84, %s86
      %p93 = scmp.eq.s32.totalorder %s27, 1
      %p94 = por %p92, %p93
      %p95 = scmp.ne.s32.totalorder %s86, %s87
      %p96 = scmp.eq.s32.totalorder %s27, 0
      %p97 = por %p95, %p96
      %p98 = scmp.ne.s32.totalorder %s86, %s87
      %p99 = scmp.eq.s32.totalorder %s28, 1
      %p100 = por %p98, %p99
      %p102 = scmp.ne.s32.totalorder %s87, %s101
      %p103 = scmp.eq.s32.totalorder %s28, 0
      %p104 = por %p102, %p103
      %s106 = sadd.s32 %s105, 1
      %p109 = scmp.eq.s32.totalorder %s22, 1
      %p110 = scmp.ne.s32.totalorder %s105, %s107
      %p111 = scmp.eq.s32.totalorder %s22, 0
      %p112 = por %p110, %p111
      %p113 = scmp.ne.s32.totalorder %s105, %s107
      %p114 = scmp.eq.s32.totalorder %s27, 1
      %p115 = por %p113, %p114
      %p116 = scmp.ne.s32.totalorder %s107, %s108
      %p117 = scmp.eq.s32.totalorder %s27, 0
      %p118 = por %p116, %p117
      %p119 = scmp.ne.s32.totalorder %s107, %s108
      %p120 = scmp.eq.s32.totalorder %s28, 1
      %p121 = por %p119, %p120
      %p123 = scmp.ne.s32.totalorder %s108, %s122
      %p124 = scmp.eq.s32.totalorder %s28, 0
      %p125 = por %p123, %p124
      %s127 = sadd.s32 %s126, 1
      %p130 = scmp.eq.s32.totalorder %s22, 1
      %p131 = scmp.ne.s32.totalorder %s126, %s128
      %p132 = scmp.eq.s32.totalorder %s22, 0
      %p133 = por %p131, %p132
      %p134 = scmp.ne.s32.totalorder %s126, %s128
      %p135 = scmp.eq.s32.totalorder %s27, 1
      %p136 = por %p134, %p135
      %p137 = scmp.ne.s32.totalorder %s128, %s129
      %p138 = scmp.eq.s32.totalorder %s27, 0
      %p139 = por %p137, %p138
      %p140 = scmp.ne.s32.totalorder %s128, %s129
      %p141 = scmp.eq.s32.totalorder %s28, 1
      %p142 = por %p140, %p141
      %p144 = scmp.ne.s32.totalorder %s129, %s143
      %p145 = scmp.eq.s32.totalorder %s28, 0
      %p146 = por %p144, %p145
      %s148 = sadd.s32 %s147, 1
      %p151 = scmp.eq.s32.totalorder %s22, 1
      %p152 = scmp.ne.s32.totalorder %s147, %s149
      %p153 = scmp.eq.s32.totalorder %s22, 0
      %p154 = por %p152, %p153
      %p155 = scmp.ne.s32.totalorder %s147, %s149
      %p156 = scmp.eq.s32.totalorder %s27, 1
      %p157 = por %p155, %p156
      %p158 = scmp.ne.s32.totalorder %s149, %s150
      %p159 = scmp.eq.s32.totalorder %s27, 0
      %p160 = por %p158, %p159
      %p161 = scmp.ne.s32.totalorder %s149, %s150
      %p162 = scmp.eq.s32.totalorder %s28, 1
      %p163 = por %p161, %p162
      %p165 = scmp.ne.s32.totalorder %s150, %s164
      %p166 = scmp.eq.s32.totalorder %s28, 0
      %p167 = por %p165, %p166
      %s169 = sadd.s32 %s168, 1
      %p172 = scmp.eq.s32.totalorder %s22, 1
      %p173 = scmp.ne.s32.totalorder %s168, %s170
      %p174 = scmp.eq.s32.totalorder %s22, 0
      %p175 = por %p173, %p174
      %p176 = scmp.ne.s32.totalorder %s168, %s170
      %p177 = scmp.eq.s32.totalorder %s27, 1
      %p178 = por %p176, %p177
      %p179 = scmp.ne.s32.totalorder %s170, %s171
      %p180 = scmp.eq.s32.totalorder %s27, 0
      %p181 = por %p179, %p180
      %p182 = scmp.ne.s32.totalorder %s170, %s171
      %p183 = scmp.eq.s32.totalorder %s28, 1
      %p184 = por %p182, %p183
      %p186 = scmp.ne.s32.totalorder %s171, %s185
      %p187 = scmp.eq.s32.totalorder %s28, 0
      %p188 = por %p186, %p187
      %s190 = sadd.s32 %s189, 1
      %p193 = scmp.eq.s32.totalorder %s22, 1
      %p194 = scmp.ne.s32.totalorder %s189, %s191
      %p195 = scmp.eq.s32.totalorder %s22, 0
      %p196 = por %p194, %p195
      %p197 = scmp.ne.s32.totalorder %s189, %s191
      %p198 = scmp.eq.s32.totalorder %s27, 1
      %p199 = por %p197, %p198
      %p200 = scmp.ne.s32.totalorder %s191, %s192
      %p201 = scmp.eq.s32.totalorder %s27, 0
      %p202 = por %p200, %p201
      %p203 = scmp.ne.s32.totalorder %s191, %s192
      %p204 = scmp.eq.s32.totalorder %s28, 1
      %p205 = por %p203, %p204
      %p207 = scmp.ne.s32.totalorder %s192, %s206
      %p208 = scmp.eq.s32.totalorder %s28, 0
      %p209 = por %p207, %p208
      %s211 = sadd.s32 %s210, 1
      %p214 = scmp.eq.s32.totalorder %s22, 1
      %p215 = scmp.ne.s32.totalorder %s210, %s212
      %p216 = scmp.eq.s32.totalorder %s22, 0
      %p217 = por %p215, %p216
      %p218 = scmp.ne.s32.totalorder %s210, %s212
      %p219 = scmp.eq.s32.totalorder %s27, 1
      %p220 = por %p218, %p219
      %p221 = scmp.ne.s32.totalorder %s212, %s213
      %p222 = scmp.eq.s32.totalorder %s27, 0
      %p223 = por %p221, %p222
      %p224 = scmp.ne.s32.totalorder %s212, %s213
      %p225 = scmp.eq.s32.totalorder %s28, 1
      %p226 = por %p224, %p225
      %p228 = scmp.ne.s32.totalorder %s213, %s227
      %p229 = scmp.eq.s32.totalorder %s28, 0
      %p230 = por %p228, %p229
      %s231 = ssub.s32 %s29, %s41
      %s232 = ssub.s32 %s30, %s37
      %s233 = sor.u32 %s231, %s232
      %p234 = scmp.eq.s32.totalorder %s233, 0
      %s236 = sadd.s32 %s235, 1
      %s237 = scalar_select %p234, %s235, %s236
      %p240 = pneg %p234
      %p241 = scmp.eq.s32.totalorder %s22, 1
      %p242 = por %p240, %p241
      %p243 = scmp.ne.s32.totalorder %s235, %s238
      %p244 = scmp.eq.s32.totalorder %s22, 0
      %p245 = por %p243, %p244
      %p246 = scmp.ne.s32.totalorder %s235, %s238
      %p247 = scmp.eq.s32.totalorder %s27, 1
      %p248 = por %p246, %p247
      %p249 = scmp.ne.s32.totalorder %s238, %s239
      %p250 = scmp.eq.s32.totalorder %s27, 0
      %p251 = por %p249, %p250
      %p252 = scmp.ne.s32.totalorder %s238, %s239
      %p253 = scmp.eq.s32.totalorder %s28, 1
      %p254 = por %p252, %p253
      %p256 = scmp.ne.s32.totalorder %s239, %s255
      %p257 = scmp.eq.s32.totalorder %s28, 0
      %p258 = por %p256, %p257
      %s259 = ssub.s32 %s29, %s41
      %s260 = ssub.s32 %s30, %s37
      %s261 = sor.u32 %s259, %s260
      %p262 = scmp.eq.s32.totalorder %s261, 0
      %s264 = sadd.s32 %s263, 1
      %s265 = scalar_select %p262, %s263, %s264
      %p268 = pneg %p262
      %p269 = scmp.eq.s32.totalorder %s22, 1
      %p270 = por %p268, %p269
      %p271 = scmp.ne.s32.totalorder %s263, %s266
      %p272 = scmp.eq.s32.totalorder %s22, 0
      %p273 = por %p271, %p272
      %p274 = scmp.ne.s32.totalorder %s263, %s266
      %p275 = scmp.eq.s32.totalorder %s27, 1
      %p276 = por %p274, %p275
      %p277 = scmp.ne.s32.totalorder %s266, %s267
      %p278 = scmp.eq.s32.totalorder %s27, 0
      %p279 = por %p277, %p278
      %p280 = scmp.ne.s32.totalorder %s266, %s267
      %p281 = scmp.eq.s32.totalorder %s28, 1
      %p282 = por %p280, %p281
      %p284 = scmp.ne.s32.totalorder %s267, %s283
      %p285 = scmp.eq.s32.totalorder %s28, 0
      %p286 = por %p284, %p285
      %s287 = ssub.s32 %s29, %s41
      %p288 = scmp.eq.s32.totalorder %s287, 0
      %s290 = sadd.s32 %s289, 1
      %s291 = scalar_select %p288, %s289, %s290
      %p294 = pneg %p288
      %p295 = scmp.eq.s32.totalorder %s22, 1
      %p296 = por %p294, %p295
      %p297 = scmp.ne.s32.totalorder %s289, %s292
      %p298 = scmp.eq.s32.totalorder %s22, 0
      %p299 = por %p297, %p298
      %p300 = scmp.ne.s32.totalorder %s289, %s292
      %p301 = scmp.eq.s32.totalorder %s27, 1
      %p302 = por %p300, %p301
      %p303 = scmp.ne.s32.totalorder %s292, %s293
      %p304 = scmp.eq.s32.totalorder %s27, 0
      %p305 = por %p303, %p304
      %p306 = scmp.ne.s32.totalorder %s292, %s293
      %p307 = scmp.eq.s32.totalorder %s28, 1
      %p308 = por %p306, %p307
      %p310 = scmp.ne.s32.totalorder %s293, %s309
      %p311 = scmp.eq.s32.totalorder %s28, 0
      %p312 = por %p310, %p311
      %p313 = scmp.le.s32.totalorder 1, %s22
      %p314 = scmp.lt.s32.totalorder %s22, 3
      %p315 = pnand %p313, %p314
      %p316 = pneg %p315
      // Predicated region
      $region9: #{diffusion_loss_forward.1} parent=5 // pred_check
        _
      $region10: #{diffusion_loss_forward.1} parent=5 // pred_check_branch
        %318 = sbr.rel (%p315) target = $region12
      $region11: #{diffusion_loss_forward.1} parent=5 // pred_region
        %s319 = ssub.s32 %s22, 1
        // Predicated region
        $region13: #{diffusion_loss_forward.1} parent=11 // pred_check
          %p320 = pneg %p55
        $region14: #{diffusion_loss_forward.1} parent=11 // pred_check_branch
          %322 = sbr.rel (%p320) target = $region16
        $region15: #{diffusion_loss_forward.1} parent=11 // pred_region
          %s324 = ssub.s32 16, 16
          %325 = vsyncadd [#allocation4], %s324
          %s327 = sshll.u32 %s0, 4
          %s328 = int_to_ptr.vmem [resolvable:$true] %s327
          %330 = dma.vmem_to_smem %s328, 16, [#allocation3], [#allocation4]
        $region16: #{diffusion_loss_forward.1} parent=11 // pred_fallthru
          _
        // Predicated region
        $region17: #{diffusion_loss_forward.1} parent=11 // pred_check
          %p331 = pneg %p76
        $region18: #{diffusion_loss_forward.1} parent=11 // pred_check_branch
          %333 = sbr.rel (%p331) target = $region20
        $region19: #{diffusion_loss_forward.1} parent=11 // pred_region
          %s335 = ssub.s32 16, 16
          %336 = vsyncadd [#allocation6], %s335
          %s338 = sshll.u32 %s1, 4
          %s339 = int_to_ptr.vmem [resolvable:$true] %s338
          %341 = dma.vmem_to_smem %s339, 16, [#allocation5], [#allocation6]
        $region20: #{diffusion_loss_forward.1} parent=11 // pred_fallthru
          _
        // Predicated region
        $region21: #{diffusion_loss_forward.1} parent=11 // pred_check
          %p342 = pneg %p97
        $region22: #{diffusion_loss_forward.1} parent=11 // pred_check_branch
          %344 = sbr.rel (%p342) target = $region24
        $region23: #{diffusion_loss_forward.1} parent=11 // pred_region
          %s346 = ssub.s32 16, 16
          %347 = vsyncadd [#allocation6], %s346
          %s349 = sshll.u32 %s2, 4
          %s350 = int_to_ptr.vmem [resolvable:$true] %s349
          %352 = dma.vmem_to_smem %s350, 16, [#allocation7], [#allocation6]
        $region24: #{diffusion_loss_forward.1} parent=11 // pred_fallthru
          _
        // Predicated region
        $region25: #{diffusion_loss_forward.1} parent=11 // pred_check
          %p353 = pneg %p118
        $region26: #{diffusion_loss_forward.1} parent=11 // pred_check_branch
          %355 = sbr.rel (%p353) target = $region28
        $region27: #{diffusion_loss_forward.1} parent=11 // pred_region
          %s357 = ssub.s32 32, 32
          %358 = vsyncadd [#allocation9], %s357
          %s360 = sshll.u32 %s3, 4
          %s361 = int_to_ptr.vmem [resolvable:$true] %s360
          %363 = dma.vmem_to_smem %s361, 32, [#allocation8], [#allocation9]
        $region28: #{diffusion_loss_forward.1} parent=11 // pred_fallthru
          _
        // Predicated region
        $region29: #{diffusion_loss_forward.1} parent=11 // pred_check
          %p364 = pneg %p139
        $region30: #{diffusion_loss_forward.1} parent=11 // pred_check_branch
          %366 = sbr.rel (%p364) target = $region32
        $region31: #{diffusion_loss_forward.1} parent=11 // pred_region
          %s368 = ssub.s32 16, 16
          %369 = vsyncadd [#allocation9], %s368
          %s371 = sshll.u32 %s4, 4
          %s372 = int_to_ptr.vmem [resolvable:$true] %s371
          %374 = dma.vmem_to_smem %s372, 16, [#allocation10], [#allocation9]
        $region32: #{diffusion_loss_forward.1} parent=11 // pred_fallthru
          _
        // Predicated region
        $region33: #{diffusion_loss_forward.1} parent=11 // pred_check
          %p375 = pneg %p160
        $region34: #{diffusion_loss_forward.1} parent=11 // pred_check_branch
          %377 = sbr.rel (%p375) target = $region36
        $region35: #{diffusion_loss_forward.1} parent=11 // pred_region
          %s379 = ssub.s32 16, 16
          %380 = vsyncadd [#allocation12], %s379
          %s382 = sshll.u32 %s5, 4
          %s383 = int_to_ptr.vmem [resolvable:$true] %s382
          %385 = dma.vmem_to_smem %s383, 16, [#allocation11], [#allocation12]
        $region36: #{diffusion_loss_forward.1} parent=11 // pred_fallthru
          _
        // Predicated region
        $region37: #{diffusion_loss_forward.1} parent=11 // pred_check
          %p386 = pneg %p181
        $region38: #{diffusion_loss_forward.1} parent=11 // pred_check_branch
          %388 = sbr.rel (%p386) target = $region40
        $region39: #{diffusion_loss_forward.1} parent=11 // pred_region
          %s390 = ssub.s32 64, 64
          %391 = vsyncadd [#allocation12], %s390
          %s393 = sshll.u32 %s6, 4
          %s394 = int_to_ptr.vmem [resolvable:$true] %s393
          %396 = dma.vmem_to_smem %s394, 64, [#allocation13], [#allocation12]
        $region40: #{diffusion_loss_forward.1} parent=11 // pred_fallthru
          _
        // Predicated region
        $region41: #{diffusion_loss_forward.1} parent=11 // pred_check
          %p397 = pneg %p202
        $region42: #{diffusion_loss_forward.1} parent=11 // pred_check_branch
          %399 = sbr.rel (%p397) target = $region44
        $region43: #{diffusion_loss_forward.1} parent=11 // pred_region
          %s401 = ssub.s32 64, 64
          %402 = vsyncadd [#allocation15], %s401
          %s404 = sshll.u32 %s7, 4
          %s405 = int_to_ptr.vmem [resolvable:$true] %s404
          %407 = dma.vmem_to_smem %s405, 64, [#allocation14], [#allocation15]
        $region44: #{diffusion_loss_forward.1} parent=11 // pred_fallthru
          _
        // Predicated region
        $region45: #{diffusion_loss_forward.1} parent=11 // pred_check
          %p408 = pneg %p223
        $region46: #{diffusion_loss_forward.1} parent=11 // pred_check_branch
          %410 = sbr.rel (%p408) target = $region48
        $region47: #{diffusion_loss_forward.1} parent=11 // pred_region
          %s412 = ssub.s32 64, 64
          %413 = vsyncadd [#allocation15], %s412
          %s415 = sshll.u32 %s8, 4
          %s416 = int_to_ptr.vmem [resolvable:$true] %s415
          %418 = dma.vmem_to_smem %s416, 64, [#allocation16], [#allocation15]
        $region48: #{diffusion_loss_forward.1} parent=11 // pred_fallthru
          _
      $region12: #{diffusion_loss_forward.1} parent=5 // pred_fallthru
        _
      %p419 = scmp.lt.s32.totalorder %s22, 2
      // Predicated region
      $region49: #{diffusion_loss_forward.1} parent=5 // pred_check
        %p420 = pneg %p419
      $region50: #{diffusion_loss_forward.1} parent=5 // pred_check_branch
        %422 = sbr.rel (%p420) target = $region52
      $region51: #{diffusion_loss_forward.1} parent=5 // pred_region
        // Predicated region
        $region53: #{diffusion_loss_forward.1} parent=51 // pred_check
          %p423 = pneg %p245
        $region54: #{diffusion_loss_forward.1} parent=51 // pred_check_branch
          %425 = sbr.rel (%p423) target = $region56
        $region55: #{diffusion_loss_forward.1} parent=51 // pred_region
          %p426 = scmp.lt.s32.totalorder %s29, 1
          %s427 = scalar_select %p426, %s29, 1
          %p428 = scmp.lt.s32.totalorder %s30, 0
          %s429 = scalar_select %p428, %s30, 0
          %s430 = smul.addr %s427, 3
          %s431 = sadd.s32 %s429, %s430
          %s432 = smul.addr %s431, 8
          %s433 = scalar_lea.vmem %s9, %s432
        $region56: #{diffusion_loss_forward.1} parent=51 // pred_fallthru
          _
        // Predicated region
        $region57: #{diffusion_loss_forward.1} parent=51 // pred_check
          %p434 = pneg %p273
        $region58: #{diffusion_loss_forward.1} parent=51 // pred_check_branch
          %436 = sbr.rel (%p434) target = $region60
        $region59: #{diffusion_loss_forward.1} parent=51 // pred_region
          %p437 = scmp.lt.s32.totalorder %s29, 1
          %s438 = scalar_select %p437, %s29, 1
          %p439 = scmp.lt.s32.totalorder %s30, 0
          %s440 = scalar_select %p439, %s30, 0
          %s441 = smul.addr %s438, 4
          %s442 = sadd.s32 %s440, %s441
          %s443 = smul.addr %s442, 8
          %s444 = scalar_lea.vmem %s10, %s443
        $region60: #{diffusion_loss_forward.1} parent=51 // pred_fallthru
          _
      $region52: #{diffusion_loss_forward.1} parent=5 // pred_fallthru
        _
      %p445 = scmp.le.s32.totalorder 1, %s22
      %p446 = scmp.lt.s32.totalorder %s22, 3
      %p447 = pnand %p445, %p446
      %p448 = pneg %p447
      // Predicated region
      $region61: #{diffusion_loss_forward.1} parent=5 // pred_check
        _
      $region62: #{diffusion_loss_forward.1} parent=5 // pred_check_branch
        %450 = sbr.rel (%p447) target = $region64
      $region63: #{diffusion_loss_forward.1} parent=5 // pred_region
        %s451 = ssub.s32 %s22, 1
        // Predicated region
        $region65: #{diffusion_loss_forward.1} parent=63 // pred_check
          %p452 = pneg %p55
        $region66: #{diffusion_loss_forward.1} parent=63 // pred_check_branch
          %454 = sbr.rel (%p452) target = $region68
        $region67: #{diffusion_loss_forward.1} parent=63 // pred_region
          %455 = dma.done [#allocation4], 16
        $region68: #{diffusion_loss_forward.1} parent=63 // pred_fallthru
          _
        // Predicated region
        $region69: #{diffusion_loss_forward.1} parent=63 // pred_check
          %p456 = pneg %p76
        $region70: #{diffusion_loss_forward.1} parent=63 // pred_check_branch
          %458 = sbr.rel (%p456) target = $region72
        $region71: #{diffusion_loss_forward.1} parent=63 // pred_region
          %459 = dma.done [#allocation6], 16
        $region72: #{diffusion_loss_forward.1} parent=63 // pred_fallthru
          _
        // Predicated region
        $region73: #{diffusion_loss_forward.1} parent=63 // pred_check
          %p460 = pneg %p97
        $region74: #{diffusion_loss_forward.1} parent=63 // pred_check_branch
          %462 = sbr.rel (%p460) target = $region76
        $region75: #{diffusion_loss_forward.1} parent=63 // pred_region
          %463 = dma.done [#allocation6], 16
        $region76: #{diffusion_loss_forward.1} parent=63 // pred_fallthru
          _
        // Predicated region
        $region77: #{diffusion_loss_forward.1} parent=63 // pred_check
          %p464 = pneg %p118
        $region78: #{diffusion_loss_forward.1} parent=63 // pred_check_branch
          %466 = sbr.rel (%p464) target = $region80
        $region79: #{diffusion_loss_forward.1} parent=63 // pred_region
          %467 = dma.done [#allocation9], 32
        $region80: #{diffusion_loss_forward.1} parent=63 // pred_fallthru
          _
        // Predicated region
        $region81: #{diffusion_loss_forward.1} parent=63 // pred_check
          %p468 = pneg %p139
        $region82: #{diffusion_loss_forward.1} parent=63 // pred_check_branch
          %470 = sbr.rel (%p468) target = $region84
        $region83: #{diffusion_loss_forward.1} parent=63 // pred_region
          %471 = dma.done [#allocation9], 16
        $region84: #{diffusion_loss_forward.1} parent=63 // pred_fallthru
          _
        // Predicated region
        $region85: #{diffusion_loss_forward.1} parent=63 // pred_check
          %p472 = pneg %p160
        $region86: #{diffusion_loss_forward.1} parent=63 // pred_check_branch
          %474 = sbr.rel (%p472) target = $region88
        $region87: #{diffusion_loss_forward.1} parent=63 // pred_region
          %475 = dma.done [#allocation12], 16
        $region88: #{diffusion_loss_forward.1} parent=63 // pred_fallthru
          _
        // Predicated region
        $region89: #{diffusion_loss_forward.1} parent=63 // pred_check
          %p476 = pneg %p181
        $region90: #{diffusion_loss_forward.1} parent=63 // pred_check_branch
          %478 = sbr.rel (%p476) target = $region92
        $region91: #{diffusion_loss_forward.1} parent=63 // pred_region
          %479 = dma.done [#allocation12], 64
        $region92: #{diffusion_loss_forward.1} parent=63 // pred_fallthru
          _
        // Predicated region
        $region93: #{diffusion_loss_forward.1} parent=63 // pred_check
          %p480 = pneg %p202
        $region94: #{diffusion_loss_forward.1} parent=63 // pred_check_branch
          %482 = sbr.rel (%p480) target = $region96
        $region95: #{diffusion_loss_forward.1} parent=63 // pred_region
          %483 = dma.done [#allocation15], 64
        $region96: #{diffusion_loss_forward.1} parent=63 // pred_fallthru
          _
        // Predicated region
        $region97: #{diffusion_loss_forward.1} parent=63 // pred_check
          %p484 = pneg %p223
        $region98: #{diffusion_loss_forward.1} parent=63 // pred_check_branch
          %486 = sbr.rel (%p484) target = $region100
        $region99: #{diffusion_loss_forward.1} parent=63 // pred_region
          %487 = dma.done [#allocation15], 64
        $region100: #{diffusion_loss_forward.1} parent=63 // pred_fallthru
          _
        %488 = sfence
        %p489 = pneg %p55
        %p490 = pneg %p52
        %p491 = pneg %p76
        %p492 = pneg %p73
        %p493 = pneg %p97
        %p494 = pneg %p94
        %p495 = pneg %p118
        %p496 = pneg %p115
        %p497 = pneg %p139
        %p498 = pneg %p136
        %p499 = pneg %p160
        %p500 = pneg %p157
        %p501 = pneg %p181
        %p502 = pneg %p178
        %p503 = pneg %p202
        %p504 = pneg %p199
        %p505 = pneg %p223
        %p506 = pneg %p220
        %p507 = scmp.lt.s32.totalorder %s31, 1
        %s508 = scalar_select %p507, %s31, 1
        %p509 = scmp.lt.s32.totalorder %s32, 0
        %s510 = scalar_select %p509, %s32, 0
        %s511 = smul.addr %s508, 3
        %s512 = sadd.s32 %s510, %s511
        %s513 = smul.addr %s512, 8
        %s514 = scalar_lea.vmem %s9, %s513
        %p515 = pneg %p251
        %p516 = pneg %p248
        %p517 = scmp.lt.s32.totalorder %s31, 1
        %s518 = scalar_select %p517, %s31, 1
        %p519 = scmp.lt.s32.totalorder %s32, 0
        %s520 = scalar_select %p519, %s32, 0
        %s521 = smul.addr %s518, 4
        %s522 = sadd.s32 %s520, %s521
        %s523 = smul.addr %s522, 8
        %s524 = scalar_lea.vmem %s10, %s523
        %p525 = pneg %p279
        %p526 = pneg %p276
        %p527 = pneg %p305
        %p528 = pneg %p302
        %p529 = scmp.lt.s32.totalorder %s31, 1
        %s530 = scalar_select %p529, %s31, 1
        %s531 = smul.addr %s530, 8
        %s532 = scalar_lea.vmem %s11, %s531
        %p533 = scmp.lt.s32.totalorder %s31, 1
        %s534 = scalar_select %p533, %s31, 1
        %p535 = scmp.lt.s32.totalorder %s32, 0
        %s536 = scalar_select %p535, %s32, 0
        %s537 = smul.addr %s534, 3
        %s538 = sadd.s32 %s536, %s537
        %s539 = smul.addr %s538, 8
        %s540 = scalar_lea.vmem %s9, %s539
        %p541 = scmp.lt.s32.totalorder %s31, 1
        %s542 = scalar_select %p541, %s31, 1
        %p543 = scmp.lt.s32.totalorder %s32, 0
        %s544 = scalar_select %p543, %s32, 0
        %s545 = smul.addr %s542, 4
        %s546 = sadd.s32 %s544, %s545
        %s547 = smul.addr %s546, 8
        %s548 = scalar_lea.vmem %s10, %s547
        %p549 = scmp.lt.s32.totalorder %s31, 1
        %s550 = scalar_select %p549, %s31, 1
        %s551 = smul.addr %s550, 8
        %s552 = scalar_lea.vmem %s11, %s551
        %p553 = scmp.eq.s32.totalorder %s32, 0
        // Predicated region
        $region101: #{diffusion_loss_forward.1} parent=63 // pred_check
          %p554 = pneg %p553
        $region102: #{diffusion_loss_forward.1} parent=63 // pred_check_branch
          %556 = sbr.rel (%p554) target = $region104
        $region103: #{diffusion_loss_forward.1} parent=63 // pred_region
          %557 = vst [vmem:[#allocation2] sm:$0xff] 0.0
        $region104: #{diffusion_loss_forward.1} parent=63 // pred_fallthru
          _
        %s558 = sld [smem:[#allocation3]]
        %s559 = sld [smem:[#allocation3 + $0x1]]
        %s560 = smul.u32 %s31, 128
        %s561 = sld [smem:[#allocation8 + %s560]]
        %s562 = sadd.s32 %s560, 1
        %s563 = sld [smem:[#allocation8 + %s562]]
        %s564 = sadd.s32 %s560, 2
        %s565 = sld [smem:[#allocation8 + %s564]]
        %s566 = sadd.s32 %s560, 3
        %s567 = sld [smem:[#allocation8 + %s566]]
        %s568 = sld [smem:[#allocation14]]
        %s569 = sld [smem:[#allocation14 + $0x1]]
        %s570 = sld [smem:[#allocation14 + $0x2]]
        %s571 = sld [smem:[#allocation14 + $0x3]]
        %s572 = sld [smem:[#allocation14 + $0x80]]
        %s573 = sld [smem:[#allocation14 + $0x81]]
        %s574 = sld [smem:[#allocation14 + $0x82]]
        %s575 = sld [smem:[#allocation14 + $0x83]]
        %s576 = sld [smem:[#allocation14 + $0x100]]
        %s577 = sld [smem:[#allocation14 + $0x101]]
        %s578 = sld [smem:[#allocation14 + $0x102]]
        %s579 = sld [smem:[#allocation14 + $0x103]]
        %s580 = sld [smem:[#allocation14 + $0x180]]
        %s581 = sld [smem:[#allocation14 + $0x181]]
        %s582 = sld [smem:[#allocation14 + $0x182]]
        %s583 = sld [smem:[#allocation14 + $0x183]]
        %v584 = vld [vmem:[%s540] sm:$0xff]
        %s585 = scalar_lea.vmem %s540, 8
        %v586 = vld [vmem:[%s585] sm:$0xff]
        %s587 = scalar_lea.vmem %s540, 16
        %v588 = vld [vmem:[%s587] sm:$0xff]
        %s589 = sld [smem:[#allocation13]]
        %v590 = vstv %s589
        %v591 = vmul.f32 %v584, %v590
        %s592 = sld [smem:[#allocation13 + $0x1]]
        %v593 = vstv %s592
        %v594 = vmul.f32 %v586, %v593
        %v595 = vadd.f32 %v591, %v594
        %s596 = sld [smem:[#allocation13 + $0x2]]
        %v597 = vstv %s596
        %v598 = vmul.f32 %v588, %v597
        %v599 = vadd.f32 %v595, %v598
        %s600 = sld [smem:[#allocation10]]
        %v601 = vstv %s600
        %v602 = vadd.f32 %v599, %v601
        %v603 = vstv %s558
        %v604 = vmul.f32 %v603, %v602
        %v605 = vld [vmem:[%s548] sm:$0xff]
        %v606 = vstv %s559
        %v607 = vmul.f32 %v606, %v605
        %v608 = vadd.f32 %v604, %v607
        %s609 = sld [smem:[#allocation13 + $0x80]]
        %v610 = vstv %s609
        %v611 = vmul.f32 %v584, %v610
        %s612 = sld [smem:[#allocation13 + $0x81]]
        %v613 = vstv %s612
        %v614 = vmul.f32 %v586, %v613
        %v615 = vadd.f32 %v611, %v614
        %s616 = sld [smem:[#allocation13 + $0x82]]
        %v617 = vstv %s616
        %v618 = vmul.f32 %v588, %v617
        %v619 = vadd.f32 %v615, %v618
        %s620 = sld [smem:[#allocation10 + $0x1]]
        %v621 = vstv %s620
        %v622 = vadd.f32 %v619, %v621
        %v623 = vmul.f32 %v603, %v622
        %s624 = scalar_lea.vmem %s548, 8
        %v625 = vld [vmem:[%s624] sm:$0xff]
        %v626 = vmul.f32 %v606, %v625
        %v627 = vadd.f32 %v623, %v626
        %s628 = sld [smem:[#allocation13 + $0x100]]
        %v629 = vstv %s628
        %v630 = vmul.f32 %v584, %v629
        %s631 = sld [smem:[#allocation13 + $0x101]]
        %v632 = vstv %s631
        %v633 = vmul.f32 %v586, %v632
        %v634 = vadd.f32 %v630, %v633
        %s635 = sld [smem:[#allocation13 + $0x102]]
        %v636 = vstv %s635
        %v637 = vmul.f32 %v588, %v636
        %v638 = vadd.f32 %v634, %v637
        %s639 = sld [smem:[#allocation10 + $0x2]]
        %v640 = vstv %s639
        %v641 = vadd.f32 %v638, %v640
        %v642 = vmul.f32 %v603, %v641
        %s643 = scalar_lea.vmem %s548, 16
        %v644 = vld [vmem:[%s643] sm:$0xff]
        %v645 = vmul.f32 %v606, %v644
        %v646 = vadd.f32 %v642, %v645
        %s647 = sld [smem:[#allocation13 + $0x180]]
        %v648 = vstv %s647
        %v649 = vmul.f32 %v584, %v648
        %s650 = sld [smem:[#allocation13 + $0x181]]
        %v651 = vstv %s650
        %v652 = vmul.f32 %v586, %v651
        %v653 = vadd.f32 %v649, %v652
        %s654 = sld [smem:[#allocation13 + $0x182]]
        %v655 = vstv %s654
        %v656 = vmul.f32 %v588, %v655
        %v657 = vadd.f32 %v653, %v656
        %s658 = sld [smem:[#allocation10 + $0x3]]
        %v659 = vstv %s658
        %v660 = vadd.f32 %v657, %v659
        %v661 = vmul.f32 %v603, %v660
        %s662 = scalar_lea.vmem %s548, 24
        %v663 = vld [vmem:[%s662] sm:$0xff]
        %v664 = vmul.f32 %v606, %v663
        %v665 = vadd.f32 %v661, %v664
        %s666 = sld [smem:[#allocation5]]
        %s667 = sld [smem:[#allocation7]]
        %v668 = vstv %s568
        %v669 = vmul.f32 %v608, %v668
        %v670 = vstv %s569
        %v671 = vmul.f32 %v627, %v670
        %v672 = vadd.f32 %v669, %v671
        %v673 = vstv %s570
        %v674 = vmul.f32 %v646, %v673
        %v675 = vadd.f32 %v672, %v674
        %v676 = vstv %s571
        %v677 = vmul.f32 %v665, %v676
        %v678 = vadd.f32 %v675, %v677
        %v679 = vstv %s561
        %v680 = vadd.f32 %v678, %v679
        %v681 = vstv %s666
        %v682 = vmul.f32 %v681, %v608
        %v683 = vstv %s667
        %v684 = vmul.f32 %v683, %v680
        %v685 = vadd.f32 %v682, %v684
        %v686 = vstv %s572
        %v687 = vmul.f32 %v608, %v686
        %v688 = vstv %s573
        %v689 = vmul.f32 %v627, %v688
        %v690 = vadd.f32 %v687, %v689
        %v691 = vstv %s574
        %v692 = vmul.f32 %v646, %v691
        %v693 = vadd.f32 %v690, %v692
        %v694 = vstv %s575
        %v695 = vmul.f32 %v665, %v694
        %v696 = vadd.f32 %v693, %v695
        %v697 = vstv %s563
        %v698 = vadd.f32 %v696, %v697
        %v699 = vmul.f32 %v681, %v627
        %v700 = vmul.f32 %v683, %v698
        %v701 = vadd.f32 %v699, %v700
        %v702 = vstv %s576
        %v703 = vmul.f32 %v608, %v702
        %v704 = vstv %s577
        %v705 = vmul.f32 %v627, %v704
        %v706 = vadd.f32 %v703, %v705
        %v707 = vstv %s578
        %v708 = vmul.f32 %v646, %v707
        %v709 = vadd.f32 %v706, %v708
        %v710 = vstv %s579
        %v711 = vmul.f32 %v665, %v710
        %v712 = vadd.f32 %v709, %v711
        %v713 = vstv %s565
        %v714 = vadd.f32 %v712, %v713
        %v715 = vmul.f32 %v681, %v646
        %v716 = vmul.f32 %v683, %v714
        %v717 = vadd.f32 %v715, %v716
        %v718 = vstv %s580
        %v719 = vmul.f32 %v608, %v718
        %v720 = vstv %s581
        %v721 = vmul.f32 %v627, %v720
        %v722 = vadd.f32 %v719, %v721
        %v723 = vstv %s582
        %v724 = vmul.f32 %v646, %v723
        %v725 = vadd.f32 %v722, %v724
        %v726 = vstv %s583
        %v727 = vmul.f32 %v665, %v726
        %v728 = vadd.f32 %v725, %v727
        %v729 = vstv %s567
        %v730 = vadd.f32 %v728, %v729
        %v731 = vmul.f32 %v681, %v665
        %v732 = vmul.f32 %v683, %v730
        %v733 = vadd.f32 %v731, %v732
        %s734 = sld [smem:[#allocation5 + $0x1]]
        %s735 = sld [smem:[#allocation7 + $0x1]]
        %v736 = vmul.f32 %v685, %v668
        %v737 = vmul.f32 %v701, %v670
        %v738 = vadd.f32 %v736, %v737
        %v739 = vmul.f32 %v717, %v673
        %v740 = vadd.f32 %v738, %v739
        %v741 = vmul.f32 %v733, %v676
        %v742 = vadd.f32 %v740, %v741
        %v743 = vadd.f32 %v742, %v679
        %v744 = vstv %s734
        %v745 = vmul.f32 %v744, %v685
        %v746 = vstv %s735
        %v747 = vmul.f32 %v746, %v743
        %v748 = vadd.f32 %v745, %v747
        %v749 = vmul.f32 %v685, %v686
        %v750 = vmul.f32 %v701, %v688
        %v751 = vadd.f32 %v749, %v750
        %v752 = vmul.f32 %v717, %v691
        %v753 = vadd.f32 %v751, %v752
        %v754 = vmul.f32 %v733, %v694
        %v755 = vadd.f32 %v753, %v754
        %v756 = vadd.f32 %v755, %v697
        %v757 = vmul.f32 %v744, %v701
        %v758 = vmul.f32 %v746, %v756
        %v759 = vadd.f32 %v757, %v758
        %v760 = vmul.f32 %v685, %v702
        %v761 = vmul.f32 %v701, %v704
        %v762 = vadd.f32 %v760, %v761
        %v763 = vmul.f32 %v717, %v707
        %v764 = vadd.f32 %v762, %v763
        %v765 = vmul.f32 %v733, %v710
        %v766 = vadd.f32 %v764, %v765
        %v767 = vadd.f32 %v766, %v713
        %v768 = vmul.f32 %v744, %v717
        %v769 = vmul.f32 %v746, %v767
        %v770 = vadd.f32 %v768, %v769
        %v771 = vmul.f32 %v685, %v718
        %v772 = vmul.f32 %v701, %v720
        %v773 = vadd.f32 %v771, %v772
        %v774 = vmul.f32 %v717, %v723
        %v775 = vadd.f32 %v773, %v774
        %v776 = vmul.f32 %v733, %v726
        %v777 = vadd.f32 %v775, %v776
        %v778 = vadd.f32 %v777, %v729
        %v779 = vmul.f32 %v744, %v733
        %v780 = vmul.f32 %v746, %v778
        %v781 = vadd.f32 %v779, %v780
        %s782 = sld [smem:[#allocation5 + $0x2]]
        %s783 = sld [smem:[#allocation7 + $0x2]]
        %v784 = vmul.f32 %v748, %v668
        %v785 = vmul.f32 %v759, %v670
        %v786 = vadd.f32 %v784, %v785
        %v787 = vmul.f32 %v770, %v673
        %v788 = vadd.f32 %v786, %v787
        %v789 = vmul.f32 %v781, %v676
        %v790 = vadd.f32 %v788, %v789
        %v791 = vadd.f32 %v790, %v679
        %v792 = vstv %s782
        %v793 = vmul.f32 %v792, %v748
        %v794 = vstv %s783
        %v795 = vmul.f32 %v794, %v791
        %v796 = vadd.f32 %v793, %v795
        %v797 = vmul.f32 %v748, %v686
        %v798 = vmul.f32 %v759, %v688
        %v799 = vadd.f32 %v797, %v798
        %v800 = vmul.f32 %v770, %v691
        %v801 = vadd.f32 %v799, %v800
        %v802 = vmul.f32 %v781, %v694
        %v803 = vadd.f32 %v801, %v802
        %v804 = vadd.f32 %v803, %v697
        %v805 = vmul.f32 %v792, %v759
        %v806 = vmul.f32 %v794, %v804
        %v807 = vadd.f32 %v805, %v806
        %v808 = vmul.f32 %v748, %v702
        %v809 = vmul.f32 %v759, %v704
        %v810 = vadd.f32 %v808, %v809
        %v811 = vmul.f32 %v770, %v707
        %v812 = vadd.f32 %v810, %v811
        %v813 = vmul.f32 %v781, %v710
        %v814 = vadd.f32 %v812, %v813
        %v815 = vadd.f32 %v814, %v713
        %v816 = vmul.f32 %v792, %v770
        %v817 = vmul.f32 %v794, %v815
        %v818 = vadd.f32 %v816, %v817
        %v819 = vmul.f32 %v748, %v718
        %v820 = vmul.f32 %v759, %v720
        %v821 = vadd.f32 %v819, %v820
        %v822 = vmul.f32 %v770, %v723
        %v823 = vadd.f32 %v821, %v822
        %v824 = vmul.f32 %v781, %v726
        %v825 = vadd.f32 %v823, %v824
        %v826 = vadd.f32 %v825, %v729
        %v827 = vmul.f32 %v792, %v781
        %v828 = vmul.f32 %v794, %v826
        %v829 = vadd.f32 %v827, %v828
        %s830 = sld [smem:[#allocation5 + $0x3]]
        %s831 = sld [smem:[#allocation7 + $0x3]]
        %v832 = vmul.f32 %v796, %v668
        %v833 = vmul.f32 %v807, %v670
        %v834 = vadd.f32 %v832, %v833
        %v835 = vmul.f32 %v818, %v673
        %v836 = vadd.f32 %v834, %v835
        %v837 = vmul.f32 %v829, %v676
        %v838 = vadd.f32 %v836, %v837
        %v839 = vadd.f32 %v838, %v679
        %v840 = vstv %s830
        %v841 = vmul.f32 %v840, %v796
        %v842 = vstv %s831
        %v843 = vmul.f32 %v842, %v839
        %v844 = vadd.f32 %v841, %v843
        %v845 = vmul.f32 %v796, %v686
        %v846 = vmul.f32 %v807, %v688
        %v847 = vadd.f32 %v845, %v846
        %v848 = vmul.f32 %v818, %v691
        %v849 = vadd.f32 %v847, %v848
        %v850 = vmul.f32 %v829, %v694
        %v851 = vadd.f32 %v849, %v850
        %v852 = vadd.f32 %v851, %v697
        %v853 = vmul.f32 %v840, %v807
        %v854 = vmul.f32 %v842, %v852
        %v855 = vadd.f32 %v853, %v854
        %v856 = vmul.f32 %v796, %v702
        %v857 = vmul.f32 %v807, %v704
        %v858 = vadd.f32 %v856, %v857
        %v859 = vmul.f32 %v818, %v707
        %v860 = vadd.f32 %v858, %v859
        %v861 = vmul.f32 %v829, %v710
        %v862 = vadd.f32 %v860, %v861
        %v863 = vadd.f32 %v862, %v713
        %v864 = vmul.f32 %v840, %v818
        %v865 = vmul.f32 %v842, %v863
        %v866 = vadd.f32 %v864, %v865
        %v867 = vmul.f32 %v796, %v718
        %v868 = vmul.f32 %v807, %v720
        %v869 = vadd.f32 %v867, %v868
        %v870 = vmul.f32 %v818, %v723
        %v871 = vadd.f32 %v869, %v870
        %v872 = vmul.f32 %v829, %v726
        %v873 = vadd.f32 %v871, %v872
        %v874 = vadd.f32 %v873, %v729
        %v875 = vmul.f32 %v840, %v829
        %v876 = vmul.f32 %v842, %v874
        %v877 = vadd.f32 %v875, %v876
        %s878 = sld [smem:[#allocation5 + $0x4]]
        %s879 = sld [smem:[#allocation7 + $0x4]]
        %v880 = vmul.f32 %v844, %v668
        %v881 = vmul.f32 %v855, %v670
        %v882 = vadd.f32 %v880, %v881
        %v883 = vmul.f32 %v866, %v673
        %v884 = vadd.f32 %v882, %v883
        %v885 = vmul.f32 %v877, %v676
        %v886 = vadd.f32 %v884, %v885
        %v887 = vadd.f32 %v886, %v679
        %v888 = vstv %s878
        %v889 = vmul.f32 %v888, %v844
        %v890 = vstv %s879
        %v891 = vmul.f32 %v890, %v887
        %v892 = vadd.f32 %v889, %v891
        %v893 = vmul.f32 %v844, %v686
        %v894 = vmul.f32 %v855, %v688
        %v895 = vadd.f32 %v893, %v894
        %v896 = vmul.f32 %v866, %v691
        %v897 = vadd.f32 %v895, %v896
        %v898 = vmul.f32 %v877, %v694
        %v899 = vadd.f32 %v897, %v898
        %v900 = vadd.f32 %v899, %v697
        %v901 = vmul.f32 %v888, %v855
        %v902 = vmul.f32 %v890, %v900
        %v903 = vadd.f32 %v901, %v902
        %v904 = vmul.f32 %v844, %v702
        %v905 = vmul.f32 %v855, %v704
        %v906 = vadd.f32 %v904, %v905
        %v907 = vmul.f32 %v866, %v707
        %v908 = vadd.f32 %v906, %v907
        %v909 = vmul.f32 %v877, %v710
        %v910 = vadd.f32 %v908, %v909
        %v911 = vadd.f32 %v910, %v713
        %v912 = vmul.f32 %v888, %v866
        %v913 = vmul.f32 %v890, %v911
        %v914 = vadd.f32 %v912, %v913
        %v915 = vmul.f32 %v844, %v718
        %v916 = vmul.f32 %v855, %v720
        %v917 = vadd.f32 %v915, %v916
        %v918 = vmul.f32 %v866, %v723
        %v919 = vadd.f32 %v917, %v918
        %v920 = vmul.f32 %v877, %v726
        %v921 = vadd.f32 %v919, %v920
        %v922 = vadd.f32 %v921, %v729
        %v923 = vmul.f32 %v888, %v877
        %v924 = vmul.f32 %v890, %v922
        %v925 = vadd.f32 %v923, %v924
        %s926 = sld [smem:[#allocation5 + $0x5]]
        %s927 = sld [smem:[#allocation7 + $0x5]]
        %v928 = vmul.f32 %v892, %v668
        %v929 = vmul.f32 %v903, %v670
        %v930 = vadd.f32 %v928, %v929
        %v931 = vmul.f32 %v914, %v673
        %v932 = vadd.f32 %v930, %v931
        %v933 = vmul.f32 %v925, %v676
        %v934 = vadd.f32 %v932, %v933
        %v935 = vadd.f32 %v934, %v679
        %v936 = vstv %s926
        %v937 = vmul.f32 %v936, %v892
        %v938 = vstv %s927
        %v939 = vmul.f32 %v938, %v935
        %v940 = vadd.f32 %v937, %v939
        %v941 = vmul.f32 %v892, %v686
        %v942 = vmul.f32 %v903, %v688
        %v943 = vadd.f32 %v941, %v942
        %v944 = vmul.f32 %v914, %v691
        %v945 = vadd.f32 %v943, %v944
        %v946 = vmul.f32 %v925, %v694
        %v947 = vadd.f32 %v945, %v946
        %v948 = vadd.f32 %v947, %v697
        %v949 = vmul.f32 %v936, %v903
        %v950 = vmul.f32 %v938, %v948
        %v951 = vadd.f32 %v949, %v950
        %v952 = vmul.f32 %v892, %v702
        %v953 = vmul.f32 %v903, %v704
        %v954 = vadd.f32 %v952, %v953
        %v955 = vmul.f32 %v914, %v707
        %v956 = vadd.f32 %v954, %v955
        %v957 = vmul.f32 %v925, %v710
        %v958 = vadd.f32 %v956, %v957
        %v959 = vadd.f32 %v958, %v713
        %v960 = vmul.f32 %v936, %v914
        %v961 = vmul.f32 %v938, %v959
        %v962 = vadd.f32 %v960, %v961
        %v963 = vmul.f32 %v892, %v718
        %v964 = vmul.f32 %v903, %v720
        %v965 = vadd.f32 %v963, %v964
        %v966 = vmul.f32 %v914, %v723
        %v967 = vadd.f32 %v965, %v966
        %v968 = vmul.f32 %v925, %v726
        %v969 = vadd.f32 %v967, %v968
        %v970 = vadd.f32 %v969, %v729
        %v971 = vmul.f32 %v936, %v925
        %v972 = vmul.f32 %v938, %v970
        %v973 = vadd.f32 %v971, %v972
        %s974 = sld [smem:[#allocation5 + $0x6]]
        %s975 = sld [smem:[#allocation7 + $0x6]]
        %v976 = vmul.f32 %v940, %v668
        %v977 = vmul.f32 %v951, %v670
        %v978 = vadd.f32 %v976, %v977
        %v979 = vmul.f32 %v962, %v673
        %v980 = vadd.f32 %v978, %v979
        %v981 = vmul.f32 %v973, %v676
        %v982 = vadd.f32 %v980, %v981
        %v983 = vadd.f32 %v982, %v679
        %v984 = vstv %s974
        %v985 = vmul.f32 %v984, %v940
        %v986 = vstv %s975
        %v987 = vmul.f32 %v986, %v983
        %v988 = vadd.f32 %v985, %v987
        %v989 = vmul.f32 %v940, %v686
        %v990 = vmul.f32 %v951, %v688
        %v991 = vadd.f32 %v989, %v990
        %v992 = vmul.f32 %v962, %v691
        %v993 = vadd.f32 %v991, %v992
        %v994 = vmul.f32 %v973, %v694
        %v995 = vadd.f32 %v993, %v994
        %v996 = vadd.f32 %v995, %v697
        %v997 = vmul.f32 %v984, %v951
        %v998 = vmul.f32 %v986, %v996
        %v999 = vadd.f32 %v997, %v998
        %v1000 = vmul.f32 %v940, %v702
        %v1001 = vmul.f32 %v951, %v704
        %v1002 = vadd.f32 %v1000, %v1001
        %v1003 = vmul.f32 %v962, %v707
        %v1004 = vadd.f32 %v1002, %v1003
        %v1005 = vmul.f32 %v973, %v710
        %v1006 = vadd.f32 %v1004, %v1005
        %v1007 = vadd.f32 %v1006, %v713
        %v1008 = vmul.f32 %v984, %v962
        %v1009 = vmul.f32 %v986, %v1007
        %v1010 = vadd.f32 %v1008, %v1009
        %v1011 = vmul.f32 %v940, %v718
        %v1012 = vmul.f32 %v951, %v720
        %v1013 = vadd.f32 %v1011, %v1012
        %v1014 = vmul.f32 %v962, %v723
        %v1015 = vadd.f32 %v1013, %v1014
        %v1016 = vmul.f32 %v973, %v726
        %v1017 = vadd.f32 %v1015, %v1016
        %v1018 = vadd.f32 %v1017, %v729
        %v1019 = vmul.f32 %v984, %v973
        %v1020 = vmul.f32 %v986, %v1018
        %v1021 = vadd.f32 %v1019, %v1020
        %s1022 = sld [smem:[#allocation5 + $0x7]]
        %s1023 = sld [smem:[#allocation7 + $0x7]]
        %v1024 = vmul.f32 %v988, %v668
        %v1025 = vmul.f32 %v999, %v670
        %v1026 = vadd.f32 %v1024, %v1025
        %v1027 = vmul.f32 %v1010, %v673
        %v1028 = vadd.f32 %v1026, %v1027
        %v1029 = vmul.f32 %v1021, %v676
        %v1030 = vadd.f32 %v1028, %v1029
        %v1031 = vadd.f32 %v1030, %v679
        %v1032 = vstv %s1022
        %v1033 = vmul.f32 %v1032, %v988
        %v1034 = vstv %s1023
        %v1035 = vmul.f32 %v1034, %v1031
        %v1036 = vadd.f32 %v1033, %v1035
        %v1037 = vmul.f32 %v988, %v686
        %v1038 = vmul.f32 %v999, %v688
        %v1039 = vadd.f32 %v1037, %v1038
        %v1040 = vmul.f32 %v1010, %v691
        %v1041 = vadd.f32 %v1039, %v1040
        %v1042 = vmul.f32 %v1021, %v694
        %v1043 = vadd.f32 %v1041, %v1042
        %v1044 = vadd.f32 %v1043, %v697
        %v1045 = vmul.f32 %v1032, %v999
        %v1046 = vmul.f32 %v1034, %v1044
        %v1047 = vadd.f32 %v1045, %v1046
        %v1048 = vmul.f32 %v988, %v702
        %v1049 = vmul.f32 %v999, %v704
        %v1050 = vadd.f32 %v1048, %v1049
        %v1051 = vmul.f32 %v1010, %v707
        %v1052 = vadd.f32 %v1050, %v1051
        %v1053 = vmul.f32 %v1021, %v710
        %v1054 = vadd.f32 %v1052, %v1053
        %v1055 = vadd.f32 %v1054, %v713
        %v1056 = vmul.f32 %v1032, %v1010
        %v1057 = vmul.f32 %v1034, %v1055
        %v1058 = vadd.f32 %v1056, %v1057
        %v1059 = vmul.f32 %v988, %v718
        %v1060 = vmul.f32 %v999, %v720
        %v1061 = vadd.f32 %v1059, %v1060
        %v1062 = vmul.f32 %v1010, %v723
        %v1063 = vadd.f32 %v1061, %v1062
        %v1064 = vmul.f32 %v1021, %v726
        %v1065 = vadd.f32 %v1063, %v1064
        %v1066 = vadd.f32 %v1065, %v729
        %v1067 = vmul.f32 %v1032, %v1021
        %v1068 = vmul.f32 %v1034, %v1066
        %v1069 = vadd.f32 %v1067, %v1068
        %s1070 = sld [smem:[#allocation5 + $0x8]]
        %s1071 = sld [smem:[#allocation7 + $0x8]]
        %v1072 = vmul.f32 %v1036, %v668
        %v1073 = vmul.f32 %v1047, %v670
        %v1074 = vadd.f32 %v1072, %v1073
        %v1075 = vmul.f32 %v1058, %v673
        %v1076 = vadd.f32 %v1074, %v1075
        %v1077 = vmul.f32 %v1069, %v676
        %v1078 = vadd.f32 %v1076, %v1077
        %v1079 = vadd.f32 %v1078, %v679
        %v1080 = vstv %s1070
        %v1081 = vmul.f32 %v1080, %v1036
        %v1082 = vstv %s1071
        %v1083 = vmul.f32 %v1082, %v1079
        %v1084 = vadd.f32 %v1081, %v1083
        %v1085 = vmul.f32 %v1036, %v686
        %v1086 = vmul.f32 %v1047, %v688
        %v1087 = vadd.f32 %v1085, %v1086
        %v1088 = vmul.f32 %v1058, %v691
        %v1089 = vadd.f32 %v1087, %v1088
        %v1090 = vmul.f32 %v1069, %v694
        %v1091 = vadd.f32 %v1089, %v1090
        %v1092 = vadd.f32 %v1091, %v697
        %v1093 = vmul.f32 %v1080, %v1047
        %v1094 = vmul.f32 %v1082, %v1092
        %v1095 = vadd.f32 %v1093, %v1094
        %v1096 = vmul.f32 %v1036, %v702
        %v1097 = vmul.f32 %v1047, %v704
        %v1098 = vadd.f32 %v1096, %v1097
        %v1099 = vmul.f32 %v1058, %v707
        %v1100 = vadd.f32 %v1098, %v1099
        %v1101 = vmul.f32 %v1069, %v710
        %v1102 = vadd.f32 %v1100, %v1101
        %v1103 = vadd.f32 %v1102, %v713
        %v1104 = vmul.f32 %v1080, %v1058
        %v1105 = vmul.f32 %v1082, %v1103
        %v1106 = vadd.f32 %v1104, %v1105
        %v1107 = vmul.f32 %v1036, %v718
        %v1108 = vmul.f32 %v1047, %v720
        %v1109 = vadd.f32 %v1107, %v1108
        %v1110 = vmul.f32 %v1058, %v723
        %v1111 = vadd.f32 %v1109, %v1110
        %v1112 = vmul.f32 %v1069, %v726
        %v1113 = vadd.f32 %v1111, %v1112
        %v1114 = vadd.f32 %v1113, %v729
        %v1115 = vmul.f32 %v1080, %v1069
        %v1116 = vmul.f32 %v1082, %v1114
        %v1117 = vadd.f32 %v1115, %v1116
        %s1118 = sld [smem:[#allocation5 + $0x9]]
        %s1119 = sld [smem:[#allocation7 + $0x9]]
        %v1120 = vmul.f32 %v1084, %v668
        %v1121 = vmul.f32 %v1095, %v670
        %v1122 = vadd.f32 %v1120, %v1121
        %v1123 = vmul.f32 %v1106, %v673
        %v1124 = vadd.f32 %v1122, %v1123
        %v1125 = vmul.f32 %v1117, %v676
        %v1126 = vadd.f32 %v1124, %v1125
        %v1127 = vadd.f32 %v1126, %v679
        %v1128 = vstv %s1118
        %v1129 = vmul.f32 %v1128, %v1084
        %v1130 = vstv %s1119
        %v1131 = vmul.f32 %v1130, %v1127
        %v1132 = vadd.f32 %v1129, %v1131
        %v1133 = vmul.f32 %v1084, %v686
        %v1134 = vmul.f32 %v1095, %v688
        %v1135 = vadd.f32 %v1133, %v1134
        %v1136 = vmul.f32 %v1106, %v691
        %v1137 = vadd.f32 %v1135, %v1136
        %v1138 = vmul.f32 %v1117, %v694
        %v1139 = vadd.f32 %v1137, %v1138
        %v1140 = vadd.f32 %v1139, %v697
        %v1141 = vmul.f32 %v1128, %v1095
        %v1142 = vmul.f32 %v1130, %v1140
        %v1143 = vadd.f32 %v1141, %v1142
        %v1144 = vmul.f32 %v1084, %v702
        %v1145 = vmul.f32 %v1095, %v704
        %v1146 = vadd.f32 %v1144, %v1145
        %v1147 = vmul.f32 %v1106, %v707
        %v1148 = vadd.f32 %v1146, %v1147
        %v1149 = vmul.f32 %v1117, %v710
        %v1150 = vadd.f32 %v1148, %v1149
        %v1151 = vadd.f32 %v1150, %v713
        %v1152 = vmul.f32 %v1128, %v1106
        %v1153 = vmul.f32 %v1130, %v1151
        %v1154 = vadd.f32 %v1152, %v1153
        %v1155 = vmul.f32 %v1084, %v718
        %v1156 = vmul.f32 %v1095, %v720
        %v1157 = vadd.f32 %v1155, %v1156
        %v1158 = vmul.f32 %v1106, %v723
        %v1159 = vadd.f32 %v1157, %v1158
        %v1160 = vmul.f32 %v1117, %v726
        %v1161 = vadd.f32 %v1159, %v1160
        %v1162 = vadd.f32 %v1161, %v729
        %v1163 = vmul.f32 %v1128, %v1117
        %v1164 = vmul.f32 %v1130, %v1162
        %v1165 = vadd.f32 %v1163, %v1164
        %s1166 = sld [smem:[#allocation5 + $0xa]]
        %s1167 = sld [smem:[#allocation7 + $0xa]]
        %v1168 = vmul.f32 %v1132, %v668
        %v1169 = vmul.f32 %v1143, %v670
        %v1170 = vadd.f32 %v1168, %v1169
        %v1171 = vmul.f32 %v1154, %v673
        %v1172 = vadd.f32 %v1170, %v1171
        %v1173 = vmul.f32 %v1165, %v676
        %v1174 = vadd.f32 %v1172, %v1173
        %v1175 = vadd.f32 %v1174, %v679
        %v1176 = vstv %s1166
        %v1177 = vmul.f32 %v1176, %v1132
        %v1178 = vstv %s1167
        %v1179 = vmul.f32 %v1178, %v1175
        %v1180 = vadd.f32 %v1177, %v1179
        %v1181 = vmul.f32 %v1132, %v686
        %v1182 = vmul.f32 %v1143, %v688
        %v1183 = vadd.f32 %v1181, %v1182
        %v1184 = vmul.f32 %v1154, %v691
        %v1185 = vadd.f32 %v1183, %v1184
        %v1186 = vmul.f32 %v1165, %v694
        %v1187 = vadd.f32 %v1185, %v1186
        %v1188 = vadd.f32 %v1187, %v697
        %v1189 = vmul.f32 %v1176, %v1143
        %v1190 = vmul.f32 %v1178, %v1188
        %v1191 = vadd.f32 %v1189, %v1190
        %v1192 = vmul.f32 %v1132, %v702
        %v1193 = vmul.f32 %v1143, %v704
        %v1194 = vadd.f32 %v1192, %v1193
        %v1195 = vmul.f32 %v1154, %v707
        %v1196 = vadd.f32 %v1194, %v1195
        %v1197 = vmul.f32 %v1165, %v710
        %v1198 = vadd.f32 %v1196, %v1197
        %v1199 = vadd.f32 %v1198, %v713
        %v1200 = vmul.f32 %v1176, %v1154
        %v1201 = vmul.f32 %v1178, %v1199
        %v1202 = vadd.f32 %v1200, %v1201
        %v1203 = vmul.f32 %v1132, %v718
        %v1204 = vmul.f32 %v1143, %v720
        %v1205 = vadd.f32 %v1203, %v1204
        %v1206 = vmul.f32 %v1154, %v723
        %v1207 = vadd.f32 %v1205, %v1206
        %v1208 = vmul.f32 %v1165, %v726
        %v1209 = vadd.f32 %v1207, %v1208
        %v1210 = vadd.f32 %v1209, %v729
        %v1211 = vmul.f32 %v1176, %v1165
        %v1212 = vmul.f32 %v1178, %v1210
        %v1213 = vadd.f32 %v1211, %v1212
        %s1214 = sld [smem:[#allocation5 + $0xb]]
        %s1215 = sld [smem:[#allocation7 + $0xb]]
        %v1216 = vmul.f32 %v1180, %v668
        %v1217 = vmul.f32 %v1191, %v670
        %v1218 = vadd.f32 %v1216, %v1217
        %v1219 = vmul.f32 %v1202, %v673
        %v1220 = vadd.f32 %v1218, %v1219
        %v1221 = vmul.f32 %v1213, %v676
        %v1222 = vadd.f32 %v1220, %v1221
        %v1223 = vadd.f32 %v1222, %v679
        %v1224 = vstv %s1214
        %v1225 = vmul.f32 %v1224, %v1180
        %v1226 = vstv %s1215
        %v1227 = vmul.f32 %v1226, %v1223
        %v1228 = vadd.f32 %v1225, %v1227
        %v1229 = vmul.f32 %v1180, %v686
        %v1230 = vmul.f32 %v1191, %v688
        %v1231 = vadd.f32 %v1229, %v1230
        %v1232 = vmul.f32 %v1202, %v691
        %v1233 = vadd.f32 %v1231, %v1232
        %v1234 = vmul.f32 %v1213, %v694
        %v1235 = vadd.f32 %v1233, %v1234
        %v1236 = vadd.f32 %v1235, %v697
        %v1237 = vmul.f32 %v1224, %v1191
        %v1238 = vmul.f32 %v1226, %v1236
        %v1239 = vadd.f32 %v1237, %v1238
        %v1240 = vmul.f32 %v1180, %v702
        %v1241 = vmul.f32 %v1191, %v704
        %v1242 = vadd.f32 %v1240, %v1241
        %v1243 = vmul.f32 %v1202, %v707
        %v1244 = vadd.f32 %v1242, %v1243
        %v1245 = vmul.f32 %v1213, %v710
        %v1246 = vadd.f32 %v1244, %v1245
        %v1247 = vadd.f32 %v1246, %v713
        %v1248 = vmul.f32 %v1224, %v1202
        %v1249 = vmul.f32 %v1226, %v1247
        %v1250 = vadd.f32 %v1248, %v1249
        %v1251 = vmul.f32 %v1180, %v718
        %v1252 = vmul.f32 %v1191, %v720
        %v1253 = vadd.f32 %v1251, %v1252
        %v1254 = vmul.f32 %v1202, %v723
        %v1255 = vadd.f32 %v1253, %v1254
        %v1256 = vmul.f32 %v1213, %v726
        %v1257 = vadd.f32 %v1255, %v1256
        %v1258 = vadd.f32 %v1257, %v729
        %v1259 = vmul.f32 %v1224, %v1213
        %v1260 = vmul.f32 %v1226, %v1258
        %v1261 = vadd.f32 %v1259, %v1260
        %s1262 = sld [smem:[#allocation5 + $0xc]]
        %s1263 = sld [smem:[#allocation7 + $0xc]]
        %v1264 = vmul.f32 %v1228, %v668
        %v1265 = vmul.f32 %v1239, %v670
        %v1266 = vadd.f32 %v1264, %v1265
        %v1267 = vmul.f32 %v1250, %v673
        %v1268 = vadd.f32 %v1266, %v1267
        %v1269 = vmul.f32 %v1261, %v676
        %v1270 = vadd.f32 %v1268, %v1269
        %v1271 = vadd.f32 %v1270, %v679
        %v1272 = vstv %s1262
        %v1273 = vmul.f32 %v1272, %v1228
        %v1274 = vstv %s1263
        %v1275 = vmul.f32 %v1274, %v1271
        %v1276 = vadd.f32 %v1273, %v1275
        %v1277 = vmul.f32 %v1228, %v686
        %v1278 = vmul.f32 %v1239, %v688
        %v1279 = vadd.f32 %v1277, %v1278
        %v1280 = vmul.f32 %v1250, %v691
        %v1281 = vadd.f32 %v1279, %v1280
        %v1282 = vmul.f32 %v1261, %v694
        %v1283 = vadd.f32 %v1281, %v1282
        %v1284 = vadd.f32 %v1283, %v697
        %v1285 = vmul.f32 %v1272, %v1239
        %v1286 = vmul.f32 %v1274, %v1284
        %v1287 = vadd.f32 %v1285, %v1286
        %v1288 = vmul.f32 %v1228, %v702
        %v1289 = vmul.f32 %v1239, %v704
        %v1290 = vadd.f32 %v1288, %v1289
        %v1291 = vmul.f32 %v1250, %v707
        %v1292 = vadd.f32 %v1290, %v1291
        %v1293 = vmul.f32 %v1261, %v710
        %v1294 = vadd.f32 %v1292, %v1293
        %v1295 = vadd.f32 %v1294, %v713
        %v1296 = vmul.f32 %v1272, %v1250
        %v1297 = vmul.f32 %v1274, %v1295
        %v1298 = vadd.f32 %v1296, %v1297
        %v1299 = vmul.f32 %v1228, %v718
        %v1300 = vmul.f32 %v1239, %v720
        %v1301 = vadd.f32 %v1299, %v1300
        %v1302 = vmul.f32 %v1250, %v723
        %v1303 = vadd.f32 %v1301, %v1302
        %v1304 = vmul.f32 %v1261, %v726
        %v1305 = vadd.f32 %v1303, %v1304
        %v1306 = vadd.f32 %v1305, %v729
        %v1307 = vmul.f32 %v1272, %v1261
        %v1308 = vmul.f32 %v1274, %v1306
        %v1309 = vadd.f32 %v1307, %v1308
        %s1310 = sld [smem:[#allocation5 + $0xd]]
        %s1311 = sld [smem:[#allocation7 + $0xd]]
        %v1312 = vmul.f32 %v1276, %v668
        %v1313 = vmul.f32 %v1287, %v670
        %v1314 = vadd.f32 %v1312, %v1313
        %v1315 = vmul.f32 %v1298, %v673
        %v1316 = vadd.f32 %v1314, %v1315
        %v1317 = vmul.f32 %v1309, %v676
        %v1318 = vadd.f32 %v1316, %v1317
        %v1319 = vadd.f32 %v1318, %v679
        %v1320 = vstv %s1310
        %v1321 = vmul.f32 %v1320, %v1276
        %v1322 = vstv %s1311
        %v1323 = vmul.f32 %v1322, %v1319
        %v1324 = vadd.f32 %v1321, %v1323
        %v1325 = vmul.f32 %v1276, %v686
        %v1326 = vmul.f32 %v1287, %v688
        %v1327 = vadd.f32 %v1325, %v1326
        %v1328 = vmul.f32 %v1298, %v691
        %v1329 = vadd.f32 %v1327, %v1328
        %v1330 = vmul.f32 %v1309, %v694
        %v1331 = vadd.f32 %v1329, %v1330
        %v1332 = vadd.f32 %v1331, %v697
        %v1333 = vmul.f32 %v1320, %v1287
        %v1334 = vmul.f32 %v1322, %v1332
        %v1335 = vadd.f32 %v1333, %v1334
        %v1336 = vmul.f32 %v1276, %v702
        %v1337 = vmul.f32 %v1287, %v704
        %v1338 = vadd.f32 %v1336, %v1337
        %v1339 = vmul.f32 %v1298, %v707
        %v1340 = vadd.f32 %v1338, %v1339
        %v1341 = vmul.f32 %v1309, %v710
        %v1342 = vadd.f32 %v1340, %v1341
        %v1343 = vadd.f32 %v1342, %v713
        %v1344 = vmul.f32 %v1320, %v1298
        %v1345 = vmul.f32 %v1322, %v1343
        %v1346 = vadd.f32 %v1344, %v1345
        %v1347 = vmul.f32 %v1276, %v718
        %v1348 = vmul.f32 %v1287, %v720
        %v1349 = vadd.f32 %v1347, %v1348
        %v1350 = vmul.f32 %v1298, %v723
        %v1351 = vadd.f32 %v1349, %v1350
        %v1352 = vmul.f32 %v1309, %v726
        %v1353 = vadd.f32 %v1351, %v1352
        %v1354 = vadd.f32 %v1353, %v729
        %v1355 = vmul.f32 %v1320, %v1309
        %v1356 = vmul.f32 %v1322, %v1354
        %v1357 = vadd.f32 %v1355, %v1356
        %s1358 = sld [smem:[#allocation5 + $0xe]]
        %s1359 = sld [smem:[#allocation7 + $0xe]]
        %v1360 = vmul.f32 %v1324, %v668
        %v1361 = vmul.f32 %v1335, %v670
        %v1362 = vadd.f32 %v1360, %v1361
        %v1363 = vmul.f32 %v1346, %v673
        %v1364 = vadd.f32 %v1362, %v1363
        %v1365 = vmul.f32 %v1357, %v676
        %v1366 = vadd.f32 %v1364, %v1365
        %v1367 = vadd.f32 %v1366, %v679
        %v1368 = vstv %s1358
        %v1369 = vmul.f32 %v1368, %v1324
        %v1370 = vstv %s1359
        %v1371 = vmul.f32 %v1370, %v1367
        %v1372 = vadd.f32 %v1369, %v1371
        %v1373 = vmul.f32 %v1324, %v686
        %v1374 = vmul.f32 %v1335, %v688
        %v1375 = vadd.f32 %v1373, %v1374
        %v1376 = vmul.f32 %v1346, %v691
        %v1377 = vadd.f32 %v1375, %v1376
        %v1378 = vmul.f32 %v1357, %v694
        %v1379 = vadd.f32 %v1377, %v1378
        %v1380 = vadd.f32 %v1379, %v697
        %v1381 = vmul.f32 %v1368, %v1335
        %v1382 = vmul.f32 %v1370, %v1380
        %v1383 = vadd.f32 %v1381, %v1382
        %v1384 = vmul.f32 %v1324, %v702
        %v1385 = vmul.f32 %v1335, %v704
        %v1386 = vadd.f32 %v1384, %v1385
        %v1387 = vmul.f32 %v1346, %v707
        %v1388 = vadd.f32 %v1386, %v1387
        %v1389 = vmul.f32 %v1357, %v710
        %v1390 = vadd.f32 %v1388, %v1389
        %v1391 = vadd.f32 %v1390, %v713
        %v1392 = vmul.f32 %v1368, %v1346
        %v1393 = vmul.f32 %v1370, %v1391
        %v1394 = vadd.f32 %v1392, %v1393
        %v1395 = vmul.f32 %v1324, %v718
        %v1396 = vmul.f32 %v1335, %v720
        %v1397 = vadd.f32 %v1395, %v1396
        %v1398 = vmul.f32 %v1346, %v723
        %v1399 = vadd.f32 %v1397, %v1398
        %v1400 = vmul.f32 %v1357, %v726
        %v1401 = vadd.f32 %v1399, %v1400
        %v1402 = vadd.f32 %v1401, %v729
        %v1403 = vmul.f32 %v1368, %v1357
        %v1404 = vmul.f32 %v1370, %v1402
        %v1405 = vadd.f32 %v1403, %v1404
        %s1406 = sld [smem:[#allocation5 + $0xf]]
        %s1407 = sld [smem:[#allocation7 + $0xf]]
        %v1408 = vmul.f32 %v1372, %v668
        %v1409 = vmul.f32 %v1383, %v670
        %v1410 = vadd.f32 %v1408, %v1409
        %v1411 = vmul.f32 %v1394, %v673
        %v1412 = vadd.f32 %v1410, %v1411
        %v1413 = vmul.f32 %v1405, %v676
        %v1414 = vadd.f32 %v1412, %v1413
        %v1415 = vadd.f32 %v1414, %v679
        %v1416 = vstv %s1406
        %v1417 = vmul.f32 %v1416, %v1372
        %v1418 = vstv %s1407
        %v1419 = vmul.f32 %v1418, %v1415
        %v1420 = vadd.f32 %v1417, %v1419
        %v1421 = vmul.f32 %v1372, %v686
        %v1422 = vmul.f32 %v1383, %v688
        %v1423 = vadd.f32 %v1421, %v1422
        %v1424 = vmul.f32 %v1394, %v691
        %v1425 = vadd.f32 %v1423, %v1424
        %v1426 = vmul.f32 %v1405, %v694
        %v1427 = vadd.f32 %v1425, %v1426
        %v1428 = vadd.f32 %v1427, %v697
        %v1429 = vmul.f32 %v1416, %v1383
        %v1430 = vmul.f32 %v1418, %v1428
        %v1431 = vadd.f32 %v1429, %v1430
        %v1432 = vmul.f32 %v1372, %v702
        %v1433 = vmul.f32 %v1383, %v704
        %v1434 = vadd.f32 %v1432, %v1433
        %v1435 = vmul.f32 %v1394, %v707
        %v1436 = vadd.f32 %v1434, %v1435
        %v1437 = vmul.f32 %v1405, %v710
        %v1438 = vadd.f32 %v1436, %v1437
        %v1439 = vadd.f32 %v1438, %v713
        %v1440 = vmul.f32 %v1416, %v1394
        %v1441 = vmul.f32 %v1418, %v1439
        %v1442 = vadd.f32 %v1440, %v1441
        %v1443 = vmul.f32 %v1372, %v718
        %v1444 = vmul.f32 %v1383, %v720
        %v1445 = vadd.f32 %v1443, %v1444
        %v1446 = vmul.f32 %v1394, %v723
        %v1447 = vadd.f32 %v1445, %v1446
        %v1448 = vmul.f32 %v1405, %v726
        %v1449 = vadd.f32 %v1447, %v1448
        %v1450 = vadd.f32 %v1449, %v729
        %v1451 = vmul.f32 %v1416, %v1405
        %v1452 = vmul.f32 %v1418, %v1450
        %v1453 = vadd.f32 %v1451, %v1452
        %s1454 = sld [smem:[#allocation5 + $0x10]]
        %s1455 = sld [smem:[#allocation7 + $0x10]]
        %v1456 = vmul.f32 %v1420, %v668
        %v1457 = vmul.f32 %v1431, %v670
        %v1458 = vadd.f32 %v1456, %v1457
        %v1459 = vmul.f32 %v1442, %v673
        %v1460 = vadd.f32 %v1458, %v1459
        %v1461 = vmul.f32 %v1453, %v676
        %v1462 = vadd.f32 %v1460, %v1461
        %v1463 = vadd.f32 %v1462, %v679
        %v1464 = vstv %s1454
        %v1465 = vmul.f32 %v1464, %v1420
        %v1466 = vstv %s1455
        %v1467 = vmul.f32 %v1466, %v1463
        %v1468 = vadd.f32 %v1465, %v1467
        %v1469 = vmul.f32 %v1420, %v686
        %v1470 = vmul.f32 %v1431, %v688
        %v1471 = vadd.f32 %v1469, %v1470
        %v1472 = vmul.f32 %v1442, %v691
        %v1473 = vadd.f32 %v1471, %v1472
        %v1474 = vmul.f32 %v1453, %v694
        %v1475 = vadd.f32 %v1473, %v1474
        %v1476 = vadd.f32 %v1475, %v697
        %v1477 = vmul.f32 %v1464, %v1431
        %v1478 = vmul.f32 %v1466, %v1476
        %v1479 = vadd.f32 %v1477, %v1478
        %v1480 = vmul.f32 %v1420, %v702
        %v1481 = vmul.f32 %v1431, %v704
        %v1482 = vadd.f32 %v1480, %v1481
        %v1483 = vmul.f32 %v1442, %v707
        %v1484 = vadd.f32 %v1482, %v1483
        %v1485 = vmul.f32 %v1453, %v710
        %v1486 = vadd.f32 %v1484, %v1485
        %v1487 = vadd.f32 %v1486, %v713
        %v1488 = vmul.f32 %v1464, %v1442
        %v1489 = vmul.f32 %v1466, %v1487
        %v1490 = vadd.f32 %v1488, %v1489
        %v1491 = vmul.f32 %v1420, %v718
        %v1492 = vmul.f32 %v1431, %v720
        %v1493 = vadd.f32 %v1491, %v1492
        %v1494 = vmul.f32 %v1442, %v723
        %v1495 = vadd.f32 %v1493, %v1494
        %v1496 = vmul.f32 %v1453, %v726
        %v1497 = vadd.f32 %v1495, %v1496
        %v1498 = vadd.f32 %v1497, %v729
        %v1499 = vmul.f32 %v1464, %v1453
        %v1500 = vmul.f32 %v1466, %v1498
        %v1501 = vadd.f32 %v1499, %v1500
        %s1502 = sld [smem:[#allocation5 + $0x11]]
        %s1503 = sld [smem:[#allocation7 + $0x11]]
        %v1504 = vmul.f32 %v1468, %v668
        %v1505 = vmul.f32 %v1479, %v670
        %v1506 = vadd.f32 %v1504, %v1505
        %v1507 = vmul.f32 %v1490, %v673
        %v1508 = vadd.f32 %v1506, %v1507
        %v1509 = vmul.f32 %v1501, %v676
        %v1510 = vadd.f32 %v1508, %v1509
        %v1511 = vadd.f32 %v1510, %v679
        %v1512 = vstv %s1502
        %v1513 = vmul.f32 %v1512, %v1468
        %v1514 = vstv %s1503
        %v1515 = vmul.f32 %v1514, %v1511
        %v1516 = vadd.f32 %v1513, %v1515
        %v1517 = vmul.f32 %v1468, %v686
        %v1518 = vmul.f32 %v1479, %v688
        %v1519 = vadd.f32 %v1517, %v1518
        %v1520 = vmul.f32 %v1490, %v691
        %v1521 = vadd.f32 %v1519, %v1520
        %v1522 = vmul.f32 %v1501, %v694
        %v1523 = vadd.f32 %v1521, %v1522
        %v1524 = vadd.f32 %v1523, %v697
        %v1525 = vmul.f32 %v1512, %v1479
        %v1526 = vmul.f32 %v1514, %v1524
        %v1527 = vadd.f32 %v1525, %v1526
        %v1528 = vmul.f32 %v1468, %v702
        %v1529 = vmul.f32 %v1479, %v704
        %v1530 = vadd.f32 %v1528, %v1529
        %v1531 = vmul.f32 %v1490, %v707
        %v1532 = vadd.f32 %v1530, %v1531
        %v1533 = vmul.f32 %v1501, %v710
        %v1534 = vadd.f32 %v1532, %v1533
        %v1535 = vadd.f32 %v1534, %v713
        %v1536 = vmul.f32 %v1512, %v1490
        %v1537 = vmul.f32 %v1514, %v1535
        %v1538 = vadd.f32 %v1536, %v1537
        %v1539 = vmul.f32 %v1468, %v718
        %v1540 = vmul.f32 %v1479, %v720
        %v1541 = vadd.f32 %v1539, %v1540
        %v1542 = vmul.f32 %v1490, %v723
        %v1543 = vadd.f32 %v1541, %v1542
        %v1544 = vmul.f32 %v1501, %v726
        %v1545 = vadd.f32 %v1543, %v1544
        %v1546 = vadd.f32 %v1545, %v729
        %v1547 = vmul.f32 %v1512, %v1501
        %v1548 = vmul.f32 %v1514, %v1546
        %v1549 = vadd.f32 %v1547, %v1548
        %s1550 = sld [smem:[#allocation5 + $0x12]]
        %s1551 = sld [smem:[#allocation7 + $0x12]]
        %v1552 = vmul.f32 %v1516, %v668
        %v1553 = vmul.f32 %v1527, %v670
        %v1554 = vadd.f32 %v1552, %v1553
        %v1555 = vmul.f32 %v1538, %v673
        %v1556 = vadd.f32 %v1554, %v1555
        %v1557 = vmul.f32 %v1549, %v676
        %v1558 = vadd.f32 %v1556, %v1557
        %v1559 = vadd.f32 %v1558, %v679
        %v1560 = vstv %s1550
        %v1561 = vmul.f32 %v1560, %v1516
        %v1562 = vstv %s1551
        %v1563 = vmul.f32 %v1562, %v1559
        %v1564 = vadd.f32 %v1561, %v1563
        %v1565 = vmul.f32 %v1516, %v686
        %v1566 = vmul.f32 %v1527, %v688
        %v1567 = vadd.f32 %v1565, %v1566
        %v1568 = vmul.f32 %v1538, %v691
        %v1569 = vadd.f32 %v1567, %v1568
        %v1570 = vmul.f32 %v1549, %v694
        %v1571 = vadd.f32 %v1569, %v1570
        %v1572 = vadd.f32 %v1571, %v697
        %v1573 = vmul.f32 %v1560, %v1527
        %v1574 = vmul.f32 %v1562, %v1572
        %v1575 = vadd.f32 %v1573, %v1574
        %v1576 = vmul.f32 %v1516, %v702
        %v1577 = vmul.f32 %v1527, %v704
        %v1578 = vadd.f32 %v1576, %v1577
        %v1579 = vmul.f32 %v1538, %v707
        %v1580 = vadd.f32 %v1578, %v1579
        %v1581 = vmul.f32 %v1549, %v710
        %v1582 = vadd.f32 %v1580, %v1581
        %v1583 = vadd.f32 %v1582, %v713
        %v1584 = vmul.f32 %v1560, %v1538
        %v1585 = vmul.f32 %v1562, %v1583
        %v1586 = vadd.f32 %v1584, %v1585
        %v1587 = vmul.f32 %v1516, %v718
        %v1588 = vmul.f32 %v1527, %v720
        %v1589 = vadd.f32 %v1587, %v1588
        %v1590 = vmul.f32 %v1538, %v723
        %v1591 = vadd.f32 %v1589, %v1590
        %v1592 = vmul.f32 %v1549, %v726
        %v1593 = vadd.f32 %v1591, %v1592
        %v1594 = vadd.f32 %v1593, %v729
        %v1595 = vmul.f32 %v1560, %v1549
        %v1596 = vmul.f32 %v1562, %v1594
        %v1597 = vadd.f32 %v1595, %v1596
        %s1598 = sld [smem:[#allocation5 + $0x13]]
        %s1599 = sld [smem:[#allocation7 + $0x13]]
        %v1600 = vmul.f32 %v1564, %v668
        %v1601 = vmul.f32 %v1575, %v670
        %v1602 = vadd.f32 %v1600, %v1601
        %v1603 = vmul.f32 %v1586, %v673
        %v1604 = vadd.f32 %v1602, %v1603
        %v1605 = vmul.f32 %v1597, %v676
        %v1606 = vadd.f32 %v1604, %v1605
        %v1607 = vadd.f32 %v1606, %v679
        %v1608 = vstv %s1598
        %v1609 = vmul.f32 %v1608, %v1564
        %v1610 = vstv %s1599
        %v1611 = vmul.f32 %v1610, %v1607
        %v1612 = vadd.f32 %v1609, %v1611
        %v1613 = vmul.f32 %v1564, %v686
        %v1614 = vmul.f32 %v1575, %v688
        %v1615 = vadd.f32 %v1613, %v1614
        %v1616 = vmul.f32 %v1586, %v691
        %v1617 = vadd.f32 %v1615, %v1616
        %v1618 = vmul.f32 %v1597, %v694
        %v1619 = vadd.f32 %v1617, %v1618
        %v1620 = vadd.f32 %v1619, %v697
        %v1621 = vmul.f32 %v1608, %v1575
        %v1622 = vmul.f32 %v1610, %v1620
        %v1623 = vadd.f32 %v1621, %v1622
        %v1624 = vmul.f32 %v1564, %v702
        %v1625 = vmul.f32 %v1575, %v704
        %v1626 = vadd.f32 %v1624, %v1625
        %v1627 = vmul.f32 %v1586, %v707
        %v1628 = vadd.f32 %v1626, %v1627
        %v1629 = vmul.f32 %v1597, %v710
        %v1630 = vadd.f32 %v1628, %v1629
        %v1631 = vadd.f32 %v1630, %v713
        %v1632 = vmul.f32 %v1608, %v1586
        %v1633 = vmul.f32 %v1610, %v1631
        %v1634 = vadd.f32 %v1632, %v1633
        %v1635 = vmul.f32 %v1564, %v718
        %v1636 = vmul.f32 %v1575, %v720
        %v1637 = vadd.f32 %v1635, %v1636
        %v1638 = vmul.f32 %v1586, %v723
        %v1639 = vadd.f32 %v1637, %v1638
        %v1640 = vmul.f32 %v1597, %v726
        %v1641 = vadd.f32 %v1639, %v1640
        %v1642 = vadd.f32 %v1641, %v729
        %v1643 = vmul.f32 %v1608, %v1597
        %v1644 = vmul.f32 %v1610, %v1642
        %v1645 = vadd.f32 %v1643, %v1644
        %s1646 = sld [smem:[#allocation5 + $0x14]]
        %s1647 = sld [smem:[#allocation7 + $0x14]]
        %v1648 = vmul.f32 %v1612, %v668
        %v1649 = vmul.f32 %v1623, %v670
        %v1650 = vadd.f32 %v1648, %v1649
        %v1651 = vmul.f32 %v1634, %v673
        %v1652 = vadd.f32 %v1650, %v1651
        %v1653 = vmul.f32 %v1645, %v676
        %v1654 = vadd.f32 %v1652, %v1653
        %v1655 = vadd.f32 %v1654, %v679
        %v1656 = vstv %s1646
        %v1657 = vmul.f32 %v1656, %v1612
        %v1658 = vstv %s1647
        %v1659 = vmul.f32 %v1658, %v1655
        %v1660 = vadd.f32 %v1657, %v1659
        %v1661 = vmul.f32 %v1612, %v686
        %v1662 = vmul.f32 %v1623, %v688
        %v1663 = vadd.f32 %v1661, %v1662
        %v1664 = vmul.f32 %v1634, %v691
        %v1665 = vadd.f32 %v1663, %v1664
        %v1666 = vmul.f32 %v1645, %v694
        %v1667 = vadd.f32 %v1665, %v1666
        %v1668 = vadd.f32 %v1667, %v697
        %v1669 = vmul.f32 %v1656, %v1623
        %v1670 = vmul.f32 %v1658, %v1668
        %v1671 = vadd.f32 %v1669, %v1670
        %v1672 = vmul.f32 %v1612, %v702
        %v1673 = vmul.f32 %v1623, %v704
        %v1674 = vadd.f32 %v1672, %v1673
        %v1675 = vmul.f32 %v1634, %v707
        %v1676 = vadd.f32 %v1674, %v1675
        %v1677 = vmul.f32 %v1645, %v710
        %v1678 = vadd.f32 %v1676, %v1677
        %v1679 = vadd.f32 %v1678, %v713
        %v1680 = vmul.f32 %v1656, %v1634
        %v1681 = vmul.f32 %v1658, %v1679
        %v1682 = vadd.f32 %v1680, %v1681
        %v1683 = vmul.f32 %v1612, %v718
        %v1684 = vmul.f32 %v1623, %v720
        %v1685 = vadd.f32 %v1683, %v1684
        %v1686 = vmul.f32 %v1634, %v723
        %v1687 = vadd.f32 %v1685, %v1686
        %v1688 = vmul.f32 %v1645, %v726
        %v1689 = vadd.f32 %v1687, %v1688
        %v1690 = vadd.f32 %v1689, %v729
        %v1691 = vmul.f32 %v1656, %v1645
        %v1692 = vmul.f32 %v1658, %v1690
        %v1693 = vadd.f32 %v1691, %v1692
        %s1694 = sld [smem:[#allocation5 + $0x15]]
        %s1695 = sld [smem:[#allocation7 + $0x15]]
        %v1696 = vmul.f32 %v1660, %v668
        %v1697 = vmul.f32 %v1671, %v670
        %v1698 = vadd.f32 %v1696, %v1697
        %v1699 = vmul.f32 %v1682, %v673
        %v1700 = vadd.f32 %v1698, %v1699
        %v1701 = vmul.f32 %v1693, %v676
        %v1702 = vadd.f32 %v1700, %v1701
        %v1703 = vadd.f32 %v1702, %v679
        %v1704 = vstv %s1694
        %v1705 = vmul.f32 %v1704, %v1660
        %v1706 = vstv %s1695
        %v1707 = vmul.f32 %v1706, %v1703
        %v1708 = vadd.f32 %v1705, %v1707
        %v1709 = vmul.f32 %v1660, %v686
        %v1710 = vmul.f32 %v1671, %v688
        %v1711 = vadd.f32 %v1709, %v1710
        %v1712 = vmul.f32 %v1682, %v691
        %v1713 = vadd.f32 %v1711, %v1712
        %v1714 = vmul.f32 %v1693, %v694
        %v1715 = vadd.f32 %v1713, %v1714
        %v1716 = vadd.f32 %v1715, %v697
        %v1717 = vmul.f32 %v1704, %v1671
        %v1718 = vmul.f32 %v1706, %v1716
        %v1719 = vadd.f32 %v1717, %v1718
        %v1720 = vmul.f32 %v1660, %v702
        %v1721 = vmul.f32 %v1671, %v704
        %v1722 = vadd.f32 %v1720, %v1721
        %v1723 = vmul.f32 %v1682, %v707
        %v1724 = vadd.f32 %v1722, %v1723
        %v1725 = vmul.f32 %v1693, %v710
        %v1726 = vadd.f32 %v1724, %v1725
        %v1727 = vadd.f32 %v1726, %v713
        %v1728 = vmul.f32 %v1704, %v1682
        %v1729 = vmul.f32 %v1706, %v1727
        %v1730 = vadd.f32 %v1728, %v1729
        %v1731 = vmul.f32 %v1660, %v718
        %v1732 = vmul.f32 %v1671, %v720
        %v1733 = vadd.f32 %v1731, %v1732
        %v1734 = vmul.f32 %v1682, %v723
        %v1735 = vadd.f32 %v1733, %v1734
        %v1736 = vmul.f32 %v1693, %v726
        %v1737 = vadd.f32 %v1735, %v1736
        %v1738 = vadd.f32 %v1737, %v729
        %v1739 = vmul.f32 %v1704, %v1693
        %v1740 = vmul.f32 %v1706, %v1738
        %v1741 = vadd.f32 %v1739, %v1740
        %s1742 = sld [smem:[#allocation5 + $0x16]]
        %s1743 = sld [smem:[#allocation7 + $0x16]]
        %v1744 = vmul.f32 %v1708, %v668
        %v1745 = vmul.f32 %v1719, %v670
        %v1746 = vadd.f32 %v1744, %v1745
        %v1747 = vmul.f32 %v1730, %v673
        %v1748 = vadd.f32 %v1746, %v1747
        %v1749 = vmul.f32 %v1741, %v676
        %v1750 = vadd.f32 %v1748, %v1749
        %v1751 = vadd.f32 %v1750, %v679
        %v1752 = vstv %s1742
        %v1753 = vmul.f32 %v1752, %v1708
        %v1754 = vstv %s1743
        %v1755 = vmul.f32 %v1754, %v1751
        %v1756 = vadd.f32 %v1753, %v1755
        %v1757 = vmul.f32 %v1708, %v686
        %v1758 = vmul.f32 %v1719, %v688
        %v1759 = vadd.f32 %v1757, %v1758
        %v1760 = vmul.f32 %v1730, %v691
        %v1761 = vadd.f32 %v1759, %v1760
        %v1762 = vmul.f32 %v1741, %v694
        %v1763 = vadd.f32 %v1761, %v1762
        %v1764 = vadd.f32 %v1763, %v697
        %v1765 = vmul.f32 %v1752, %v1719
        %v1766 = vmul.f32 %v1754, %v1764
        %v1767 = vadd.f32 %v1765, %v1766
        %v1768 = vmul.f32 %v1708, %v702
        %v1769 = vmul.f32 %v1719, %v704
        %v1770 = vadd.f32 %v1768, %v1769
        %v1771 = vmul.f32 %v1730, %v707
        %v1772 = vadd.f32 %v1770, %v1771
        %v1773 = vmul.f32 %v1741, %v710
        %v1774 = vadd.f32 %v1772, %v1773
        %v1775 = vadd.f32 %v1774, %v713
        %v1776 = vmul.f32 %v1752, %v1730
        %v1777 = vmul.f32 %v1754, %v1775
        %v1778 = vadd.f32 %v1776, %v1777
        %v1779 = vmul.f32 %v1708, %v718
        %v1780 = vmul.f32 %v1719, %v720
        %v1781 = vadd.f32 %v1779, %v1780
        %v1782 = vmul.f32 %v1730, %v723
        %v1783 = vadd.f32 %v1781, %v1782
        %v1784 = vmul.f32 %v1741, %v726
        %v1785 = vadd.f32 %v1783, %v1784
        %v1786 = vadd.f32 %v1785, %v729
        %v1787 = vmul.f32 %v1752, %v1741
        %v1788 = vmul.f32 %v1754, %v1786
        %v1789 = vadd.f32 %v1787, %v1788
        %s1790 = sld [smem:[#allocation5 + $0x17]]
        %s1791 = sld [smem:[#allocation7 + $0x17]]
        %v1792 = vmul.f32 %v1756, %v668
        %v1793 = vmul.f32 %v1767, %v670
        %v1794 = vadd.f32 %v1792, %v1793
        %v1795 = vmul.f32 %v1778, %v673
        %v1796 = vadd.f32 %v1794, %v1795
        %v1797 = vmul.f32 %v1789, %v676
        %v1798 = vadd.f32 %v1796, %v1797
        %v1799 = vadd.f32 %v1798, %v679
        %v1800 = vstv %s1790
        %v1801 = vmul.f32 %v1800, %v1756
        %v1802 = vstv %s1791
        %v1803 = vmul.f32 %v1802, %v1799
        %v1804 = vadd.f32 %v1801, %v1803
        %v1805 = vmul.f32 %v1756, %v686
        %v1806 = vmul.f32 %v1767, %v688
        %v1807 = vadd.f32 %v1805, %v1806
        %v1808 = vmul.f32 %v1778, %v691
        %v1809 = vadd.f32 %v1807, %v1808
        %v1810 = vmul.f32 %v1789, %v694
        %v1811 = vadd.f32 %v1809, %v1810
        %v1812 = vadd.f32 %v1811, %v697
        %v1813 = vmul.f32 %v1800, %v1767
        %v1814 = vmul.f32 %v1802, %v1812
        %v1815 = vadd.f32 %v1813, %v1814
        %v1816 = vmul.f32 %v1756, %v702
        %v1817 = vmul.f32 %v1767, %v704
        %v1818 = vadd.f32 %v1816, %v1817
        %v1819 = vmul.f32 %v1778, %v707
        %v1820 = vadd.f32 %v1818, %v1819
        %v1821 = vmul.f32 %v1789, %v710
        %v1822 = vadd.f32 %v1820, %v1821
        %v1823 = vadd.f32 %v1822, %v713
        %v1824 = vmul.f32 %v1800, %v1778
        %v1825 = vmul.f32 %v1802, %v1823
        %v1826 = vadd.f32 %v1824, %v1825
        %v1827 = vmul.f32 %v1756, %v718
        %v1828 = vmul.f32 %v1767, %v720
        %v1829 = vadd.f32 %v1827, %v1828
        %v1830 = vmul.f32 %v1778, %v723
        %v1831 = vadd.f32 %v1829, %v1830
        %v1832 = vmul.f32 %v1789, %v726
        %v1833 = vadd.f32 %v1831, %v1832
        %v1834 = vadd.f32 %v1833, %v729
        %v1835 = vmul.f32 %v1800, %v1789
        %v1836 = vmul.f32 %v1802, %v1834
        %v1837 = vadd.f32 %v1835, %v1836
        %s1838 = sld [smem:[#allocation5 + $0x18]]
        %s1839 = sld [smem:[#allocation7 + $0x18]]
        %v1840 = vmul.f32 %v1804, %v668
        %v1841 = vmul.f32 %v1815, %v670
        %v1842 = vadd.f32 %v1840, %v1841
        %v1843 = vmul.f32 %v1826, %v673
        %v1844 = vadd.f32 %v1842, %v1843
        %v1845 = vmul.f32 %v1837, %v676
        %v1846 = vadd.f32 %v1844, %v1845
        %v1847 = vadd.f32 %v1846, %v679
        %v1848 = vstv %s1838
        %v1849 = vmul.f32 %v1848, %v1804
        %v1850 = vstv %s1839
        %v1851 = vmul.f32 %v1850, %v1847
        %v1852 = vadd.f32 %v1849, %v1851
        %v1853 = vmul.f32 %v1804, %v686
        %v1854 = vmul.f32 %v1815, %v688
        %v1855 = vadd.f32 %v1853, %v1854
        %v1856 = vmul.f32 %v1826, %v691
        %v1857 = vadd.f32 %v1855, %v1856
        %v1858 = vmul.f32 %v1837, %v694
        %v1859 = vadd.f32 %v1857, %v1858
        %v1860 = vadd.f32 %v1859, %v697
        %v1861 = vmul.f32 %v1848, %v1815
        %v1862 = vmul.f32 %v1850, %v1860
        %v1863 = vadd.f32 %v1861, %v1862
        %v1864 = vmul.f32 %v1804, %v702
        %v1865 = vmul.f32 %v1815, %v704
        %v1866 = vadd.f32 %v1864, %v1865
        %v1867 = vmul.f32 %v1826, %v707
        %v1868 = vadd.f32 %v1866, %v1867
        %v1869 = vmul.f32 %v1837, %v710
        %v1870 = vadd.f32 %v1868, %v1869
        %v1871 = vadd.f32 %v1870, %v713
        %v1872 = vmul.f32 %v1848, %v1826
        %v1873 = vmul.f32 %v1850, %v1871
        %v1874 = vadd.f32 %v1872, %v1873
        %v1875 = vmul.f32 %v1804, %v718
        %v1876 = vmul.f32 %v1815, %v720
        %v1877 = vadd.f32 %v1875, %v1876
        %v1878 = vmul.f32 %v1826, %v723
        %v1879 = vadd.f32 %v1877, %v1878
        %v1880 = vmul.f32 %v1837, %v726
        %v1881 = vadd.f32 %v1879, %v1880
        %v1882 = vadd.f32 %v1881, %v729
        %v1883 = vmul.f32 %v1848, %v1837
        %v1884 = vmul.f32 %v1850, %v1882
        %v1885 = vadd.f32 %v1883, %v1884
        %s1886 = sld [smem:[#allocation16]]
        %v1887 = vstv %s1886
        %v1888 = vmul.f32 %v1852, %v1887
        %s1889 = sld [smem:[#allocation16 + $0x1]]
        %v1890 = vstv %s1889
        %v1891 = vmul.f32 %v1863, %v1890
        %v1892 = vadd.f32 %v1888, %v1891
        %s1893 = sld [smem:[#allocation16 + $0x2]]
        %v1894 = vstv %s1893
        %v1895 = vmul.f32 %v1874, %v1894
        %v1896 = vadd.f32 %v1892, %v1895
        %s1897 = sld [smem:[#allocation16 + $0x3]]
        %v1898 = vstv %s1897
        %v1899 = vmul.f32 %v1885, %v1898
        %v1900 = vadd.f32 %v1896, %v1899
        %s1901 = sld [smem:[#allocation11]]
        %v1902 = vstv %s1901
        %v1903 = vadd.f32 %v1900, %v1902
        %v1904 = vadd.f32 %v1903, 1.0
        %v1905 = vmul.f32 %v1904, 0.5
        %v1906 = vmax.f32 %v1905, 0.0
        %v1907 = vmin.f32 %v1906, 1.0
        %v1908 = vsub.f32 %v1907, %v584
        %v1909 = vmul.f32 %v1908, %v1908
        %s1910 = sld [smem:[#allocation16 + $0x80]]
        %v1911 = vstv %s1910
        %v1912 = vmul.f32 %v1852, %v1911
        %s1913 = sld [smem:[#allocation16 + $0x81]]
        %v1914 = vstv %s1913
        %v1915 = vmul.f32 %v1863, %v1914
        %v1916 = vadd.f32 %v1912, %v1915
        %s1917 = sld [smem:[#allocation16 + $0x82]]
        %v1918 = vstv %s1917
        %v1919 = vmul.f32 %v1874, %v1918
        %v1920 = vadd.f32 %v1916, %v1919
        %s1921 = sld [smem:[#allocation16 + $0x83]]
        %v1922 = vstv %s1921
        %v1923 = vmul.f32 %v1885, %v1922
        %v1924 = vadd.f32 %v1920, %v1923
        %s1925 = sld [smem:[#allocation11 + $0x1]]
        %v1926 = vstv %s1925
        %v1927 = vadd.f32 %v1924, %v1926
        %v1928 = vadd.f32 %v1927, 1.0
        %v1929 = vmul.f32 %v1928, 0.5
        %v1930 = vmax.f32 %v1929, 0.0
        %v1931 = vmin.f32 %v1930, 1.0
        %v1932 = vsub.f32 %v1931, %v586
        %v1933 = vmul.f32 %v1932, %v1932
        %v1934 = vadd.f32 %v1909, %v1933
        %s1935 = sld [smem:[#allocation16 + $0x100]]
        %v1936 = vstv %s1935
        %v1937 = vmul.f32 %v1852, %v1936
        %s1938 = sld [smem:[#allocation16 + $0x101]]
        %v1939 = vstv %s1938
        %v1940 = vmul.f32 %v1863, %v1939
        %v1941 = vadd.f32 %v1937, %v1940
        %s1942 = sld [smem:[#allocation16 + $0x102]]
        %v1943 = vstv %s1942
        %v1944 = vmul.f32 %v1874, %v1943
        %v1945 = vadd.f32 %v1941, %v1944
        %s1946 = sld [smem:[#allocation16 + $0x103]]
        %v1947 = vstv %s1946
        %v1948 = vmul.f32 %v1885, %v1947
        %v1949 = vadd.f32 %v1945, %v1948
        %s1950 = sld [smem:[#allocation11 + $0x2]]
        %v1951 = vstv %s1950
        %v1952 = vadd.f32 %v1949, %v1951
        %v1953 = vadd.f32 %v1952, 1.0
        %v1954 = vmul.f32 %v1953, 0.5
        %v1955 = vmax.f32 %v1954, 0.0
        %v1956 = vmin.f32 %v1955, 1.0
        %v1957 = vsub.f32 %v1956, %v588
        %v1958 = vmul.f32 %v1957, %v1957
        %v1959 = vadd.f32 %v1934, %v1958
        // Predicated region
        $region105: #{diffusion_loss_forward.1} parent=63 // pred_check
          %p1960 = pneg %p553
        $region106: #{diffusion_loss_forward.1} parent=63 // pred_check_branch
          %1962 = sbr.rel (%p1960) target = $region108
        $region107: #{diffusion_loss_forward.1} parent=63 // pred_region
          %v1963 = vlaneseq
          %v1964 = vshrl.u32 %v1963, 7
          %v1965 = vlaneseq
          %v1966 = vand.u32 %v1965, 127
          %v1967 = vmul.u32 %v1964, 128
          %v1968 = vadd.s32 %v1967, %v1966
          %v1969 = vld [vmem:[#allocation2] sm:$0xff]
          %vm1970 = vcmp.lt.s32.totalorder %v1968, 256
          %v1971 = vsel %vm1970, %v1959, 0.0
          %v1972 = vadd.f32 %v1969, %v1971
          %1973 = vst [vmem:[#allocation2] sm:$0xff] %v1972
        $region108: #{diffusion_loss_forward.1} parent=63 // pred_fallthru
          _
        %p1974 = scmp.ne.s32.totalorder %s32, 0
        // Predicated region
        $region109: #{diffusion_loss_forward.1} parent=63 // pred_check
          %p1975 = pneg %p1974
        $region110: #{diffusion_loss_forward.1} parent=63 // pred_check_branch
          %1977 = sbr.rel (%p1975) target = $region112
        $region111: #{diffusion_loss_forward.1} parent=63 // pred_region
          %v1978 = vld [vmem:[#allocation2] sm:$0xff]
          %v1979 = vadd.f32 %v1978, %v1959
          %1980 = vst [vmem:[#allocation2] sm:$0xff] %v1979
        $region112: #{diffusion_loss_forward.1} parent=63 // pred_fallthru
          _
        // Predicated region
        $region113: #{diffusion_loss_forward.1} parent=63 // pred_check
          %p1981 = pneg %p553
        $region114: #{diffusion_loss_forward.1} parent=63 // pred_check_branch
          %1983 = sbr.rel (%p1981) target = $region116
        $region115: #{diffusion_loss_forward.1} parent=63 // pred_region
          %v1984 = vld [vmem:[#allocation2] sm:$0xff]
          %1985 = vst [vmem:[%s552] sm:$0xff] %v1984
        $region116: #{diffusion_loss_forward.1} parent=63 // pred_fallthru
          _
        %p1986 = scmp.lt.s32.totalorder %s31, 1
        %s1987 = scalar_select %p1986, %s31, 1
        %s1988 = smul.addr %s1987, 8
        %s1989 = scalar_lea.vmem %s11, %s1988
        // Predicated region
        $region117: #{diffusion_loss_forward.1} parent=63 // pred_check
          %p1990 = pneg %p302
        $region118: #{diffusion_loss_forward.1} parent=63 // pred_check_branch
          %1992 = sbr.rel (%p1990) target = $region120
        $region119: #{diffusion_loss_forward.1} parent=63 // pred_region
          _
        $region120: #{diffusion_loss_forward.1} parent=63 // pred_fallthru
          _
      $region64: #{diffusion_loss_forward.1} parent=5 // pred_fallthru
        _
      %p1993 = scmp.le.s32.totalorder 2, %s22
      // Predicated region
      $region121: #{diffusion_loss_forward.1} parent=5 // pred_check
        %p1994 = pneg %p1993
      $region122: #{diffusion_loss_forward.1} parent=5 // pred_check_branch
        %1996 = sbr.rel (%p1994) target = $region124
      $region123: #{diffusion_loss_forward.1} parent=5 // pred_region
        %s1997 = ssub.s32 %s22, 2
        // Predicated region
        $region125: #{diffusion_loss_forward.1} parent=123 // pred_check
          %p1998 = pneg %p308
        $region126: #{diffusion_loss_forward.1} parent=123 // pred_check_branch
          %2000 = sbr.rel (%p1998) target = $region128
        $region127: #{diffusion_loss_forward.1} parent=123 // pred_region
          %p2001 = scmp.lt.s32.totalorder %s33, 1
          %s2002 = scalar_select %p2001, %s33, 1
          %s2003 = smul.addr %s2002, 8
          %s2004 = scalar_lea.vmem %s11, %s2003
        $region128: #{diffusion_loss_forward.1} parent=123 // pred_fallthru
          _
      $region124: #{diffusion_loss_forward.1} parent=5 // pred_fallthru
        _
    $region6: #{diffusion_loss_forward.1} parent=1 // loop_footer
      %s26 = sadd.s32 1, %s22
    $region7: #{diffusion_loss_forward.1} parent=1 // loop_footer_branch
      %21 = sbr.rel target = $region3
    $region8: #{diffusion_loss_forward.1} parent=1 // loop_exit
      _
    %2005 = vsyncpa [#allocation4], 1
    %s2006 = scalar_lea.sflag [#allocation4], 1
    %2007 = vsyncpa %s2006, 1
    %2008 = vsyncpa [#allocation6], 1
    %2009 = vsyncpa [#allocation9], 1
    %2010 = vsyncpa [#allocation12], 1
    %2011 = vsyncpa [#allocation15], 1

</llo_original>
